<compile_context>
chip_gen: v5e
topology: v5e:2x2
jax: 0.10.0
libtpu: 0.0.40
codegen_flags: <defaults>
</compile_context>

<pallas_src>
import functools

import jax
import jax.numpy as jnp
import numpy as np
from jax.experimental import pallas as pl
from jax.experimental.pallas import tpu as pltpu


def _cdiv(a, b):
    return -(-a // b)


def _round_up(x, m):
    return (x + m - 1) // m * m


def _largest_divisor_tile(dim_p, cap, step):
    """Largest multiple-of-`step` divisor of dim_p that is <= cap (dim_p % step == 0)."""
    start = (min(cap, dim_p) // step) * step
    for cand in range(start, step - 1, -step):
        if dim_p % cand == 0:
            return cand
    return step


# ----------------------------- Pallas kernels ------------------------------ #
def _fused_enc_dec_kernel(a_ref, w1_ref, b1_ref, w2_ref, lat_ref, con_ref, acc_ref):
    """z = sigmoid(a @ w1 + b1);  lat <- z;  con <- z @ w2   (one kernel)."""
    @pl.when(pl.program_id(1) == 0)
    def _():
        acc_ref[...] = jnp.zeros_like(acc_ref)

    acc_ref[...] += jnp.dot(a_ref[...], w1_ref[...],
                            preferred_element_type=jnp.float32)

    @pl.when(pl.program_id(1) == pl.num_programs(1) - 1)
    def _():
        z = acc_ref[...] + b1_ref[...]
        # exp + approx reciprocal both run in the EUP slot -> cheap epilogue.
        z = pl.reciprocal(1.0 + jnp.exp(-z), approx=True)
        lat_ref[...] = z.astype(lat_ref.dtype)
        # Decoder contraction over the 32 real latent channels (padded rows of
        # w2 are zero, so the sigmoid(0)=0.5 padding columns contribute nothing).
        con_ref[...] = jnp.dot(z.astype(jnp.bfloat16), w2_ref[...],
                               preferred_element_type=jnp.float32)


def _col2im_bias_sigmoid_kernel(con_ref, bias_ref, out_ref, acc_ref,
                                *, K, stride, Ho, Wo):
    """Gather-style col2im (phase layout) + bias + exact sigmoid, per batch item.

    con_ref : (1, K*K, Ho, Wo)   per-(kh,kw) contribution planes
    out_ref : (1, stride*stride, Hq, Wq)   phase-decomposed output
    """
    acc_ref[...] = jnp.zeros_like(acc_ref)
    for kh in range(K):
        for kw in range(K):
            plane = con_ref[0, kh * K + kw, :, :]          # (Ho, Wo)
            p = (kh % stride) * stride + (kw % stride)     # phase index
            a = kh // stride                               # row offset in phase
            b = kw // stride                               # col offset in phase
            acc_ref[p, a:a + Ho, b:b + Wo] += plane
    z = acc_ref[...] + bias_ref[0]
    # Final epilogue uses an EXACT reciprocal (output fidelity, per review).
    out_ref[0] = (1.0 / (1.0 + jnp.exp(-z))).astype(out_ref.dtype)


# ----------------------------- Pallas wrappers ------------------------------ #
def fused_encoder_decoder_gemm(patches, w1_p, b1_p, w2_p,
                               *, tm_cap=256, tk_cap=512):
    """One Pallas call: latent = sigmoid(patches@w1+b1), contrib = latent@w2.

    patches : (M, K1)    any float dtype (cast to bf16 internally)
    w1_p    : (Kp1, Np1) bf16, pre-padded (multiples of 128)
    b1_p    : (1, Np1)   f32,  pre-padded
    w2_p    : (Np1, Np2) bf16, pre-padded (rows beyond C1 are zero)
    Returns padded (Mp, Np1) latent and (Mp, Np2) contrib, both f32.
    """
    M, K1 = patches.shape
    Kp1, Np1 = w1_p.shape
    _, Np2 = w2_p.shape

    # tm: multiple of 16 (bf16 sublane packing); aim for >=2 M-blocks so the
    # "parallel" axis can shard across v7x's 2 TensorCores.
    tm = max(16, min(tm_cap, _round_up(_cdiv(M, 2), 16)))
    Mp = _round_up(M, tm)
    tk = _largest_divisor_tile(Kp1, tk_cap, 128)

    a_p = jnp.pad(patches.astype(jnp.bfloat16), ((0, Mp - M), (0, Kp1 - K1)))

    grid_spec = pltpu.PrefetchScalarGridSpec(
        num_scalar_prefetch=0,
        grid=(Mp // tm, Kp1 // tk),
        in_specs=[
            pl.BlockSpec((tm, tk), lambda i, k: (i, k)),
            pl.BlockSpec((tk, Np1), lambda i, k: (k, 0)),
            pl.BlockSpec((1, Np1), lambda i, k: (0, 0)),
            pl.BlockSpec((Np1, Np2), lambda i, k: (0, 0)),   # w2 resident in VMEM
        ],
        out_specs=[
            pl.BlockSpec((tm, Np1), lambda i, k: (i, 0)),
            pl.BlockSpec((tm, Np2), lambda i, k: (i, 0)),
        ],
        scratch_shapes=[pltpu.VMEM((tm, Np1), jnp.float32)],
    )
    lat_p, con_p = pl.pallas_call(
        _fused_enc_dec_kernel,
        out_shape=(jax.ShapeDtypeStruct((Mp, Np1), jnp.float32),
                   jax.ShapeDtypeStruct((Mp, Np2), jnp.float32)),
        grid_spec=grid_spec,
        compiler_params=pltpu.CompilerParams(
            dimension_semantics=("parallel", "arbitrary"),
            vmem_limit_bytes=48 << 20),   # above 16/32 MiB defaults, under v7x 64 MiB
    )(a_p, w1_p, b1_p, w2_p)
    return lat_p, con_p


def col2im_bias_sigmoid(contrib4, bias, *, K, stride, Ho, Wo, Hout, Wout):
    """ConvTranspose col2im + bias + sigmoid as one Pallas kernel per batch item.

    contrib4 : (B, K*K, Ho, Wo) f32 ; bias : (1,) f32.
    Returns (B, 1, Hout, Wout) f32.
    """
    B, KK, _, _ = contrib4.shape
    nph = _cdiv(K, stride)
    Hq = Ho - 1 + nph
    Wq = Wo - 1 + nph

    kernel = functools.partial(_col2im_bias_sigmoid_kernel,
                               K=K, stride=stride, Ho=Ho, Wo=Wo)
    outp = pl.pallas_call(
        kernel,
        out_shape=jax.ShapeDtypeStruct((B, stride * stride, Hq, Wq), jnp.float32),
        grid_spec=pltpu.PrefetchScalarGridSpec(
            num_scalar_prefetch=0,
            grid=(B,),
            in_specs=[
                pl.BlockSpec((1, KK, Ho, Wo), lambda b: (b, 0, 0, 0)),
                pl.BlockSpec(memory_space=pltpu.MemorySpace.SMEM),
            ],
            out_specs=pl.BlockSpec((1, stride * stride, Hq, Wq),
                                   lambda b: (b, 0, 0, 0)),
            scratch_shapes=[pltpu.VMEM((stride * stride, Hq, Wq), jnp.float32)],
        ),
        compiler_params=pltpu.CompilerParams(dimension_semantics=("parallel",)),
    )(contrib4, bias.astype(jnp.float32).reshape(1))

    # Interleave the stride*stride phase planes back into (Hout, Wout): h = qh*s+rh.
    out = outp.reshape(B, stride, stride, Hq, Wq).transpose(0, 3, 1, 4, 2)
    out = out.reshape(B, Hq * stride, Wq * stride)[:, :Hout, :Wout]
    return out[:, None, :, :]


# ------------------------------ JAX glue ----------------------------------- #
def _im2col(x, K, stride):
    """x: (B, C, H, W) -> (B*Ho*Wo, C*K*K) patch matrix (VALID padding)."""
    # TODO(synk): at production sizes (size=50, large images) fuse patch
    # extraction into the fused GEMM kernel (manual DMA / Element index maps over
    # an NHWC input) instead of materializing the K*K-times-larger patch matrix.
    B, C, H, W = x.shape
    Ho = (H - K) // stride + 1
    Wo = (W - K) // stride + 1
    cols = []
    for kh in range(K):
        for kw in range(K):
            cols.append(x[:, :, kh:kh + stride * Ho:stride,
                              kw:kw + stride * Wo:stride])
    p = jnp.stack(cols, axis=2)                       # (B, C, K*K, Ho, Wo)
    p = p.transpose(0, 3, 4, 1, 2).reshape(B * Ho * Wo, C * K * K)
    return p, Ho, Wo


def prepare_params(w1, b1, w2, b2):
    """Reshape / cast / pad weights ONCE, outside the jitted hot path."""
    C1, Cin, K, _ = w1.shape
    Cin2, Cout2, _, _ = w2.shape
    assert Cin2 == C1
    assert Cout2 == 1  # module uses a single output channel
    # TODO(synk): Cout2 > 1 would need a per-channel loop in the col2im kernel.

    # Encoder GEMM weights: (Cin*K*K, C1), bf16, padded to multiples of 128.
    w1m = w1.reshape(C1, Cin * K * K).T
    Kp1 = _round_up(w1m.shape[0], 128)
    Np1 = _round_up(C1, 128)
    w1_p = jnp.pad(w1m.astype(jnp.bfloat16),
                   ((0, Kp1 - w1m.shape[0]), (0, Np1 - C1)))
    b1_p = jnp.pad(b1.astype(jnp.float32), (0, Np1 - C1)).reshape(1, Np1)

    # Decoder col2im GEMM weights: (C1, Cout2*K*K) -> padded (Np1, Np2), bf16.
    # Rows beyond C1 are zero so the padded latent columns contribute nothing.
    w2m = w2.reshape(Cin2, Cout2 * K * K)
    Np2 = _round_up(Cout2 * K * K, 128)
    w2_p = jnp.pad(w2m.astype(jnp.bfloat16),
                   ((0, Np1 - Cin2), (0, Np2 - Cout2 * K * K)))

    arrays = dict(w1_p=w1_p, b1_p=b1_p, w2_p=w2_p, b2=b2.astype(jnp.float32))
    static = dict(K=K, C1=C1, Cout2=Cout2)
    return arrays, static


def encoder_decoder_forward(x, w1_p, b1_p, w2_p, b2, *, K, C1, Cout2, stride=2):
    """Forward of EncoderDecoder_largekernal (refine_latent=False path).

    Returns (out, latent) exactly like the PyTorch module (NCHW, f32).
    """
    B = x.shape[0]

    # --- encoder Conv2d + Sigmoid  and decoder ConvTranspose2d GEMM (fused) ---
    patches, Ho, Wo = _im2col(x.astype(jnp.bfloat16), K, stride)  # (M, Cin*K*K)
    lat_p, con_p = fused_encoder_decoder_gemm(patches, w1_p, b1_p, w2_p)
    M = B * Ho * Wo

    latent = lat_p[:M, :C1].reshape(B, Ho, Wo, C1).transpose(0, 3, 1, 2)  # NCHW

    # --- decoder col2im + bias + sigmoid (single Pallas pass over contrib) ----
    KK = Cout2 * K * K
    # TODO(synk): have the fused GEMM emit contrib directly in (B, KK, Ho, Wo)
    # layout to drop this small XLA reshape/transpose pass at production sizes.
    contrib4 = con_p[:M, :KK].reshape(B, Ho, Wo, KK).transpose(0, 3, 1, 2)

    Hout = (Ho - 1) * stride + K
    Wout = (Wo - 1) * stride + K
    out = col2im_bias_sigmoid(contrib4, b2, K=K, stride=stride,
                              Ho=Ho, Wo=Wo, Hout=Hout, Wout=Wout)
    return out, latent


# ------------------------------- main --------------------------------------- #
if __name__ == "__main__":
    # Small-shape analogue of EncoderDecoder_largekernal(in_channels=3, size=50):
    # kernel size K ("size") = 8, 32 latent channels as in the module.
    B, Cin, H, W = 2, 3, 20, 20
    K = 8
    C1 = 32
    stride = 2

    key = jax.random.PRNGKey(0)
    k1, k2, k3, k4, k5 = jax.random.split(key, 5)
    fan1 = Cin * K * K
    fan2 = 1 * K * K          # ConvTranspose fan_in uses weight.size(1)*k*k
    w1 = jax.random.uniform(k1, (C1, Cin, K, K), jnp.float32, -1.0, 1.0) / np.sqrt(fan1)
    b1 = jax.random.uniform(k2, (C1,), jnp.float32, -1.0, 1.0) / np.sqrt(fan1)
    w2 = jax.random.uniform(k3, (C1, 1, K, K), jnp.float32, -1.0, 1.0) / np.sqrt(fan2)
    b2 = jax.random.uniform(k4, (1,), jnp.float32, -1.0, 1.0) / np.sqrt(fan2)
    x = jax.random.normal(k5, (B, Cin, H, W), jnp.float32)

    arrays, static = prepare_params(w1, b1, w2, b2)     # once, outside the jit
    fwd = jax.jit(functools.partial(encoder_decoder_forward,
                                    stride=stride, **static))
    out, latent = fwd(x, arrays["w1_p"], arrays["b1_p"], arrays["w2_p"],
                      arrays["b2"])
    jax.block_until_ready((out, latent))

    assert latent.shape == (B, C1, 7, 7), latent.shape   # floor((20-8)/2)+1 = 7
    assert out.shape == (B, 1, 20, 20), out.shape        # (7-1)*2 + 8 = 20

    # Cross-check against full-f32 XLA convolutions (independent lowering).
    # Tolerances account for bf16 GEMM inputs (f32 accumulation) + approx
    # reciprocal in the encoder sigmoid (decoder sigmoid is exact).
    ref_lat = jax.nn.sigmoid(
        jax.lax.conv_general_dilated(
            x, w1, window_strides=(stride, stride), padding="VALID",
            dimension_numbers=("NCHW", "OIHW", "NCHW"))
        + b1[None, :, None, None])
    w2c = jnp.flip(w2, axis=(2, 3)).transpose(1, 0, 2, 3)
    ref_out = jax.nn.sigmoid(
        jax.lax.conv_general_dilated(
            ref_lat, w2c, window_strides=(1, 1),
            padding=[(K - 1, K - 1), (K - 1, K - 1)],
            lhs_dilation=(stride, stride),
            dimension_numbers=("NCHW", "OIHW", "NCHW"))
        + b2[None, :, None, None])
    np.testing.assert_allclose(np.asarray(latent), np.asarray(ref_lat),
                               rtol=3e-2, atol=3e-2)
    np.testing.assert_allclose(np.asarray(out), np.asarray(ref_out),
                               rtol=3e-2, atol=3e-2)

    print("KERNEL_OK")
</pallas_src>

<mosaic_0001>
module attributes {stable_mosaic.version = 11 : i64} {
  func.func @_fused_enc_dec_kernel(%arg0: i32, %arg1: i32, %arg2: memref<64x256xbf16, #tpu.memory_space<vmem>>, %arg3: memref<256x128xbf16, #tpu.memory_space<vmem>>, %arg4: memref<1x128xf32, #tpu.memory_space<vmem>>, %arg5: memref<128x128xbf16, #tpu.memory_space<vmem>>, %arg6: memref<64x128xf32, #tpu.memory_space<vmem>>, %arg7: memref<64x128xf32, #tpu.memory_space<vmem>>, %arg8: memref<64x128xf32, #tpu.memory_space<vmem>>) attributes {dimension_semantics = [#tpu.dimension_semantics<parallel>, #tpu.dimension_semantics<arbitrary>], iteration_bounds = array<i64: 2, 1>, scalar_prefetch = 0 : i64, scratch_operands = 1 : i64, tpu.core_type = #tpu.core_type<tc>, window_params = [{transform_indices = @transform_0, window_bounds = array<i64: 64, 256>}, {transform_indices = @transform_1, window_bounds = array<i64: 256, 128>}, {pipeline_mode = #tpu.pipeline_mode<synchronous>, transform_indices = @transform_2, window_bounds = array<i64: 1, 128>}, {pipeline_mode = #tpu.pipeline_mode<synchronous>, transform_indices = @transform_3, window_bounds = array<i64: 128, 128>}, {transform_indices = @transform_4, window_bounds = array<i64: 64, 128>}, {transform_indices = @transform_5, window_bounds = array<i64: 64, 128>}]} {
    %c0_i32 = arith.constant 0 : i32
    %0 = arith.cmpi eq, %arg1, %c0_i32 : i32
    %1 = arith.extui %0 : i1 to i32
    %c0_i32_0 = arith.constant 0 : i32
    %2 = arith.cmpi ne, %1, %c0_i32_0 : i32
    scf.if %2 {
      %cst_10 = arith.constant 0.000000e+00 : f32
      %12 = vector.broadcast %cst_10 : f32 to vector<64x128xf32>
      %c0_11 = arith.constant 0 : index
      %c0_12 = arith.constant 0 : index
      %13 = vector.load %arg8[%c0_11, %c0_12] : memref<64x128xf32, #tpu.memory_space<vmem>>, vector<64x128xf32>
      tpu.vector_store %arg8[%c0_11, %c0_12], %12 {strides = array<i32>} : memref<64x128xf32, #tpu.memory_space<vmem>>, vector<64x128xf32>,
    } else {
    }
    %c0 = arith.constant 0 : index
    %c0_1 = arith.constant 0 : index
    %3 = vector.load %arg8[%c0, %c0_1] : memref<64x128xf32, #tpu.memory_space<vmem>>, vector<64x128xf32>
    %c0_2 = arith.constant 0 : index
    %c0_3 = arith.constant 0 : index
    %4 = vector.load %arg2[%c0_2, %c0_3] : memref<64x256xbf16, #tpu.memory_space<vmem>>, vector<64x256xbf16>
    %c0_4 = arith.constant 0 : index
    %c0_5 = arith.constant 0 : index
    %5 = vector.load %arg3[%c0_4, %c0_5] : memref<256x128xbf16, #tpu.memory_space<vmem>>, vector<256x128xbf16>
    %cst = arith.constant dense<0.000000e+00> : vector<64x128xf32>
    %6 = tpu.matmul %4, %5, %cst {dimension_numbers = #tpu.dot_dimension_numbers<[1], [0], [0], [1], [0, 0, 1, 1], [], []>} : vector<64x256xbf16>, vector<256x128xbf16>, vector<64x128xf32> -> vector<64x128xf32>
    %7 = arith.addf %3, %6 : vector<64x128xf32>
    %c0_6 = arith.constant 0 : index
    %c0_7 = arith.constant 0 : index
    %8 = vector.load %arg8[%c0_6, %c0_7] : memref<64x128xf32, #tpu.memory_space<vmem>>, vector<64x128xf32>
    tpu.vector_store %arg8[%c0_6, %c0_7], %7 {strides = array<i32>} : memref<64x128xf32, #tpu.memory_space<vmem>>, vector<64x128xf32>,
    %c0_i32_8 = arith.constant 0 : i32
    %9 = arith.cmpi eq, %arg1, %c0_i32_8 : i32
    %10 = arith.extui %9 : i1 to i32
    %c0_i32_9 = arith.constant 0 : i32
    %11 = arith.cmpi ne, %10, %c0_i32_9 : i32
    scf.if %11 {
      %c0_10 = arith.constant 0 : index
      %c0_11 = arith.constant 0 : index
      %12 = vector.load %arg8[%c0_10, %c0_11] : memref<64x128xf32, #tpu.memory_space<vmem>>, vector<64x128xf32>
      %c0_12 = arith.constant 0 : index
      %c0_13 = arith.constant 0 : index
      %13 = vector.load %arg4[%c0_12, %c0_13] : memref<1x128xf32, #tpu.memory_space<vmem>>, vector<1x128xf32>
      %14 = vector.broadcast %13 : vector<1x128xf32> to vector<64x128xf32>
      %15 = arith.addf %12, %14 : vector<64x128xf32>
      %cst_14 = arith.constant 0.000000e+00 : f32
      %16 = vector.broadcast %cst_14 : f32 to vector<64x128xf32>
      %17 = arith.subf %16, %15 : vector<64x128xf32>
      %18 = math.exp %17 : vector<64x128xf32>
      %cst_15 = arith.constant 1.000000e+00 : f32
      %19 = vector.broadcast %cst_15 : f32 to vector<64x128xf32>
      %20 = arith.addf %19, %18 : vector<64x128xf32>
      %21 = tpu.reciprocal %20 {approx = true} : vector<64x128xf32> -> vector<64x128xf32>
      %c0_16 = arith.constant 0 : index
      %c0_17 = arith.constant 0 : index
      %22 = vector.load %arg6[%c0_16, %c0_17] : memref<64x128xf32, #tpu.memory_space<vmem>>, vector<64x128xf32>
      tpu.vector_store %arg6[%c0_16, %c0_17], %21 {strides = array<i32>} : memref<64x128xf32, #tpu.memory_space<vmem>>, vector<64x128xf32>,
      %23 = arith.truncf %21 : vector<64x128xf32> to vector<64x128xbf16>
      %c0_18 = arith.constant 0 : index
      %c0_19 = arith.constant 0 : index
      %24 = vector.load %arg5[%c0_18, %c0_19] : memref<128x128xbf16, #tpu.memory_space<vmem>>, vector<128x128xbf16>
      %cst_20 = arith.constant dense<0.000000e+00> : vector<64x128xf32>
      %25 = tpu.matmul %23, %24, %cst_20 {dimension_numbers = #tpu.dot_dimension_numbers<[1], [0], [0], [1], [0, 0, 1, 1], [], []>} : vector<64x128xbf16>, vector<128x128xbf16>, vector<64x128xf32> -> vector<64x128xf32>
      %c0_21 = arith.constant 0 : index
      %c0_22 = arith.constant 0 : index
      %26 = vector.load %arg7[%c0_21, %c0_22] : memref<64x128xf32, #tpu.memory_space<vmem>>, vector<64x128xf32>
      tpu.vector_store %arg7[%c0_21, %c0_22], %25 {strides = array<i32>} : memref<64x128xf32, #tpu.memory_space<vmem>>, vector<64x128xf32>,
    } else {
    }
    return
  }
  func.func @transform_0(%arg0: i32, %arg1: i32) -> (i32, i32) {
    %c0_i32 = arith.constant 0 : i32
    return %arg0, %arg1 : i32, i32
  }
  func.func @transform_1(%arg0: i32, %arg1: i32) -> (i32, i32) {
    %c0_i32 = arith.constant 0 : i32
    %c0_i32_0 = arith.constant 0 : i32
    return %arg1, %c0_i32 : i32, i32
  }
  func.func @transform_2(%arg0: i32, %arg1: i32) -> (i32, i32) {
    %c0_i32 = arith.constant 0 : i32
    %c0_i32_0 = arith.constant 0 : i32
    %c0_i32_1 = arith.constant 0 : i32
    return %c0_i32, %c0_i32_0 : i32, i32
  }
  func.func @transform_3(%arg0: i32, %arg1: i32) -> (i32, i32) {
    %c0_i32 = arith.constant 0 : i32
    %c0_i32_0 = arith.constant 0 : i32
    %c0_i32_1 = arith.constant 0 : i32
    return %c0_i32, %c0_i32_0 : i32, i32
  }
  func.func @transform_4(%arg0: i32, %arg1: i32) -> (i32, i32) {
    %c0_i32 = arith.constant 0 : i32
    %c0_i32_0 = arith.constant 0 : i32
    return %arg0, %c0_i32 : i32, i32
  }
  func.func @transform_5(%arg0: i32, %arg1: i32) -> (i32, i32) {
    %c0_i32 = arith.constant 0 : i32
    %c0_i32_0 = arith.constant 0 : i32
    return %arg0, %c0_i32 : i32, i32
  }
}

module attributes {stable_mosaic.version = 11 : i64} {
  func.func @_col2im_bias_sigmoid_kernel(%arg0: i32, %arg1: memref<1x64x7x7xf32, #tpu.memory_space<vmem>>, %arg2: memref<1xf32, #tpu.memory_space<smem>>, %arg3: memref<1x4x10x10xf32, #tpu.memory_space<vmem>>, %arg4: memref<4x10x10xf32, #tpu.memory_space<vmem>>) attributes {dimension_semantics = [#tpu.dimension_semantics<parallel>], iteration_bounds = array<i64: 2>, scalar_prefetch = 0 : i64, scratch_operands = 1 : i64, tpu.core_type = #tpu.core_type<tc>, window_params = [{transform_indices = @transform_0, window_bounds = array<i64: 1, 64, 7, 7>}, {transform_indices = @transform_1, window_bounds = array<i64: 1>}, {transform_indices = @transform_2, window_bounds = array<i64: 1, 4, 10, 10>}]} {
    %cst = arith.constant 0.000000e+00 : f32
    %0 = vector.broadcast %cst : f32 to vector<4x10x10xf32>
    %c0 = arith.constant 0 : index
    %c0_0 = arith.constant 0 : index
    %c0_1 = arith.constant 0 : index
    %1 = vector.load %arg4[%c0, %c0_0, %c0_1] : memref<4x10x10xf32, #tpu.memory_space<vmem>>, vector<4x10x10xf32>
    tpu.vector_store %arg4[%c0, %c0_0, %c0_1], %0 {strides = array<i32>} : memref<4x10x10xf32, #tpu.memory_space<vmem>>, vector<4x10x10xf32>,
    %c0_2 = arith.constant 0 : index
    %c0_3 = arith.constant 0 : index
    %c0_4 = arith.constant 0 : index
    %c0_5 = arith.constant 0 : index
    %2 = vector.load %arg1[%c0_2, %c0_3, %c0_4, %c0_5] : memref<1x64x7x7xf32, #tpu.memory_space<vmem>>, vector<1x1x7x7xf32>
    %3 = vector.shape_cast %2 : vector<1x1x7x7xf32> to vector<7x7xf32>
    %c0_6 = arith.constant 0 : index
    %c0_7 = arith.constant 0 : index
    %c0_8 = arith.constant 0 : index
    %4 = vector.load %arg4[%c0_6, %c0_7, %c0_8] : memref<4x10x10xf32, #tpu.memory_space<vmem>>, vector<1x7x7xf32>
    %5 = vector.shape_cast %4 : vector<1x7x7xf32> to vector<7x7xf32>
    %6 = arith.addf %5, %3 : vector<7x7xf32>
    %c0_9 = arith.constant 0 : index
    %c0_10 = arith.constant 0 : index
    %c0_11 = arith.constant 0 : index
    %7 = vector.load %arg4[%c0_9, %c0_10, %c0_11] : memref<4x10x10xf32, #tpu.memory_space<vmem>>, vector<1x7x7xf32>
    %8 = vector.shape_cast %7 : vector<1x7x7xf32> to vector<7x7xf32>
    %9 = vector.shape_cast %6 : vector<7x7xf32> to vector<1x7x7xf32>
    tpu.vector_store %arg4[%c0_9, %c0_10, %c0_11], %9 {strides = array<i32>} : memref<4x10x10xf32, #tpu.memory_space<vmem>>, vector<1x7x7xf32>,
    %c0_12 = arith.constant 0 : index
    %c1 = arith.constant 1 : index
    %c0_13 = arith.constant 0 : index
    %c0_14 = arith.constant 0 : index
    %10 = vector.load %arg1[%c0_12, %c1, %c0_13, %c0_14] : memref<1x64x7x7xf32, #tpu.memory_space<vmem>>, vector<1x1x7x7xf32>
    %11 = vector.shape_cast %10 : vector<1x1x7x7xf32> to vector<7x7xf32>
    %c1_15 = arith.constant 1 : index
    %c0_16 = arith.constant 0 : index
    %c0_17 = arith.constant 0 : index
    %12 = vector.load %arg4[%c1_15, %c0_16, %c0_17] : memref<4x10x10xf32, #tpu.memory_space<vmem>>, vector<1x7x7xf32>
    %13 = vector.shape_cast %12 : vector<1x7x7xf32> to vector<7x7xf32>
    %14 = arith.addf %13, %11 : vector<7x7xf32>
    %c1_18 = arith.constant 1 : index
    %c0_19 = arith.constant 0 : index
    %c0_20 = arith.constant 0 : index
    %15 = vector.load %arg4[%c1_18, %c0_19, %c0_20] : memref<4x10x10xf32, #tpu.memory_space<vmem>>, vector<1x7x7xf32>
    %16 = vector.shape_cast %15 : vector<1x7x7xf32> to vector<7x7xf32>
    %17 = vector.shape_cast %14 : vector<7x7xf32> to vector<1x7x7xf32>
    tpu.vector_store %arg4[%c1_18, %c0_19, %c0_20], %17 {strides = array<i32>} : memref<4x10x10xf32, #tpu.memory_space<vmem>>, vector<1x7x7xf32>,
    %c0_21 = arith.constant 0 : index
    %c2 = arith.constant 2 : index
    %c0_22 = arith.constant 0 : index
    %c0_23 = arith.constant 0 : index
    %18 = vector.load %arg1[%c0_21, %c2, %c0_22, %c0_23] : memref<1x64x7x7xf32, #tpu.memory_space<vmem>>, vector<1x1x7x7xf32>
    %19 = vector.shape_cast %18 : vector<1x1x7x7xf32> to vector<7x7xf32>
    %c0_24 = arith.constant 0 : index
    %c0_25 = arith.constant 0 : index
    %c1_26 = arith.constant 1 : index
    %20 = vector.load %arg4[%c0_24, %c0_25, %c1_26] : memref<4x10x10xf32, #tpu.memory_space<vmem>>, vector<1x7x7xf32>
    %21 = vector.shape_cast %20 : vector<1x7x7xf32> to vector<7x7xf32>
    %22 = arith.addf %21, %19 : vector<7x7xf32>
    %c0_27 = arith.constant 0 : index
    %c0_28 = arith.constant 0 : index
    %c1_29 = arith.constant 1 : index
    %23 = vector.load %arg4[%c0_27, %c0_28, %c1_29] : memref<4x10x10xf32, #tpu.memory_space<vmem>>, vector<1x7x7xf32>
    %24 = vector.shape_cast %23 : vector<1x7x7xf32> to vector<7x7xf32>
    %25 = vector.shape_cast %22 : vector<7x7xf32> to vector<1x7x7xf32>
    tpu.vector_store %arg4[%c0_27, %c0_28, %c1_29], %25 {strides = array<i32>} : memref<4x10x10xf32, #tpu.memory_space<vmem>>, vector<1x7x7xf32>,
    %c0_30 = arith.constant 0 : index
    %c3 = arith.constant 3 : index
    %c0_31 = arith.constant 0 : index
    %c0_32 = arith.constant 0 : index
    %26 = vector.load %arg1[%c0_30, %c3, %c0_31, %c0_32] : memref<1x64x7x7xf32, #tpu.memory_space<vmem>>, vector<1x1x7x7xf32>
    %27 = vector.shape_cast %26 : vector<1x1x7x7xf32> to vector<7x7xf32>
    %c1_33 = arith.constant 1 : index
    %c0_34 = arith.constant 0 : index
    %c1_35 = arith.constant 1 : index
    %28 = vector.load %arg4[%c1_33, %c0_34, %c1_35] : memref<4x10x10xf32, #tpu.memory_space<vmem>>, vector<1x7x7xf32>
    %29 = vector.shape_cast %28 : vector<1x7x7xf32> to vector<7x7xf32>
    %30 = arith.addf %29, %27 : vector<7x7xf32>
    %c1_36 = arith.constant 1 : index
    %c0_37 = arith.constant 0 : index
    %c1_38 = arith.constant 1 : index
    %31 = vector.load %arg4[%c1_36, %c0_37, %c1_38] : memref<4x10x10xf32, #tpu.memory_space<vmem>>, vector<1x7x7xf32>
    %32 = vector.shape_cast %31 : vector<1x7x7xf32> to vector<7x7xf32>
    %33 = vector.shape_cast %30 : vector<7x7xf32> to vector<1x7x7xf32>
    tpu.vector_store %arg4[%c1_36, %c0_37, %c1_38], %33 {strides = array<i32>} : memref<4x10x10xf32, #tpu.memory_space<vmem>>, vector<1x7x7xf32>,
    %c0_39 = arith.constant 0 : index
    %c4 = arith.constant 4 : index
    %c0_40 = arith.constant 0 : index
    %c0_41 = arith.constant 0 : index
    %34 = vector.load %arg1[%c0_39, %c4, %c0_40, %c0_41] : memref<1x64x7x7xf32, #tpu.memory_space<vmem>>, vector<1x1x7x7xf32>
    %35 = vector.shape_cast %34 : vector<1x1x7x7xf32> to vector<7x7xf32>
    %c0_42 = arith.constant 0 : index
    %c0_43 = arith.constant 0 : index
    %c2_44 = arith.constant 2 : index
    %36 = vector.load %arg4[%c0_42, %c0_43, %c2_44] : memref<4x10x10xf32, #tpu.memory_space<vmem>>, vector<1x7x7xf32>
    %37 = vector.shape_cast %36 : vector<1x7x7xf32> to vector<7x7xf32>
    %38 = arith.addf %37, %35 : vector<7x7xf32>
    %c0_45 = arith.constant 0 : index
    %c0_46 = arith.constant 0 : index
    %c2_47 = arith.constant 2 : index
    %39 = vector.load %arg4[%c0_45, %c0_46, %c2_47] : memref<4x10x10xf32, #tpu.memory_space<vmem>>, vector<1x7x7xf32>
    %40 = vector.shape_cast %39 : vector<1x7x7xf32> to vector<7x7xf32>
    %41 = vector.shape_cast %38 : vector<7x7xf32> to vector<1x7x7xf32>
    tpu.vector_store %arg4[%c0_45, %c0_46, %c2_47], %41 {strides = array<i32>} : memref<4x10x10xf32, #tpu.memory_space<vmem>>, vector<1x7x7xf32>,
    %c0_48 = arith.constant 0 : index
    %c5 = arith.constant 5 : index
    %c0_49 = arith.constant 0 : index
    %c0_50 = arith.constant 0 : index
    %42 = vector.load %arg1[%c0_48, %c5, %c0_49, %c0_50] : memref<1x64x7x7xf32, #tpu.memory_space<vmem>>, vector<1x1x7x7xf32>
    %43 = vector.shape_cast %42 : vector<1x1x7x7xf32> to vector<7x7xf32>
    %c1_51 = arith.constant 1 : index
    %c0_52 = arith.constant 0 : index
    %c2_53 = arith.constant 2 : index
    %44 = vector.load %arg4[%c1_51, %c0_52, %c2_53] : memref<4x10x10xf32, #tpu.memory_space<vmem>>, vector<1x7x7xf32>
    %45 = vector.shape_cast %44 : vector<1x7x7xf32> to vector<7x7xf32>
    %46 = arith.addf %45, %43 : vector<7x7xf32>
    %c1_54 = arith.constant 1 : index
    %c0_55 = arith.constant 0 : index
    %c2_56 = arith.constant 2 : index
    %47 = vector.load %arg4[%c1_54, %c0_55, %c2_56] : memref<4x10x10xf32, #tpu.memory_space<vmem>>, vector<1x7x7xf32>
    %48 = vector.shape_cast %47 : vector<1x7x7xf32> to vector<7x7xf32>
    %49 = vector.shape_cast %46 : vector<7x7xf32> to vector<1x7x7xf32>
    tpu.vector_store %arg4[%c1_54, %c0_55, %c2_56], %49 {strides = array<i32>} : memref<4x10x10xf32, #tpu.memory_space<vmem>>, vector<1x7x7xf32>,
    %c0_57 = arith.constant 0 : index
    %c6 = arith.constant 6 : index
    %c0_58 = arith.constant 0 : index
    %c0_59 = arith.constant 0 : index
    %50 = vector.load %arg1[%c0_57, %c6, %c0_58, %c0_59] : memref<1x64x7x7xf32, #tpu.memory_space<vmem>>, vector<1x1x7x7xf32>
    %51 = vector.shape_cast %50 : vector<1x1x7x7xf32> to vector<7x7xf32>
    %c0_60 = arith.constant 0 : index
    %c0_61 = arith.constant 0 : index
    %c3_62 = arith.constant 3 : index
    %52 = vector.load %arg4[%c0_60, %c0_61, %c3_62] : memref<4x10x10xf32, #tpu.memory_space<vmem>>, vector<1x7x7xf32>
    %53 = vector.shape_cast %52 : vector<1x7x7xf32> to vector<7x7xf32>
    %54 = arith.addf %53, %51 : vector<7x7xf32>
    %c0_63 = arith.constant 0 : index
    %c0_64 = arith.constant 0 : index
    %c3_65 = arith.constant 3 : index
    %55 = vector.load %arg4[%c0_63, %c0_64, %c3_65] : memref<4x10x10xf32, #tpu.memory_space<vmem>>, vector<1x7x7xf32>
    %56 = vector.shape_cast %55 : vector<1x7x7xf32> to vector<7x7xf32>
    %57 = vector.shape_cast %54 : vector<7x7xf32> to vector<1x7x7xf32>
    tpu.vector_store %arg4[%c0_63, %c0_64, %c3_65], %57 {strides = array<i32>} : memref<4x10x10xf32, #tpu.memory_space<vmem>>, vector<1x7x7xf32>,
    %c0_66 = arith.constant 0 : index
    %c7 = arith.constant 7 : index
    %c0_67 = arith.constant 0 : index
    %c0_68 = arith.constant 0 : index
    %58 = vector.load %arg1[%c0_66, %c7, %c0_67, %c0_68] : memref<1x64x7x7xf32, #tpu.memory_space<vmem>>, vector<1x1x7x7xf32>
    %59 = vector.shape_cast %58 : vector<1x1x7x7xf32> to vector<7x7xf32>
    %c1_69 = arith.constant 1 : index
    %c0_70 = arith.constant 0 : index
    %c3_71 = arith.constant 3 : index
    %60 = vector.load %arg4[%c1_69, %c0_70, %c3_71] : memref<4x10x10xf32, #tpu.memory_space<vmem>>, vector<1x7x7xf32>
    %61 = vector.shape_cast %60 : vector<1x7x7xf32> to vector<7x7xf32>
    %62 = arith.addf %61, %59 : vector<7x7xf32>
    %c1_72 = arith.constant 1 : index
    %c0_73 = arith.constant 0 : index
    %c3_74 = arith.constant 3 : index
    %63 = vector.load %arg4[%c1_72, %c0_73, %c3_74] : memref<4x10x10xf32, #tpu.memory_space<vmem>>, vector<1x7x7xf32>
    %64 = vector.shape_cast %63 : vector<1x7x7xf32> to vector<7x7xf32>
    %65 = vector.shape_cast %62 : vector<7x7xf32> to vector<1x7x7xf32>
    tpu.vector_store %arg4[%c1_72, %c0_73, %c3_74], %65 {strides = array<i32>} : memref<4x10x10xf32, #tpu.memory_space<vmem>>, vector<1x7x7xf32>,
    %c0_75 = arith.constant 0 : index
    %c8 = arith.constant 8 : index
    %c0_76 = arith.constant 0 : index
    %c0_77 = arith.constant 0 : index
    %66 = vector.load %arg1[%c0_75, %c8, %c0_76, %c0_77] : memref<1x64x7x7xf32, #tpu.memory_space<vmem>>, vector<1x1x7x7xf32>
    %67 = vector.shape_cast %66 : vector<1x1x7x7xf32> to vector<7x7xf32>
    %c2_78 = arith.constant 2 : index
    %c0_79 = arith.constant 0 : index
    %c0_80 = arith.constant 0 : index
    %68 = vector.load %arg4[%c2_78, %c0_79, %c0_80] : memref<4x10x10xf32, #tpu.memory_space<vmem>>, vector<1x7x7xf32>
    %69 = vector.shape_cast %68 : vector<1x7x7xf32> to vector<7x7xf32>
    %70 = arith.addf %69, %67 : vector<7x7xf32>
    %c2_81 = arith.constant 2 : index
    %c0_82 = arith.constant 0 : index
    %c0_83 = arith.constant 0 : index
    %71 = vector.load %arg4[%c2_81, %c0_82, %c0_83] : memref<4x10x10xf32, #tpu.memory_space<vmem>>, vector<1x7x7xf32>
    %72 = vector.shape_cast %71 : vector<1x7x7xf32> to vector<7x7xf32>
    %73 = vector.shape_cast %70 : vector<7x7xf32> to vector<1x7x7xf32>
    tpu.vector_store %arg4[%c2_81, %c0_82, %c0_83], %73 {strides = array<i32>} : memref<4x10x10xf32, #tpu.memory_space<vmem>>, vector<1x7x7xf32>,
    %c0_84 = arith.constant 0 : index
    %c9 = arith.constant 9 : index
    %c0_85 = arith.constant 0 : index
    %c0_86 = arith.constant 0 : index
    %74 = vector.load %arg1[%c0_84, %c9, %c0_85, %c0_86] : memref<1x64x7x7xf32, #tpu.memory_space<vmem>>, vector<1x1x7x7xf32>
    %75 = vector.shape_cast %74 : vector<1x1x7x7xf32> to vector<7x7xf32>
    %c3_87 = arith.constant 3 : index
    %c0_88 = arith.constant 0 : index
    %c0_89 = arith.constant 0 : index
    %76 = vector.load %arg4[%c3_87, %c0_88, %c0_89] : memref<4x10x10xf32, #tpu.memory_space<vmem>>, vector<1x7x7xf32>
    %77 = vector.shape_cast %76 : vector<1x7x7xf32> to vector<7x7xf32>
    %78 = arith.addf %77, %75 : vector<7x7xf32>
    %c3_90 = arith.constant 3 : index
    %c0_91 = arith.constant 0 : index
    %c0_92 = arith.constant 0 : index
    %79 = vector.load %arg4[%c3_90, %c0_91, %c0_92] : memref<4x10x10xf32, #tpu.memory_space<vmem>>, vector<1x7x7xf32>
    %80 = vector.shape_cast %79 : vector<1x7x7xf32> to vector<7x7xf32>
    %81 = vector.shape_cast %78 : vector<7x7xf32> to vector<1x7x7xf32>
    tpu.vector_store %arg4[%c3_90, %c0_91, %c0_92], %81 {strides = array<i32>} : memref<4x10x10xf32, #tpu.memory_space<vmem>>, vector<1x7x7xf32>,
    %c0_93 = arith.constant 0 : index
    %c10 = arith.constant 10 : index
    %c0_94 = arith.constant 0 : index
    %c0_95 = arith.constant 0 : index
    %82 = vector.load %arg1[%c0_93, %c10, %c0_94, %c0_95] : memref<1x64x7x7xf32, #tpu.memory_space<vmem>>, vector<1x1x7x7xf32>
    %83 = vector.shape_cast %82 : vector<1x1x7x7xf32> to vector<7x7xf32>
    %c2_96 = arith.constant 2 : index
    %c0_97 = arith.constant 0 : index
    %c1_98 = arith.constant 1 : index
    %84 = vector.load %arg4[%c2_96, %c0_97, %c1_98] : memref<4x10x10xf32, #tpu.memory_space<vmem>>, vector<1x7x7xf32>
    %85 = vector.shape_cast %84 : vector<1x7x7xf32> to vector<7x7xf32>
    %86 = arith.addf %85, %83 : vector<7x7xf32>
    %c2_99 = arith.constant 2 : index
    %c0_100 = arith.constant 0 : index
    %c1_101 = arith.constant 1 : index
    %87 = vector.load %arg4[%c2_99, %c0_100, %c1_101] : memref<4x10x10xf32, #tpu.memory_space<vmem>>, vector<1x7x7xf32>
    %88 = vector.shape_cast %87 : vector<1x7x7xf32> to vector<7x7xf32>
    %89 = vector.shape_cast %86 : vector<7x7xf32> to vector<1x7x7xf32>
    tpu.vector_store %arg4[%c2_99, %c0_100, %c1_101], %89 {strides = array<i32>} : memref<4x10x10xf32, #tpu.memory_space<vmem>>, vector<1x7x7xf32>,
    %c0_102 = arith.constant 0 : index
    %c11 = arith.constant 11 : index
    %c0_103 = arith.constant 0 : index
    %c0_104 = arith.constant 0 : index
    %90 = vector.load %arg1[%c0_102, %c11, %c0_103, %c0_104] : memref<1x64x7x7xf32, #tpu.memory_space<vmem>>, vector<1x1x7x7xf32>
    %91 = vector.shape_cast %90 : vector<1x1x7x7xf32> to vector<7x7xf32>
    %c3_105 = arith.constant 3 : index
    %c0_106 = arith.constant 0 : index
    %c1_107 = arith.constant 1 : index
    %92 = vector.load %arg4[%c3_105, %c0_106, %c1_107] : memref<4x10x10xf32, #tpu.memory_space<vmem>>, vector<1x7x7xf32>
    %93 = vector.shape_cast %92 : vector<1x7x7xf32> to vector<7x7xf32>
    %94 = arith.addf %93, %91 : vector<7x7xf32>
    %c3_108 = arith.constant 3 : index
    %c0_109 = arith.constant 0 : index
    %c1_110 = arith.constant 1 : index
    %95 = vector.load %arg4[%c3_108, %c0_109, %c1_110] : memref<4x10x10xf32, #tpu.memory_space<vmem>>, vector<1x7x7xf32>
    %96 = vector.shape_cast %95 : vector<1x7x7xf32> to vector<7x7xf32>
    %97 = vector.shape_cast %94 : vector<7x7xf32> to vector<1x7x7xf32>
    tpu.vector_store %arg4[%c3_108, %c0_109, %c1_110], %97 {strides = array<i32>} : memref<4x10x10xf32, #tpu.memory_space<vmem>>, vector<1x7x7xf32>,
    %c0_111 = arith.constant 0 : index
    %c12 = arith.constant 12 : index
    %c0_112 = arith.constant 0 : index
    %c0_113 = arith.constant 0 : index
    %98 = vector.load %arg1[%c0_111, %c12, %c0_112, %c0_113] : memref<1x64x7x7xf32, #tpu.memory_space<vmem>>, vector<1x1x7x7xf32>
    %99 = vector.shape_cast %98 : vector<1x1x7x7xf32> to vector<7x7xf32>
    %c2_114 = arith.constant 2 : index
    %c0_115 = arith.constant 0 : index
    %c2_116 = arith.constant 2 : index
    %100 = vector.load %arg4[%c2_114, %c0_115, %c2_116] : memref<4x10x10xf32, #tpu.memory_space<vmem>>, vector<1x7x7xf32>
    %101 = vector.shape_cast %100 : vector<1x7x7xf32> to vector<7x7xf32>
    %102 = arith.addf %101, %99 : vector<7x7xf32>
    %c2_117 = arith.constant 2 : index
    %c0_118 = arith.constant 0 : index
    %c2_119 = arith.constant 2 : index
    %103 = vector.load %arg4[%c2_117, %c0_118, %c2_119] : memref<4x10x10xf32, #tpu.memory_space<vmem>>, vector<1x7x7xf32>
    %104 = vector.shape_cast %103 : vector<1x7x7xf32> to vector<7x7xf32>
    %105 = vector.shape_cast %102 : vector<7x7xf32> to vector<1x7x7xf32>
    tpu.vector_store %arg4[%c2_117, %c0_118, %c2_119], %105 {strides = array<i32>} : memref<4x10x10xf32, #tpu.memory_space<vmem>>, vector<1x7x7xf32>,
    %c0_120 = arith.constant 0 : index
    %c13 = arith.constant 13 : index
    %c0_121 = arith.constant 0 : index
    %c0_122 = arith.constant 0 : index
    %106 = vector.load %arg1[%c0_120, %c13, %c0_121, %c0_122] : memref<1x64x7x7xf32, #tpu.memory_space<vmem>>, vector<1x1x7x7xf32>
    %107 = vector.shape_cast %106 : vector<1x1x7x7xf32> to vector<7x7xf32>
    %c3_123 = arith.constant 3 : index
    %c0_124 = arith.constant 0 : index
    %c2_125 = arith.constant 2 : index
    %108 = vector.load %arg4[%c3_123, %c0_124, %c2_125] : memref<4x10x10xf32, #tpu.memory_space<vmem>>, vector<1x7x7xf32>
    %109 = vector.shape_cast %108 : vector<1x7x7xf32> to vector<7x7xf32>
    %110 = arith.addf %109, %107 : vector<7x7xf32>
    %c3_126 = arith.constant 3 : index
    %c0_127 = arith.constant 0 : index
    %c2_128 = arith.constant 2 : index
    %111 = vector.load %arg4[%c3_126, %c0_127, %c2_128] : memref<4x10x10xf32, #tpu.memory_space<vmem>>, vector<1x7x7xf32>
    %112 = vector.shape_cast %111 : vector<1x7x7xf32> to vector<7x7xf32>
    %113 = vector.shape_cast %110 : vector<7x7xf32> to vector<1x7x7xf32>
    tpu.vector_store %arg4[%c3_126, %c0_127, %c2_128], %113 {strides = array<i32>} : memref<4x10x10xf32, #tpu.memory_space<vmem>>, vector<1x7x7xf32>,
    %c0_129 = arith.constant 0 : index
    %c14 = arith.constant 14 : index
    %c0_130 = arith.constant 0 : index
    %c0_131 = arith.constant 0 : index
    %114 = vector.load %arg1[%c0_129, %c14, %c0_130, %c0_131] : memref<1x64x7x7xf32, #tpu.memory_space<vmem>>, vector<1x1x7x7xf32>
    %115 = vector.shape_cast %114 : vector<1x1x7x7xf32> to vector<7x7xf32>
    %c2_132 = arith.constant 2 : index
    %c0_133 = arith.constant 0 : index
    %c3_134 = arith.constant 3 : index
    %116 = vector.load %arg4[%c2_132, %c0_133, %c3_134] : memref<4x10x10xf32, #tpu.memory_space<vmem>>, vector<1x7x7xf32>
    %117 = vector.shape_cast %116 : vector<1x7x7xf32> to vector<7x7xf32>
    %118 = arith.addf %117, %115 : vector<7x7xf32>
    %c2_135 = arith.constant 2 : index
    %c0_136 = arith.constant 0 : index
    %c3_137 = arith.constant 3 : index
    %119 = vector.load %arg4[%c2_135, %c0_136, %c3_137] : memref<4x10x10xf32, #tpu.memory_space<vmem>>, vector<1x7x7xf32>
    %120 = vector.shape_cast %119 : vector<1x7x7xf32> to vector<7x7xf32>
    %121 = vector.shape_cast %118 : vector<7x7xf32> to vector<1x7x7xf32>
    tpu.vector_store %arg4[%c2_135, %c0_136, %c3_137], %121 {strides = array<i32>} : memref<4x10x10xf32, #tpu.memory_space<vmem>>, vector<1x7x7xf32>,
    %c0_138 = arith.constant 0 : index
    %c15 = arith.constant 15 : index
    %c0_139 = arith.constant 0 : index
    %c0_140 = arith.constant 0 : index
    %122 = vector.load %arg1[%c0_138, %c15, %c0_139, %c0_140] : memref<1x64x7x7xf32, #tpu.memory_space<vmem>>, vector<1x1x7x7xf32>
    %123 = vector.shape_cast %122 : vector<1x1x7x7xf32> to vector<7x7xf32>
    %c3_141 = arith.constant 3 : index
    %c0_142 = arith.constant 0 : index
    %c3_143 = arith.constant 3 : index
    %124 = vector.load %arg4[%c3_141, %c0_142, %c3_143] : memref<4x10x10xf32, #tpu.memory_space<vmem>>, vector<1x7x7xf32>
    %125 = vector.shape_cast %124 : vector<1x7x7xf32> to vector<7x7xf32>
    %126 = arith.addf %125, %123 : vector<7x7xf32>
    %c3_144 = arith.constant 3 : index
    %c0_145 = arith.constant 0 : index
    %c3_146 = arith.constant 3 : index
    %127 = vector.load %arg4[%c3_144, %c0_145, %c3_146] : memref<4x10x10xf32, #tpu.memory_space<vmem>>, vector<1x7x7xf32>
    %128 = vector.shape_cast %127 : vector<1x7x7xf32> to vector<7x7xf32>
    %129 = vector.shape_cast %126 : vector<7x7xf32> to vector<1x7x7xf32>
    tpu.vector_store %arg4[%c3_144, %c0_145, %c3_146], %129 {strides = array<i32>} : memref<4x10x10xf32, #tpu.memory_space<vmem>>, vector<1x7x7xf32>,
    %c0_147 = arith.constant 0 : index
    %c16 = arith.constant 16 : index
    %c0_148 = arith.constant 0 : index
    %c0_149 = arith.constant 0 : index
    %130 = vector.load %arg1[%c0_147, %c16, %c0_148, %c0_149] : memref<1x64x7x7xf32, #tpu.memory_space<vmem>>, vector<1x1x7x7xf32>
    %131 = vector.shape_cast %130 : vector<1x1x7x7xf32> to vector<7x7xf32>
    %c0_150 = arith.constant 0 : index
    %c1_151 = arith.constant 1 : index
    %c0_152 = arith.constant 0 : index
    %132 = vector.load %arg4[%c0_150, %c1_151, %c0_152] : memref<4x10x10xf32, #tpu.memory_space<vmem>>, vector<1x7x7xf32>
    %133 = vector.shape_cast %132 : vector<1x7x7xf32> to vector<7x7xf32>
    %134 = arith.addf %133, %131 : vector<7x7xf32>
    %c0_153 = arith.constant 0 : index
    %c1_154 = arith.constant 1 : index
    %c0_155 = arith.constant 0 : index
    %135 = vector.load %arg4[%c0_153, %c1_154, %c0_155] : memref<4x10x10xf32, #tpu.memory_space<vmem>>, vector<1x7x7xf32>
    %136 = vector.shape_cast %135 : vector<1x7x7xf32> to vector<7x7xf32>
    %137 = vector.shape_cast %134 : vector<7x7xf32> to vector<1x7x7xf32>
    tpu.vector_store %arg4[%c0_153, %c1_154, %c0_155], %137 {strides = array<i32>} : memref<4x10x10xf32, #tpu.memory_space<vmem>>, vector<1x7x7xf32>,
    %c0_156 = arith.constant 0 : index
    %c17 = arith.constant 17 : index
    %c0_157 = arith.constant 0 : index
    %c0_158 = arith.constant 0 : index
    %138 = vector.load %arg1[%c0_156, %c17, %c0_157, %c0_158] : memref<1x64x7x7xf32, #tpu.memory_space<vmem>>, vector<1x1x7x7xf32>
    %139 = vector.shape_cast %138 : vector<1x1x7x7xf32> to vector<7x7xf32>
    %c1_159 = arith.constant 1 : index
    %c1_160 = arith.constant 1 : index
    %c0_161 = arith.constant 0 : index
    %140 = vector.load %arg4[%c1_159, %c1_160, %c0_161] : memref<4x10x10xf32, #tpu.memory_space<vmem>>, vector<1x7x7xf32>
    %141 = vector.shape_cast %140 : vector<1x7x7xf32> to vector<7x7xf32>
    %142 = arith.addf %141, %139 : vector<7x7xf32>
    %c1_162 = arith.constant 1 : index
    %c1_163 = arith.constant 1 : index
    %c0_164 = arith.constant 0 : index
    %143 = vector.load %arg4[%c1_162, %c1_163, %c0_164] : memref<4x10x10xf32, #tpu.memory_space<vmem>>, vector<1x7x7xf32>
    %144 = vector.shape_cast %143 : vector<1x7x7xf32> to vector<7x7xf32>
    %145 = vector.shape_cast %142 : vector<7x7xf32> to vector<1x7x7xf32>
    tpu.vector_store %arg4[%c1_162, %c1_163, %c0_164], %145 {strides = array<i32>} : memref<4x10x10xf32, #tpu.memory_space<vmem>>, vector<1x7x7xf32>,
    %c0_165 = arith.constant 0 : index
    %c18 = arith.constant 18 : index
    %c0_166 = arith.constant 0 : index
    %c0_167 = arith.constant 0 : index
    %146 = vector.load %arg1[%c0_165, %c18, %c0_166, %c0_167] : memref<1x64x7x7xf32, #tpu.memory_space<vmem>>, vector<1x1x7x7xf32>
    %147 = vector.shape_cast %146 : vector<1x1x7x7xf32> to vector<7x7xf32>
    %c0_168 = arith.constant 0 : index
    %c1_169 = arith.constant 1 : index
    %c1_170 = arith.constant 1 : index
    %148 = vector.load %arg4[%c0_168, %c1_169, %c1_170] : memref<4x10x10xf32, #tpu.memory_space<vmem>>, vector<1x7x7xf32>
    %149 = vector.shape_cast %148 : vector<1x7x7xf32> to vector<7x7xf32>
    %150 = arith.addf %149, %147 : vector<7x7xf32>
    %c0_171 = arith.constant 0 : index
    %c1_172 = arith.constant 1 : index
    %c1_173 = arith.constant 1 : index
    %151 = vector.load %arg4[%c0_171, %c1_172, %c1_173] : memref<4x10x10xf32, #tpu.memory_space<vmem>>, vector<1x7x7xf32>
    %152 = vector.shape_cast %151 : vector<1x7x7xf32> to vector<7x7xf32>
    %153 = vector.shape_cast %150 : vector<7x7xf32> to vector<1x7x7xf32>
    tpu.vector_store %arg4[%c0_171, %c1_172, %c1_173], %153 {strides = array<i32>} : memref<4x10x10xf32, #tpu.memory_space<vmem>>, vector<1x7x7xf32>,
    %c0_174 = arith.constant 0 : index
    %c19 = arith.constant 19 : index
    %c0_175 = arith.constant 0 : index
    %c0_176 = arith.constant 0 : index
    %154 = vector.load %arg1[%c0_174, %c19, %c0_175, %c0_176] : memref<1x64x7x7xf32, #tpu.memory_space<vmem>>, vector<1x1x7x7xf32>
    %155 = vector.shape_cast %154 : vector<1x1x7x7xf32> to vector<7x7xf32>
    %c1_177 = arith.constant 1 : index
    %c1_178 = arith.constant 1 : index
    %c1_179 = arith.constant 1 : index
    %156 = vector.load %arg4[%c1_177, %c1_178, %c1_179] : memref<4x10x10xf32, #tpu.memory_space<vmem>>, vector<1x7x7xf32>
    %157 = vector.shape_cast %156 : vector<1x7x7xf32> to vector<7x7xf32>
    %158 = arith.addf %157, %155 : vector<7x7xf32>
    %c1_180 = arith.constant 1 : index
    %c1_181 = arith.constant 1 : index
    %c1_182 = arith.constant 1 : index
    %159 = vector.load %arg4[%c1_180, %c1_181, %c1_182] : memref<4x10x10xf32, #tpu.memory_space<vmem>>, vector<1x7x7xf32>
    %160 = vector.shape_cast %159 : vector<1x7x7xf32> to vector<7x7xf32>
    %161 = vector.shape_cast %158 : vector<7x7xf32> to vector<1x7x7xf32>
    tpu.vector_store %arg4[%c1_180, %c1_181, %c1_182], %161 {strides = array<i32>} : memref<4x10x10xf32, #tpu.memory_space<vmem>>, vector<1x7x7xf32>,
    %c0_183 = arith.constant 0 : index
    %c20 = arith.constant 20 : index
    %c0_184 = arith.constant 0 : index
    %c0_185 = arith.constant 0 : index
    %162 = vector.load %arg1[%c0_183, %c20, %c0_184, %c0_185] : memref<1x64x7x7xf32, #tpu.memory_space<vmem>>, vector<1x1x7x7xf32>
    %163 = vector.shape_cast %162 : vector<1x1x7x7xf32> to vector<7x7xf32>
    %c0_186 = arith.constant 0 : index
    %c1_187 = arith.constant 1 : index
    %c2_188 = arith.constant 2 : index
    %164 = vector.load %arg4[%c0_186, %c1_187, %c2_188] : memref<4x10x10xf32, #tpu.memory_space<vmem>>, vector<1x7x7xf32>
    %165 = vector.shape_cast %164 : vector<1x7x7xf32> to vector<7x7xf32>
    %166 = arith.addf %165, %163 : vector<7x7xf32>
    %c0_189 = arith.constant 0 : index
    %c1_190 = arith.constant 1 : index
    %c2_191 = arith.constant 2 : index
    %167 = vector.load %arg4[%c0_189, %c1_190, %c2_191] : memref<4x10x10xf32, #tpu.memory_space<vmem>>, vector<1x7x7xf32>
    %168 = vector.shape_cast %167 : vector<1x7x7xf32> to vector<7x7xf32>
    %169 = vector.shape_cast %166 : vector<7x7xf32> to vector<1x7x7xf32>
    tpu.vector_store %arg4[%c0_189, %c1_190, %c2_191], %169 {strides = array<i32>} : memref<4x10x10xf32, #tpu.memory_space<vmem>>, vector<1x7x7xf32>,
    %c0_192 = arith.constant 0 : index
    %c21 = arith.constant 21 : index
    %c0_193 = arith.constant 0 : index
    %c0_194 = arith.constant 0 : index
    %170 = vector.load %arg1[%c0_192, %c21, %c0_193, %c0_194] : memref<1x64x7x7xf32, #tpu.memory_space<vmem>>, vector<1x1x7x7xf32>
    %171 = vector.shape_cast %170 : vector<1x1x7x7xf32> to vector<7x7xf32>
    %c1_195 = arith.constant 1 : index
    %c1_196 = arith.constant 1 : index
    %c2_197 = arith.constant 2 : index
    %172 = vector.load %arg4[%c1_195, %c1_196, %c2_197] : memref<4x10x10xf32, #tpu.memory_space<vmem>>, vector<1x7x7xf32>
    %173 = vector.shape_cast %172 : vector<1x7x7xf32> to vector<7x7xf32>
    %174 = arith.addf %173, %171 : vector<7x7xf32>
    %c1_198 = arith.constant 1 : index
    %c1_199 = arith.constant 1 : index
    %c2_200 = arith.constant 2 : index
    %175 = vector.load %arg4[%c1_198, %c1_199, %c2_200] : memref<4x10x10xf32, #tpu.memory_space<vmem>>, vector<1x7x7xf32>
    %176 = vector.shape_cast %175 : vector<1x7x7xf32> to vector<7x7xf32>
    %177 = vector.shape_cast %174 : vector<7x7xf32> to vector<1x7x7xf32>
    tpu.vector_store %arg4[%c1_198, %c1_199, %c2_200], %177 {strides = array<i32>} : memref<4x10x10xf32, #tpu.memory_space<vmem>>, vector<1x7x7xf32>,
    %c0_201 = arith.constant 0 : index
    %c22 = arith.constant 22 : index
    %c0_202 = arith.constant 0 : index
    %c0_203 = arith.constant 0 : index
    %178 = vector.load %arg1[%c0_201, %c22, %c0_202, %c0_203] : memref<1x64x7x7xf32, #tpu.memory_space<vmem>>, vector<1x1x7x7xf32>
    %179 = vector.shape_cast %178 : vector<1x1x7x7xf32> to vector<7x7xf32>
    %c0_204 = arith.constant 0 : index
    %c1_205 = arith.constant 1 : index
    %c3_206 = arith.constant 3 : index
    %180 = vector.load %arg4[%c0_204, %c1_205, %c3_206] : memref<4x10x10xf32, #tpu.memory_space<vmem>>, vector<1x7x7xf32>
    %181 = vector.shape_cast %180 : vector<1x7x7xf32> to vector<7x7xf32>
    %182 = arith.addf %181, %179 : vector<7x7xf32>
    %c0_207 = arith.constant 0 : index
    %c1_208 = arith.constant 1 : index
    %c3_209 = arith.constant 3 : index
    %183 = vector.load %arg4[%c0_207, %c1_208, %c3_209] : memref<4x10x10xf32, #tpu.memory_space<vmem>>, vector<1x7x7xf32>
    %184 = vector.shape_cast %183 : vector<1x7x7xf32> to vector<7x7xf32>
    %185 = vector.shape_cast %182 : vector<7x7xf32> to vector<1x7x7xf32>
    tpu.vector_store %arg4[%c0_207, %c1_208, %c3_209], %185 {strides = array<i32>} : memref<4x10x10xf32, #tpu.memory_space<vmem>>, vector<1x7x7xf32>,
    %c0_210 = arith.constant 0 : index
    %c23 = arith.constant 23 : index
    %c0_211 = arith.constant 0 : index
    %c0_212 = arith.constant 0 : index
    %186 = vector.load %arg1[%c0_210, %c23, %c0_211, %c0_212] : memref<1x64x7x7xf32, #tpu.memory_space<vmem>>, vector<1x1x7x7xf32>
    %187 = vector.shape_cast %186 : vector<1x1x7x7xf32> to vector<7x7xf32>
    %c1_213 = arith.constant 1 : index
    %c1_214 = arith.constant 1 : index
    %c3_215 = arith.constant 3 : index
    %188 = vector.load %arg4[%c1_213, %c1_214, %c3_215] : memref<4x10x10xf32, #tpu.memory_space<vmem>>, vector<1x7x7xf32>
    %189 = vector.shape_cast %188 : vector<1x7x7xf32> to vector<7x7xf32>
    %190 = arith.addf %189, %187 : vector<7x7xf32>
    %c1_216 = arith.constant 1 : index
    %c1_217 = arith.constant 1 : index
    %c3_218 = arith.constant 3 : index
    %191 = vector.load %arg4[%c1_216, %c1_217, %c3_218] : memref<4x10x10xf32, #tpu.memory_space<vmem>>, vector<1x7x7xf32>
    %192 = vector.shape_cast %191 : vector<1x7x7xf32> to vector<7x7xf32>
    %193 = vector.shape_cast %190 : vector<7x7xf32> to vector<1x7x7xf32>
    tpu.vector_store %arg4[%c1_216, %c1_217, %c3_218], %193 {strides = array<i32>} : memref<4x10x10xf32, #tpu.memory_space<vmem>>, vector<1x7x7xf32>,
    %c0_219 = arith.constant 0 : index
    %c24 = arith.constant 24 : index
    %c0_220 = arith.constant 0 : index
    %c0_221 = arith.constant 0 : index
    %194 = vector.load %arg1[%c0_219, %c24, %c0_220, %c0_221] : memref<1x64x7x7xf32, #tpu.memory_space<vmem>>, vector<1x1x7x7xf32>
    %195 = vector.shape_cast %194 : vector<1x1x7x7xf32> to vector<7x7xf32>
    %c2_222 = arith.constant 2 : index
    %c1_223 = arith.constant 1 : index
    %c0_224 = arith.constant 0 : index
    %196 = vector.load %arg4[%c2_222, %c1_223, %c0_224] : memref<4x10x10xf32, #tpu.memory_space<vmem>>, vector<1x7x7xf32>
    %197 = vector.shape_cast %196 : vector<1x7x7xf32> to vector<7x7xf32>
    %198 = arith.addf %197, %195 : vector<7x7xf32>
    %c2_225 = arith.constant 2 : index
    %c1_226 = arith.constant 1 : index
    %c0_227 = arith.constant 0 : index
    %199 = vector.load %arg4[%c2_225, %c1_226, %c0_227] : memref<4x10x10xf32, #tpu.memory_space<vmem>>, vector<1x7x7xf32>
    %200 = vector.shape_cast %199 : vector<1x7x7xf32> to vector<7x7xf32>
    %201 = vector.shape_cast %198 : vector<7x7xf32> to vector<1x7x7xf32>
    tpu.vector_store %arg4[%c2_225, %c1_226, %c0_227], %201 {strides = array<i32>} : memref<4x10x10xf32, #tpu.memory_space<vmem>>, vector<1x7x7xf32>,
    %c0_228 = arith.constant 0 : index
    %c25 = arith.constant 25 : index
    %c0_229 = arith.constant 0 : index
    %c0_230 = arith.constant 0 : index
    %202 = vector.load %arg1[%c0_228, %c25, %c0_229, %c0_230] : memref<1x64x7x7xf32, #tpu.memory_space<vmem>>, vector<1x1x7x7xf32>
    %203 = vector.shape_cast %202 : vector<1x1x7x7xf32> to vector<7x7xf32>
    %c3_231 = arith.constant 3 : index
    %c1_232 = arith.constant 1 : index
    %c0_233 = arith.constant 0 : index
    %204 = vector.load %arg4[%c3_231, %c1_232, %c0_233] : memref<4x10x10xf32, #tpu.memory_space<vmem>>, vector<1x7x7xf32>
    %205 = vector.shape_cast %204 : vector<1x7x7xf32> to vector<7x7xf32>
    %206 = arith.addf %205, %203 : vector<7x7xf32>
    %c3_234 = arith.constant 3 : index
    %c1_235 = arith.constant 1 : index
    %c0_236 = arith.constant 0 : index
    %207 = vector.load %arg4[%c3_234, %c1_235, %c0_236] : memref<4x10x10xf32, #tpu.memory_space<vmem>>, vector<1x7x7xf32>
    %208 = vector.shape_cast %207 : vector<1x7x7xf32> to vector<7x7xf32>
    %209 = vector.shape_cast %206 : vector<7x7xf32> to vector<1x7x7xf32>
    tpu.vector_store %arg4[%c3_234, %c1_235, %c0_236], %209 {strides = array<i32>} : memref<4x10x10xf32, #tpu.memory_space<vmem>>, vector<1x7x7xf32>,
    %c0_237 = arith.constant 0 : index
    %c26 = arith.constant 26 : index
    %c0_238 = arith.constant 0 : index
    %c0_239 = arith.constant 0 : index
    %210 = vector.load %arg1[%c0_237, %c26, %c0_238, %c0_239] : memref<1x64x7x7xf32, #tpu.memory_space<vmem>>, vector<1x1x7x7xf32>
    %211 = vector.shape_cast %210 : vector<1x1x7x7xf32> to vector<7x7xf32>
    %c2_240 = arith.constant 2 : index
    %c1_241 = arith.constant 1 : index
    %c1_242 = arith.constant 1 : index
    %212 = vector.load %arg4[%c2_240, %c1_241, %c1_242] : memref<4x10x10xf32, #tpu.memory_space<vmem>>, vector<1x7x7xf32>
    %213 = vector.shape_cast %212 : vector<1x7x7xf32> to vector<7x7xf32>
    %214 = arith.addf %213, %211 : vector<7x7xf32>
    %c2_243 = arith.constant 2 : index
    %c1_244 = arith.constant 1 : index
    %c1_245 = arith.constant 1 : index
    %215 = vector.load %arg4[%c2_243, %c1_244, %c1_245] : memref<4x10x10xf32, #tpu.memory_space<vmem>>, vector<1x7x7xf32>
    %216 = vector.shape_cast %215 : vector<1x7x7xf32> to vector<7x7xf32>
    %217 = vector.shape_cast %214 : vector<7x7xf32> to vector<1x7x7xf32>
    tpu.vector_store %arg4[%c2_243, %c1_244, %c1_245], %217 {strides = array<i32>} : memref<4x10x10xf32, #tpu.memory_space<vmem>>, vector<1x7x7xf32>,
    %c0_246 = arith.constant 0 : index
    %c27 = arith.constant 27 : index
    %c0_247 = arith.constant 0 : index
    %c0_248 = arith.constant 0 : index
    %218 = vector.load %arg1[%c0_246, %c27, %c0_247, %c0_248] : memref<1x64x7x7xf32, #tpu.memory_space<vmem>>, vector<1x1x7x7xf32>
    %219 = vector.shape_cast %218 : vector<1x1x7x7xf32> to vector<7x7xf32>
    %c3_249 = arith.constant 3 : index
    %c1_250 = arith.constant 1 : index
    %c1_251 = arith.constant 1 : index
    %220 = vector.load %arg4[%c3_249, %c1_250, %c1_251] : memref<4x10x10xf32, #tpu.memory_space<vmem>>, vector<1x7x7xf32>
    %221 = vector.shape_cast %220 : vector<1x7x7xf32> to vector<7x7xf32>
    %222 = arith.addf %221, %219 : vector<7x7xf32>
    %c3_252 = arith.constant 3 : index
    %c1_253 = arith.constant 1 : index
    %c1_254 = arith.constant 1 : index
    %223 = vector.load %arg4[%c3_252, %c1_253, %c1_254] : memref<4x10x10xf32, #tpu.memory_space<vmem>>, vector<1x7x7xf32>
    %224 = vector.shape_cast %223 : vector<1x7x7xf32> to vector<7x7xf32>
    %225 = vector.shape_cast %222 : vector<7x7xf32> to vector<1x7x7xf32>
    tpu.vector_store %arg4[%c3_252, %c1_253, %c1_254], %225 {strides = array<i32>} : memref<4x10x10xf32, #tpu.memory_space<vmem>>, vector<1x7x7xf32>,
    %c0_255 = arith.constant 0 : index
    %c28 = arith.constant 28 : index
    %c0_256 = arith.constant 0 : index
    %c0_257 = arith.constant 0 : index
    %226 = vector.load %arg1[%c0_255, %c28, %c0_256, %c0_257] : memref<1x64x7x7xf32, #tpu.memory_space<vmem>>, vector<1x1x7x7xf32>
    %227 = vector.shape_cast %226 : vector<1x1x7x7xf32> to vector<7x7xf32>
    %c2_258 = arith.constant 2 : index
    %c1_259 = arith.constant 1 : index
    %c2_260 = arith.constant 2 : index
    %228 = vector.load %arg4[%c2_258, %c1_259, %c2_260] : memref<4x10x10xf32, #tpu.memory_space<vmem>>, vector<1x7x7xf32>
    %229 = vector.shape_cast %228 : vector<1x7x7xf32> to vector<7x7xf32>
    %230 = arith.addf %229, %227 : vector<7x7xf32>
    %c2_261 = arith.constant 2 : index
    %c1_262 = arith.constant 1 : index
    %c2_263 = arith.constant 2 : index
    %231 = vector.load %arg4[%c2_261, %c1_262, %c2_263] : memref<4x10x10xf32, #tpu.memory_space<vmem>>, vector<1x7x7xf32>
    %232 = vector.shape_cast %231 : vector<1x7x7xf32> to vector<7x7xf32>
    %233 = vector.shape_cast %230 : vector<7x7xf32> to vector<1x7x7xf32>
    tpu.vector_store %arg4[%c2_261, %c1_262, %c2_263], %233 {strides = array<i32>} : memref<4x10x10xf32, #tpu.memory_space<vmem>>, vector<1x7x7xf32>,
    %c0_264 = arith.constant 0 : index
    %c29 = arith.constant 29 : index
    %c0_265 = arith.constant 0 : index
    %c0_266 = arith.constant 0 : index
    %234 = vector.load %arg1[%c0_264, %c29, %c0_265, %c0_266] : memref<1x64x7x7xf32, #tpu.memory_space<vmem>>, vector<1x1x7x7xf32>
    %235 = vector.shape_cast %234 : vector<1x1x7x7xf32> to vector<7x7xf32>
    %c3_267 = arith.constant 3 : index
    %c1_268 = arith.constant 1 : index
    %c2_269 = arith.constant 2 : index
    %236 = vector.load %arg4[%c3_267, %c1_268, %c2_269] : memref<4x10x10xf32, #tpu.memory_space<vmem>>, vector<1x7x7xf32>
    %237 = vector.shape_cast %236 : vector<1x7x7xf32> to vector<7x7xf32>
    %238 = arith.addf %237, %235 : vector<7x7xf32>
    %c3_270 = arith.constant 3 : index
    %c1_271 = arith.constant 1 : index
    %c2_272 = arith.constant 2 : index
    %239 = vector.load %arg4[%c3_270, %c1_271, %c2_272] : memref<4x10x10xf32, #tpu.memory_space<vmem>>, vector<1x7x7xf32>
    %240 = vector.shape_cast %239 : vector<1x7x7xf32> to vector<7x7xf32>
    %241 = vector.shape_cast %238 : vector<7x7xf32> to vector<1x7x7xf32>
    tpu.vector_store %arg4[%c3_270, %c1_271, %c2_272], %241 {strides = array<i32>} : memref<4x10x10xf32, #tpu.memory_space<vmem>>, vector<1x7x7xf32>,
    %c0_273 = arith.constant 0 : index
    %c30 = arith.constant 30 : index
    %c0_274 = arith.constant 0 : index
    %c0_275 = arith.constant 0 : index
    %242 = vector.load %arg1[%c0_273, %c30, %c0_274, %c0_275] : memref<1x64x7x7xf32, #tpu.memory_space<vmem>>, vector<1x1x7x7xf32>
    %243 = vector.shape_cast %242 : vector<1x1x7x7xf32> to vector<7x7xf32>
    %c2_276 = arith.constant 2 : index
    %c1_277 = arith.constant 1 : index
    %c3_278 = arith.constant 3 : index
    %244 = vector.load %arg4[%c2_276, %c1_277, %c3_278] : memref<4x10x10xf32, #tpu.memory_space<vmem>>, vector<1x7x7xf32>
    %245 = vector.shape_cast %244 : vector<1x7x7xf32> to vector<7x7xf32>
    %246 = arith.addf %245, %243 : vector<7x7xf32>
    %c2_279 = arith.constant 2 : index
    %c1_280 = arith.constant 1 : index
    %c3_281 = arith.constant 3 : index
    %247 = vector.load %arg4[%c2_279, %c1_280, %c3_281] : memref<4x10x10xf32, #tpu.memory_space<vmem>>, vector<1x7x7xf32>
    %248 = vector.shape_cast %247 : vector<1x7x7xf32> to vector<7x7xf32>
    %249 = vector.shape_cast %246 : vector<7x7xf32> to vector<1x7x7xf32>
    tpu.vector_store %arg4[%c2_279, %c1_280, %c3_281], %249 {strides = array<i32>} : memref<4x10x10xf32, #tpu.memory_space<vmem>>, vector<1x7x7xf32>,
    %c0_282 = arith.constant 0 : index
    %c31 = arith.constant 31 : index
    %c0_283 = arith.constant 0 : index
    %c0_284 = arith.constant 0 : index
    %250 = vector.load %arg1[%c0_282, %c31, %c0_283, %c0_284] : memref<1x64x7x7xf32, #tpu.memory_space<vmem>>, vector<1x1x7x7xf32>
    %251 = vector.shape_cast %250 : vector<1x1x7x7xf32> to vector<7x7xf32>
    %c3_285 = arith.constant 3 : index
    %c1_286 = arith.constant 1 : index
    %c3_287 = arith.constant 3 : index
    %252 = vector.load %arg4[%c3_285, %c1_286, %c3_287] : memref<4x10x10xf32, #tpu.memory_space<vmem>>, vector<1x7x7xf32>
    %253 = vector.shape_cast %252 : vector<1x7x7xf32> to vector<7x7xf32>
    %254 = arith.addf %253, %251 : vector<7x7xf32>
    %c3_288 = arith.constant 3 : index
    %c1_289 = arith.constant 1 : index
    %c3_290 = arith.constant 3 : index
    %255 = vector.load %arg4[%c3_288, %c1_289, %c3_290] : memref<4x10x10xf32, #tpu.memory_space<vmem>>, vector<1x7x7xf32>
    %256 = vector.shape_cast %255 : vector<1x7x7xf32> to vector<7x7xf32>
    %257 = vector.shape_cast %254 : vector<7x7xf32> to vector<1x7x7xf32>
    tpu.vector_store %arg4[%c3_288, %c1_289, %c3_290], %257 {strides = array<i32>} : memref<4x10x10xf32, #tpu.memory_space<vmem>>, vector<1x7x7xf32>,
    %c0_291 = arith.constant 0 : index
    %c32 = arith.constant 32 : index
    %c0_292 = arith.constant 0 : index
    %c0_293 = arith.constant 0 : index
    %258 = vector.load %arg1[%c0_291, %c32, %c0_292, %c0_293] : memref<1x64x7x7xf32, #tpu.memory_space<vmem>>, vector<1x1x7x7xf32>
    %259 = vector.shape_cast %258 : vector<1x1x7x7xf32> to vector<7x7xf32>
    %c0_294 = arith.constant 0 : index
    %c2_295 = arith.constant 2 : index
    %c0_296 = arith.constant 0 : index
    %260 = vector.load %arg4[%c0_294, %c2_295, %c0_296] : memref<4x10x10xf32, #tpu.memory_space<vmem>>, vector<1x7x7xf32>
    %261 = vector.shape_cast %260 : vector<1x7x7xf32> to vector<7x7xf32>
    %262 = arith.addf %261, %259 : vector<7x7xf32>
    %c0_297 = arith.constant 0 : index
    %c2_298 = arith.constant 2 : index
    %c0_299 = arith.constant 0 : index
    %263 = vector.load %arg4[%c0_297, %c2_298, %c0_299] : memref<4x10x10xf32, #tpu.memory_space<vmem>>, vector<1x7x7xf32>
    %264 = vector.shape_cast %263 : vector<1x7x7xf32> to vector<7x7xf32>
    %265 = vector.shape_cast %262 : vector<7x7xf32> to vector<1x7x7xf32>
    tpu.vector_store %arg4[%c0_297, %c2_298, %c0_299], %265 {strides = array<i32>} : memref<4x10x10xf32, #tpu.memory_space<vmem>>, vector<1x7x7xf32>,
    %c0_300 = arith.constant 0 : index
    %c33 = arith.constant 33 : index
    %c0_301 = arith.constant 0 : index
    %c0_302 = arith.constant 0 : index
    %266 = vector.load %arg1[%c0_300, %c33, %c0_301, %c0_302] : memref<1x64x7x7xf32, #tpu.memory_space<vmem>>, vector<1x1x7x7xf32>
    %267 = vector.shape_cast %266 : vector<1x1x7x7xf32> to vector<7x7xf32>
    %c1_303 = arith.constant 1 : index
    %c2_304 = arith.constant 2 : index
    %c0_305 = arith.constant 0 : index
    %268 = vector.load %arg4[%c1_303, %c2_304, %c0_305] : memref<4x10x10xf32, #tpu.memory_space<vmem>>, vector<1x7x7xf32>
    %269 = vector.shape_cast %268 : vector<1x7x7xf32> to vector<7x7xf32>
    %270 = arith.addf %269, %267 : vector<7x7xf32>
    %c1_306 = arith.constant 1 : index
    %c2_307 = arith.constant 2 : index
    %c0_308 = arith.constant 0 : index
    %271 = vector.load %arg4[%c1_306, %c2_307, %c0_308] : memref<4x10x10xf32, #tpu.memory_space<vmem>>, vector<1x7x7xf32>
    %272 = vector.shape_cast %271 : vector<1x7x7xf32> to vector<7x7xf32>
    %273 = vector.shape_cast %270 : vector<7x7xf32> to vector<1x7x7xf32>
    tpu.vector_store %arg4[%c1_306, %c2_307, %c0_308], %273 {strides = array<i32>} : memref<4x10x10xf32, #tpu.memory_space<vmem>>, vector<1x7x7xf32>,
    %c0_309 = arith.constant 0 : index
    %c34 = arith.constant 34 : index
    %c0_310 = arith.constant 0 : index
    %c0_311 = arith.constant 0 : index
    %274 = vector.load %arg1[%c0_309, %c34, %c0_310, %c0_311] : memref<1x64x7x7xf32, #tpu.memory_space<vmem>>, vector<1x1x7x7xf32>
    %275 = vector.shape_cast %274 : vector<1x1x7x7xf32> to vector<7x7xf32>
    %c0_312 = arith.constant 0 : index
    %c2_313 = arith.constant 2 : index
    %c1_314 = arith.constant 1 : index
    %276 = vector.load %arg4[%c0_312, %c2_313, %c1_314] : memref<4x10x10xf32, #tpu.memory_space<vmem>>, vector<1x7x7xf32>
    %277 = vector.shape_cast %276 : vector<1x7x7xf32> to vector<7x7xf32>
    %278 = arith.addf %277, %275 : vector<7x7xf32>
    %c0_315 = arith.constant 0 : index
    %c2_316 = arith.constant 2 : index
    %c1_317 = arith.constant 1 : index
    %279 = vector.load %arg4[%c0_315, %c2_316, %c1_317] : memref<4x10x10xf32, #tpu.memory_space<vmem>>, vector<1x7x7xf32>
    %280 = vector.shape_cast %279 : vector<1x7x7xf32> to vector<7x7xf32>
    %281 = vector.shape_cast %278 : vector<7x7xf32> to vector<1x7x7xf32>
    tpu.vector_store %arg4[%c0_315, %c2_316, %c1_317], %281 {strides = array<i32>} : memref<4x10x10xf32, #tpu.memory_space<vmem>>, vector<1x7x7xf32>,
    %c0_318 = arith.constant 0 : index
    %c35 = arith.constant 35 : index
    %c0_319 = arith.constant 0 : index
    %c0_320 = arith.constant 0 : index
    %282 = vector.load %arg1[%c0_318, %c35, %c0_319, %c0_320] : memref<1x64x7x7xf32, #tpu.memory_space<vmem>>, vector<1x1x7x7xf32>
    %283 = vector.shape_cast %282 : vector<1x1x7x7xf32> to vector<7x7xf32>
    %c1_321 = arith.constant 1 : index
    %c2_322 = arith.constant 2 : index
    %c1_323 = arith.constant 1 : index
    %284 = vector.load %arg4[%c1_321, %c2_322, %c1_323] : memref<4x10x10xf32, #tpu.memory_space<vmem>>, vector<1x7x7xf32>
    %285 = vector.shape_cast %284 : vector<1x7x7xf32> to vector<7x7xf32>
    %286 = arith.addf %285, %283 : vector<7x7xf32>
    %c1_324 = arith.constant 1 : index
    %c2_325 = arith.constant 2 : index
    %c1_326 = arith.constant 1 : index
    %287 = vector.load %arg4[%c1_324, %c2_325, %c1_326] : memref<4x10x10xf32, #tpu.memory_space<vmem>>, vector<1x7x7xf32>
    %288 = vector.shape_cast %287 : vector<1x7x7xf32> to vector<7x7xf32>
    %289 = vector.shape_cast %286 : vector<7x7xf32> to vector<1x7x7xf32>
    tpu.vector_store %arg4[%c1_324, %c2_325, %c1_326], %289 {strides = array<i32>} : memref<4x10x10xf32, #tpu.memory_space<vmem>>, vector<1x7x7xf32>,
    %c0_327 = arith.constant 0 : index
    %c36 = arith.constant 36 : index
    %c0_328 = arith.constant 0 : index
    %c0_329 = arith.constant 0 : index
    %290 = vector.load %arg1[%c0_327, %c36, %c0_328, %c0_329] : memref<1x64x7x7xf32, #tpu.memory_space<vmem>>, vector<1x1x7x7xf32>
    %291 = vector.shape_cast %290 : vector<1x1x7x7xf32> to vector<7x7xf32>
    %c0_330 = arith.constant 0 : index
    %c2_331 = arith.constant 2 : index
    %c2_332 = arith.constant 2 : index
    %292 = vector.load %arg4[%c0_330, %c2_331, %c2_332] : memref<4x10x10xf32, #tpu.memory_space<vmem>>, vector<1x7x7xf32>
    %293 = vector.shape_cast %292 : vector<1x7x7xf32> to vector<7x7xf32>
    %294 = arith.addf %293, %291 : vector<7x7xf32>
    %c0_333 = arith.constant 0 : index
    %c2_334 = arith.constant 2 : index
    %c2_335 = arith.constant 2 : index
    %295 = vector.load %arg4[%c0_333, %c2_334, %c2_335] : memref<4x10x10xf32, #tpu.memory_space<vmem>>, vector<1x7x7xf32>
    %296 = vector.shape_cast %295 : vector<1x7x7xf32> to vector<7x7xf32>
    %297 = vector.shape_cast %294 : vector<7x7xf32> to vector<1x7x7xf32>
    tpu.vector_store %arg4[%c0_333, %c2_334, %c2_335], %297 {strides = array<i32>} : memref<4x10x10xf32, #tpu.memory_space<vmem>>, vector<1x7x7xf32>,
    %c0_336 = arith.constant 0 : index
    %c37 = arith.constant 37 : index
    %c0_337 = arith.constant 0 : index
    %c0_338 = arith.constant 0 : index
    %298 = vector.load %arg1[%c0_336, %c37, %c0_337, %c0_338] : memref<1x64x7x7xf32, #tpu.memory_space<vmem>>, vector<1x1x7x7xf32>
    %299 = vector.shape_cast %298 : vector<1x1x7x7xf32> to vector<7x7xf32>
    %c1_339 = arith.constant 1 : index
    %c2_340 = arith.constant 2 : index
    %c2_341 = arith.constant 2 : index
    %300 = vector.load %arg4[%c1_339, %c2_340, %c2_341] : memref<4x10x10xf32, #tpu.memory_space<vmem>>, vector<1x7x7xf32>
    %301 = vector.shape_cast %300 : vector<1x7x7xf32> to vector<7x7xf32>
    %302 = arith.addf %301, %299 : vector<7x7xf32>
    %c1_342 = arith.constant 1 : index
    %c2_343 = arith.constant 2 : index
    %c2_344 = arith.constant 2 : index
    %303 = vector.load %arg4[%c1_342, %c2_343, %c2_344] : memref<4x10x10xf32, #tpu.memory_space<vmem>>, vector<1x7x7xf32>
    %304 = vector.shape_cast %303 : vector<1x7x7xf32> to vector<7x7xf32>
    %305 = vector.shape_cast %302 : vector<7x7xf32> to vector<1x7x7xf32>
    tpu.vector_store %arg4[%c1_342, %c2_343, %c2_344], %305 {strides = array<i32>} : memref<4x10x10xf32, #tpu.memory_space<vmem>>, vector<1x7x7xf32>,
    %c0_345 = arith.constant 0 : index
    %c38 = arith.constant 38 : index
    %c0_346 = arith.constant 0 : index
    %c0_347 = arith.constant 0 : index
    %306 = vector.load %arg1[%c0_345, %c38, %c0_346, %c0_347] : memref<1x64x7x7xf32, #tpu.memory_space<vmem>>, vector<1x1x7x7xf32>
    %307 = vector.shape_cast %306 : vector<1x1x7x7xf32> to vector<7x7xf32>
    %c0_348 = arith.constant 0 : index
    %c2_349 = arith.constant 2 : index
    %c3_350 = arith.constant 3 : index
    %308 = vector.load %arg4[%c0_348, %c2_349, %c3_350] : memref<4x10x10xf32, #tpu.memory_space<vmem>>, vector<1x7x7xf32>
    %309 = vector.shape_cast %308 : vector<1x7x7xf32> to vector<7x7xf32>
    %310 = arith.addf %309, %307 : vector<7x7xf32>
    %c0_351 = arith.constant 0 : index
    %c2_352 = arith.constant 2 : index
    %c3_353 = arith.constant 3 : index
    %311 = vector.load %arg4[%c0_351, %c2_352, %c3_353] : memref<4x10x10xf32, #tpu.memory_space<vmem>>, vector<1x7x7xf32>
    %312 = vector.shape_cast %311 : vector<1x7x7xf32> to vector<7x7xf32>
    %313 = vector.shape_cast %310 : vector<7x7xf32> to vector<1x7x7xf32>
    tpu.vector_store %arg4[%c0_351, %c2_352, %c3_353], %313 {strides = array<i32>} : memref<4x10x10xf32, #tpu.memory_space<vmem>>, vector<1x7x7xf32>,
    %c0_354 = arith.constant 0 : index
    %c39 = arith.constant 39 : index
    %c0_355 = arith.constant 0 : index
    %c0_356 = arith.constant 0 : index
    %314 = vector.load %arg1[%c0_354, %c39, %c0_355, %c0_356] : memref<1x64x7x7xf32, #tpu.memory_space<vmem>>, vector<1x1x7x7xf32>
    %315 = vector.shape_cast %314 : vector<1x1x7x7xf32> to vector<7x7xf32>
    %c1_357 = arith.constant 1 : index
    %c2_358 = arith.constant 2 : index
    %c3_359 = arith.constant 3 : index
    %316 = vector.load %arg4[%c1_357, %c2_358, %c3_359] : memref<4x10x10xf32, #tpu.memory_space<vmem>>, vector<1x7x7xf32>
    %317 = vector.shape_cast %316 : vector<1x7x7xf32> to vector<7x7xf32>
    %318 = arith.addf %317, %315 : vector<7x7xf32>
    %c1_360 = arith.constant 1 : index
    %c2_361 = arith.constant 2 : index
    %c3_362 = arith.constant 3 : index
    %319 = vector.load %arg4[%c1_360, %c2_361, %c3_362] : memref<4x10x10xf32, #tpu.memory_space<vmem>>, vector<1x7x7xf32>
    %320 = vector.shape_cast %319 : vector<1x7x7xf32> to vector<7x7xf32>
    %321 = vector.shape_cast %318 : vector<7x7xf32> to vector<1x7x7xf32>
    tpu.vector_store %arg4[%c1_360, %c2_361, %c3_362], %321 {strides = array<i32>} : memref<4x10x10xf32, #tpu.memory_space<vmem>>, vector<1x7x7xf32>,
    %c0_363 = arith.constant 0 : index
    %c40 = arith.constant 40 : index
    %c0_364 = arith.constant 0 : index
    %c0_365 = arith.constant 0 : index
    %322 = vector.load %arg1[%c0_363, %c40, %c0_364, %c0_365] : memref<1x64x7x7xf32, #tpu.memory_space<vmem>>, vector<1x1x7x7xf32>
    %323 = vector.shape_cast %322 : vector<1x1x7x7xf32> to vector<7x7xf32>
    %c2_366 = arith.constant 2 : index
    %c2_367 = arith.constant 2 : index
    %c0_368 = arith.constant 0 : index
    %324 = vector.load %arg4[%c2_366, %c2_367, %c0_368] : memref<4x10x10xf32, #tpu.memory_space<vmem>>, vector<1x7x7xf32>
    %325 = vector.shape_cast %324 : vector<1x7x7xf32> to vector<7x7xf32>
    %326 = arith.addf %325, %323 : vector<7x7xf32>
    %c2_369 = arith.constant 2 : index
    %c2_370 = arith.constant 2 : index
    %c0_371 = arith.constant 0 : index
    %327 = vector.load %arg4[%c2_369, %c2_370, %c0_371] : memref<4x10x10xf32, #tpu.memory_space<vmem>>, vector<1x7x7xf32>
    %328 = vector.shape_cast %327 : vector<1x7x7xf32> to vector<7x7xf32>
    %329 = vector.shape_cast %326 : vector<7x7xf32> to vector<1x7x7xf32>
    tpu.vector_store %arg4[%c2_369, %c2_370, %c0_371], %329 {strides = array<i32>} : memref<4x10x10xf32, #tpu.memory_space<vmem>>, vector<1x7x7xf32>,
    %c0_372 = arith.constant 0 : index
    %c41 = arith.constant 41 : index
    %c0_373 = arith.constant 0 : index
    %c0_374 = arith.constant 0 : index
    %330 = vector.load %arg1[%c0_372, %c41, %c0_373, %c0_374] : memref<1x64x7x7xf32, #tpu.memory_space<vmem>>, vector<1x1x7x7xf32>
    %331 = vector.shape_cast %330 : vector<1x1x7x7xf32> to vector<7x7xf32>
    %c3_375 = arith.constant 3 : index
    %c2_376 = arith.constant 2 : index
    %c0_377 = arith.constant 0 : index
    %332 = vector.load %arg4[%c3_375, %c2_376, %c0_377] : memref<4x10x10xf32, #tpu.memory_space<vmem>>, vector<1x7x7xf32>
    %333 = vector.shape_cast %332 : vector<1x7x7xf32> to vector<7x7xf32>
    %334 = arith.addf %333, %331 : vector<7x7xf32>
    %c3_378 = arith.constant 3 : index
    %c2_379 = arith.constant 2 : index
    %c0_380 = arith.constant 0 : index
    %335 = vector.load %arg4[%c3_378, %c2_379, %c0_380] : memref<4x10x10xf32, #tpu.memory_space<vmem>>, vector<1x7x7xf32>
    %336 = vector.shape_cast %335 : vector<1x7x7xf32> to vector<7x7xf32>
    %337 = vector.shape_cast %334 : vector<7x7xf32> to vector<1x7x7xf32>
    tpu.vector_store %arg4[%c3_378, %c2_379, %c0_380], %337 {strides = array<i32>} : memref<4x10x10xf32, #tpu.memory_space<vmem>>, vector<1x7x7xf32>,
    %c0_381 = arith.constant 0 : index
    %c42 = arith.constant 42 : index
    %c0_382 = arith.constant 0 : index
    %c0_383 = arith.constant 0 : index
    %338 = vector.load %arg1[%c0_381, %c42, %c0_382, %c0_383] : memref<1x64x7x7xf32, #tpu.memory_space<vmem>>, vector<1x1x7x7xf32>
    %339 = vector.shape_cast %338 : vector<1x1x7x7xf32> to vector<7x7xf32>
    %c2_384 = arith.constant 2 : index
    %c2_385 = arith.constant 2 : index
    %c1_386 = arith.constant 1 : index
    %340 = vector.load %arg4[%c2_384, %c2_385, %c1_386] : memref<4x10x10xf32, #tpu.memory_space<vmem>>, vector<1x7x7xf32>
    %341 = vector.shape_cast %340 : vector<1x7x7xf32> to vector<7x7xf32>
    %342 = arith.addf %341, %339 : vector<7x7xf32>
    %c2_387 = arith.constant 2 : index
    %c2_388 = arith.constant 2 : index
    %c1_389 = arith.constant 1 : index
    %343 = vector.load %arg4[%c2_387, %c2_388, %c1_389] : memref<4x10x10xf32, #tpu.memory_space<vmem>>, vector<1x7x7xf32>
    %344 = vector.shape_cast %343 : vector<1x7x7xf32> to vector<7x7xf32>
    %345 = vector.shape_cast %342 : vector<7x7xf32> to vector<1x7x7xf32>
    tpu.vector_store %arg4[%c2_387, %c2_388, %c1_389], %345 {strides = array<i32>} : memref<4x10x10xf32, #tpu.memory_space<vmem>>, vector<1x7x7xf32>,
    %c0_390 = arith.constant 0 : index
    %c43 = arith.constant 43 : index
    %c0_391 = arith.constant 0 : index
    %c0_392 = arith.constant 0 : index
    %346 = vector.load %arg1[%c0_390, %c43, %c0_391, %c0_392] : memref<1x64x7x7xf32, #tpu.memory_space<vmem>>, vector<1x1x7x7xf32>
    %347 = vector.shape_cast %346 : vector<1x1x7x7xf32> to vector<7x7xf32>
    %c3_393 = arith.constant 3 : index
    %c2_394 = arith.constant 2 : index
    %c1_395 = arith.constant 1 : index
    %348 = vector.load %arg4[%c3_393, %c2_394, %c1_395] : memref<4x10x10xf32, #tpu.memory_space<vmem>>, vector<1x7x7xf32>
    %349 = vector.shape_cast %348 : vector<1x7x7xf32> to vector<7x7xf32>
    %350 = arith.addf %349, %347 : vector<7x7xf32>
    %c3_396 = arith.constant 3 : index
    %c2_397 = arith.constant 2 : index
    %c1_398 = arith.constant 1 : index
    %351 = vector.load %arg4[%c3_396, %c2_397, %c1_398] : memref<4x10x10xf32, #tpu.memory_space<vmem>>, vector<1x7x7xf32>
    %352 = vector.shape_cast %351 : vector<1x7x7xf32> to vector<7x7xf32>
    %353 = vector.shape_cast %350 : vector<7x7xf32> to vector<1x7x7xf32>
    tpu.vector_store %arg4[%c3_396, %c2_397, %c1_398], %353 {strides = array<i32>} : memref<4x10x10xf32, #tpu.memory_space<vmem>>, vector<1x7x7xf32>,
    %c0_399 = arith.constant 0 : index
    %c44 = arith.constant 44 : index
    %c0_400 = arith.constant 0 : index
    %c0_401 = arith.constant 0 : index
    %354 = vector.load %arg1[%c0_399, %c44, %c0_400, %c0_401] : memref<1x64x7x7xf32, #tpu.memory_space<vmem>>, vector<1x1x7x7xf32>
    %355 = vector.shape_cast %354 : vector<1x1x7x7xf32> to vector<7x7xf32>
    %c2_402 = arith.constant 2 : index
    %c2_403 = arith.constant 2 : index
    %c2_404 = arith.constant 2 : index
    %356 = vector.load %arg4[%c2_402, %c2_403, %c2_404] : memref<4x10x10xf32, #tpu.memory_space<vmem>>, vector<1x7x7xf32>
    %357 = vector.shape_cast %356 : vector<1x7x7xf32> to vector<7x7xf32>
    %358 = arith.addf %357, %355 : vector<7x7xf32>
    %c2_405 = arith.constant 2 : index
    %c2_406 = arith.constant 2 : index
    %c2_407 = arith.constant 2 : index
    %359 = vector.load %arg4[%c2_405, %c2_406, %c2_407] : memref<4x10x10xf32, #tpu.memory_space<vmem>>, vector<1x7x7xf32>
    %360 = vector.shape_cast %359 : vector<1x7x7xf32> to vector<7x7xf32>
    %361 = vector.shape_cast %358 : vector<7x7xf32> to vector<1x7x7xf32>
    tpu.vector_store %arg4[%c2_405, %c2_406, %c2_407], %361 {strides = array<i32>} : memref<4x10x10xf32, #tpu.memory_space<vmem>>, vector<1x7x7xf32>,
    %c0_408 = arith.constant 0 : index
    %c45 = arith.constant 45 : index
    %c0_409 = arith.constant 0 : index
    %c0_410 = arith.constant 0 : index
    %362 = vector.load %arg1[%c0_408, %c45, %c0_409, %c0_410] : memref<1x64x7x7xf32, #tpu.memory_space<vmem>>, vector<1x1x7x7xf32>
    %363 = vector.shape_cast %362 : vector<1x1x7x7xf32> to vector<7x7xf32>
    %c3_411 = arith.constant 3 : index
    %c2_412 = arith.constant 2 : index
    %c2_413 = arith.constant 2 : index
    %364 = vector.load %arg4[%c3_411, %c2_412, %c2_413] : memref<4x10x10xf32, #tpu.memory_space<vmem>>, vector<1x7x7xf32>
    %365 = vector.shape_cast %364 : vector<1x7x7xf32> to vector<7x7xf32>
    %366 = arith.addf %365, %363 : vector<7x7xf32>
    %c3_414 = arith.constant 3 : index
    %c2_415 = arith.constant 2 : index
    %c2_416 = arith.constant 2 : index
    %367 = vector.load %arg4[%c3_414, %c2_415, %c2_416] : memref<4x10x10xf32, #tpu.memory_space<vmem>>, vector<1x7x7xf32>
    %368 = vector.shape_cast %367 : vector<1x7x7xf32> to vector<7x7xf32>
    %369 = vector.shape_cast %366 : vector<7x7xf32> to vector<1x7x7xf32>
    tpu.vector_store %arg4[%c3_414, %c2_415, %c2_416], %369 {strides = array<i32>} : memref<4x10x10xf32, #tpu.memory_space<vmem>>, vector<1x7x7xf32>,
    %c0_417 = arith.constant 0 : index
    %c46 = arith.constant 46 : index
    %c0_418 = arith.constant 0 : index
    %c0_419 = arith.constant 0 : index
    %370 = vector.load %arg1[%c0_417, %c46, %c0_418, %c0_419] : memref<1x64x7x7xf32, #tpu.memory_space<vmem>>, vector<1x1x7x7xf32>
    %371 = vector.shape_cast %370 : vector<1x1x7x7xf32> to vector<7x7xf32>
    %c2_420 = arith.constant 2 : index
    %c2_421 = arith.constant 2 : index
    %c3_422 = arith.constant 3 : index
    %372 = vector.load %arg4[%c2_420, %c2_421, %c3_422] : memref<4x10x10xf32, #tpu.memory_space<vmem>>, vector<1x7x7xf32>
    %373 = vector.shape_cast %372 : vector<1x7x7xf32> to vector<7x7xf32>
    %374 = arith.addf %373, %371 : vector<7x7xf32>
    %c2_423 = arith.constant 2 : index
    %c2_424 = arith.constant 2 : index
    %c3_425 = arith.constant 3 : index
    %375 = vector.load %arg4[%c2_423, %c2_424, %c3_425] : memref<4x10x10xf32, #tpu.memory_space<vmem>>, vector<1x7x7xf32>
    %376 = vector.shape_cast %375 : vector<1x7x7xf32> to vector<7x7xf32>
    %377 = vector.shape_cast %374 : vector<7x7xf32> to vector<1x7x7xf32>
    tpu.vector_store %arg4[%c2_423, %c2_424, %c3_425], %377 {strides = array<i32>} : memref<4x10x10xf32, #tpu.memory_space<vmem>>, vector<1x7x7xf32>,
    %c0_426 = arith.constant 0 : index
    %c47 = arith.constant 47 : index
    %c0_427 = arith.constant 0 : index
    %c0_428 = arith.constant 0 : index
    %378 = vector.load %arg1[%c0_426, %c47, %c0_427, %c0_428] : memref<1x64x7x7xf32, #tpu.memory_space<vmem>>, vector<1x1x7x7xf32>
    %379 = vector.shape_cast %378 : vector<1x1x7x7xf32> to vector<7x7xf32>
    %c3_429 = arith.constant 3 : index
    %c2_430 = arith.constant 2 : index
    %c3_431 = arith.constant 3 : index
    %380 = vector.load %arg4[%c3_429, %c2_430, %c3_431] : memref<4x10x10xf32, #tpu.memory_space<vmem>>, vector<1x7x7xf32>
    %381 = vector.shape_cast %380 : vector<1x7x7xf32> to vector<7x7xf32>
    %382 = arith.addf %381, %379 : vector<7x7xf32>
    %c3_432 = arith.constant 3 : index
    %c2_433 = arith.constant 2 : index
    %c3_434 = arith.constant 3 : index
    %383 = vector.load %arg4[%c3_432, %c2_433, %c3_434] : memref<4x10x10xf32, #tpu.memory_space<vmem>>, vector<1x7x7xf32>
    %384 = vector.shape_cast %383 : vector<1x7x7xf32> to vector<7x7xf32>
    %385 = vector.shape_cast %382 : vector<7x7xf32> to vector<1x7x7xf32>
    tpu.vector_store %arg4[%c3_432, %c2_433, %c3_434], %385 {strides = array<i32>} : memref<4x10x10xf32, #tpu.memory_space<vmem>>, vector<1x7x7xf32>,
    %c0_435 = arith.constant 0 : index
    %c48 = arith.constant 48 : index
    %c0_436 = arith.constant 0 : index
    %c0_437 = arith.constant 0 : index
    %386 = vector.load %arg1[%c0_435, %c48, %c0_436, %c0_437] : memref<1x64x7x7xf32, #tpu.memory_space<vmem>>, vector<1x1x7x7xf32>
    %387 = vector.shape_cast %386 : vector<1x1x7x7xf32> to vector<7x7xf32>
    %c0_438 = arith.constant 0 : index
    %c3_439 = arith.constant 3 : index
    %c0_440 = arith.constant 0 : index
    %388 = vector.load %arg4[%c0_438, %c3_439, %c0_440] : memref<4x10x10xf32, #tpu.memory_space<vmem>>, vector<1x7x7xf32>
    %389 = vector.shape_cast %388 : vector<1x7x7xf32> to vector<7x7xf32>
    %390 = arith.addf %389, %387 : vector<7x7xf32>
    %c0_441 = arith.constant 0 : index
    %c3_442 = arith.constant 3 : index
    %c0_443 = arith.constant 0 : index
    %391 = vector.load %arg4[%c0_441, %c3_442, %c0_443] : memref<4x10x10xf32, #tpu.memory_space<vmem>>, vector<1x7x7xf32>
    %392 = vector.shape_cast %391 : vector<1x7x7xf32> to vector<7x7xf32>
    %393 = vector.shape_cast %390 : vector<7x7xf32> to vector<1x7x7xf32>
    tpu.vector_store %arg4[%c0_441, %c3_442, %c0_443], %393 {strides = array<i32>} : memref<4x10x10xf32, #tpu.memory_space<vmem>>, vector<1x7x7xf32>,
    %c0_444 = arith.constant 0 : index
    %c49 = arith.constant 49 : index
    %c0_445 = arith.constant 0 : index
    %c0_446 = arith.constant 0 : index
    %394 = vector.load %arg1[%c0_444, %c49, %c0_445, %c0_446] : memref<1x64x7x7xf32, #tpu.memory_space<vmem>>, vector<1x1x7x7xf32>
    %395 = vector.shape_cast %394 : vector<1x1x7x7xf32> to vector<7x7xf32>
    %c1_447 = arith.constant 1 : index
    %c3_448 = arith.constant 3 : index
    %c0_449 = arith.constant 0 : index
    %396 = vector.load %arg4[%c1_447, %c3_448, %c0_449] : memref<4x10x10xf32, #tpu.memory_space<vmem>>, vector<1x7x7xf32>
    %397 = vector.shape_cast %396 : vector<1x7x7xf32> to vector<7x7xf32>
    %398 = arith.addf %397, %395 : vector<7x7xf32>
    %c1_450 = arith.constant 1 : index
    %c3_451 = arith.constant 3 : index
    %c0_452 = arith.constant 0 : index
    %399 = vector.load %arg4[%c1_450, %c3_451, %c0_452] : memref<4x10x10xf32, #tpu.memory_space<vmem>>, vector<1x7x7xf32>
    %400 = vector.shape_cast %399 : vector<1x7x7xf32> to vector<7x7xf32>
    %401 = vector.shape_cast %398 : vector<7x7xf32> to vector<1x7x7xf32>
    tpu.vector_store %arg4[%c1_450, %c3_451, %c0_452], %401 {strides = array<i32>} : memref<4x10x10xf32, #tpu.memory_space<vmem>>, vector<1x7x7xf32>,
    %c0_453 = arith.constant 0 : index
    %c50 = arith.constant 50 : index
    %c0_454 = arith.constant 0 : index
    %c0_455 = arith.constant 0 : index
    %402 = vector.load %arg1[%c0_453, %c50, %c0_454, %c0_455] : memref<1x64x7x7xf32, #tpu.memory_space<vmem>>, vector<1x1x7x7xf32>
    %403 = vector.shape_cast %402 : vector<1x1x7x7xf32> to vector<7x7xf32>
    %c0_456 = arith.constant 0 : index
    %c3_457 = arith.constant 3 : index
    %c1_458 = arith.constant 1 : index
    %404 = vector.load %arg4[%c0_456, %c3_457, %c1_458] : memref<4x10x10xf32, #tpu.memory_space<vmem>>, vector<1x7x7xf32>
    %405 = vector.shape_cast %404 : vector<1x7x7xf32> to vector<7x7xf32>
    %406 = arith.addf %405, %403 : vector<7x7xf32>
    %c0_459 = arith.constant 0 : index
    %c3_460 = arith.constant 3 : index
    %c1_461 = arith.constant 1 : index
    %407 = vector.load %arg4[%c0_459, %c3_460, %c1_461] : memref<4x10x10xf32, #tpu.memory_space<vmem>>, vector<1x7x7xf32>
    %408 = vector.shape_cast %407 : vector<1x7x7xf32> to vector<7x7xf32>
    %409 = vector.shape_cast %406 : vector<7x7xf32> to vector<1x7x7xf32>
    tpu.vector_store %arg4[%c0_459, %c3_460, %c1_461], %409 {strides = array<i32>} : memref<4x10x10xf32, #tpu.memory_space<vmem>>, vector<1x7x7xf32>,
    %c0_462 = arith.constant 0 : index
    %c51 = arith.constant 51 : index
    %c0_463 = arith.constant 0 : index
    %c0_464 = arith.constant 0 : index
    %410 = vector.load %arg1[%c0_462, %c51, %c0_463, %c0_464] : memref<1x64x7x7xf32, #tpu.memory_space<vmem>>, vector<1x1x7x7xf32>
    %411 = vector.shape_cast %410 : vector<1x1x7x7xf32> to vector<7x7xf32>
    %c1_465 = arith.constant 1 : index
    %c3_466 = arith.constant 3 : index
    %c1_467 = arith.constant 1 : index
    %412 = vector.load %arg4[%c1_465, %c3_466, %c1_467] : memref<4x10x10xf32, #tpu.memory_space<vmem>>, vector<1x7x7xf32>
    %413 = vector.shape_cast %412 : vector<1x7x7xf32> to vector<7x7xf32>
    %414 = arith.addf %413, %411 : vector<7x7xf32>
    %c1_468 = arith.constant 1 : index
    %c3_469 = arith.constant 3 : index
    %c1_470 = arith.constant 1 : index
    %415 = vector.load %arg4[%c1_468, %c3_469, %c1_470] : memref<4x10x10xf32, #tpu.memory_space<vmem>>, vector<1x7x7xf32>
    %416 = vector.shape_cast %415 : vector<1x7x7xf32> to vector<7x7xf32>
    %417 = vector.shape_cast %414 : vector<7x7xf32> to vector<1x7x7xf32>
    tpu.vector_store %arg4[%c1_468, %c3_469, %c1_470], %417 {strides = array<i32>} : memref<4x10x10xf32, #tpu.memory_space<vmem>>, vector<1x7x7xf32>,
    %c0_471 = arith.constant 0 : index
    %c52 = arith.constant 52 : index
    %c0_472 = arith.constant 0 : index
    %c0_473 = arith.constant 0 : index
    %418 = vector.load %arg1[%c0_471, %c52, %c0_472, %c0_473] : memref<1x64x7x7xf32, #tpu.memory_space<vmem>>, vector<1x1x7x7xf32>
    %419 = vector.shape_cast %418 : vector<1x1x7x7xf32> to vector<7x7xf32>
    %c0_474 = arith.constant 0 : index
    %c3_475 = arith.constant 3 : index
    %c2_476 = arith.constant 2 : index
    %420 = vector.load %arg4[%c0_474, %c3_475, %c2_476] : memref<4x10x10xf32, #tpu.memory_space<vmem>>, vector<1x7x7xf32>
    %421 = vector.shape_cast %420 : vector<1x7x7xf32> to vector<7x7xf32>
    %422 = arith.addf %421, %419 : vector<7x7xf32>
    %c0_477 = arith.constant 0 : index
    %c3_478 = arith.constant 3 : index
    %c2_479 = arith.constant 2 : index
    %423 = vector.load %arg4[%c0_477, %c3_478, %c2_479] : memref<4x10x10xf32, #tpu.memory_space<vmem>>, vector<1x7x7xf32>
    %424 = vector.shape_cast %423 : vector<1x7x7xf32> to vector<7x7xf32>
    %425 = vector.shape_cast %422 : vector<7x7xf32> to vector<1x7x7xf32>
    tpu.vector_store %arg4[%c0_477, %c3_478, %c2_479], %425 {strides = array<i32>} : memref<4x10x10xf32, #tpu.memory_space<vmem>>, vector<1x7x7xf32>,
    %c0_480 = arith.constant 0 : index
    %c53 = arith.constant 53 : index
    %c0_481 = arith.constant 0 : index
    %c0_482 = arith.constant 0 : index
    %426 = vector.load %arg1[%c0_480, %c53, %c0_481, %c0_482] : memref<1x64x7x7xf32, #tpu.memory_space<vmem>>, vector<1x1x7x7xf32>
    %427 = vector.shape_cast %426 : vector<1x1x7x7xf32> to vector<7x7xf32>
    %c1_483 = arith.constant 1 : index
    %c3_484 = arith.constant 3 : index
    %c2_485 = arith.constant 2 : index
    %428 = vector.load %arg4[%c1_483, %c3_484, %c2_485] : memref<4x10x10xf32, #tpu.memory_space<vmem>>, vector<1x7x7xf32>
    %429 = vector.shape_cast %428 : vector<1x7x7xf32> to vector<7x7xf32>
    %430 = arith.addf %429, %427 : vector<7x7xf32>
    %c1_486 = arith.constant 1 : index
    %c3_487 = arith.constant 3 : index
    %c2_488 = arith.constant 2 : index
    %431 = vector.load %arg4[%c1_486, %c3_487, %c2_488] : memref<4x10x10xf32, #tpu.memory_space<vmem>>, vector<1x7x7xf32>
    %432 = vector.shape_cast %431 : vector<1x7x7xf32> to vector<7x7xf32>
    %433 = vector.shape_cast %430 : vector<7x7xf32> to vector<1x7x7xf32>
    tpu.vector_store %arg4[%c1_486, %c3_487, %c2_488], %433 {strides = array<i32>} : memref<4x10x10xf32, #tpu.memory_space<vmem>>, vector<1x7x7xf32>,
    %c0_489 = arith.constant 0 : index
    %c54 = arith.constant 54 : index
    %c0_490 = arith.constant 0 : index
    %c0_491 = arith.constant 0 : index
    %434 = vector.load %arg1[%c0_489, %c54, %c0_490, %c0_491] : memref<1x64x7x7xf32, #tpu.memory_space<vmem>>, vector<1x1x7x7xf32>
    %435 = vector.shape_cast %434 : vector<1x1x7x7xf32> to vector<7x7xf32>
    %c0_492 = arith.constant 0 : index
    %c3_493 = arith.constant 3 : index
    %c3_494 = arith.constant 3 : index
    %436 = vector.load %arg4[%c0_492, %c3_493, %c3_494] : memref<4x10x10xf32, #tpu.memory_space<vmem>>, vector<1x7x7xf32>
    %437 = vector.shape_cast %436 : vector<1x7x7xf32> to vector<7x7xf32>
    %438 = arith.addf %437, %435 : vector<7x7xf32>
    %c0_495 = arith.constant 0 : index
    %c3_496 = arith.constant 3 : index
    %c3_497 = arith.constant 3 : index
    %439 = vector.load %arg4[%c0_495, %c3_496, %c3_497] : memref<4x10x10xf32, #tpu.memory_space<vmem>>, vector<1x7x7xf32>
    %440 = vector.shape_cast %439 : vector<1x7x7xf32> to vector<7x7xf32>
    %441 = vector.shape_cast %438 : vector<7x7xf32> to vector<1x7x7xf32>
    tpu.vector_store %arg4[%c0_495, %c3_496, %c3_497], %441 {strides = array<i32>} : memref<4x10x10xf32, #tpu.memory_space<vmem>>, vector<1x7x7xf32>,
    %c0_498 = arith.constant 0 : index
    %c55 = arith.constant 55 : index
    %c0_499 = arith.constant 0 : index
    %c0_500 = arith.constant 0 : index
    %442 = vector.load %arg1[%c0_498, %c55, %c0_499, %c0_500] : memref<1x64x7x7xf32, #tpu.memory_space<vmem>>, vector<1x1x7x7xf32>
    %443 = vector.shape_cast %442 : vector<1x1x7x7xf32> to vector<7x7xf32>
    %c1_501 = arith.constant 1 : index
    %c3_502 = arith.constant 3 : index
    %c3_503 = arith.constant 3 : index
    %444 = vector.load %arg4[%c1_501, %c3_502, %c3_503] : memref<4x10x10xf32, #tpu.memory_space<vmem>>, vector<1x7x7xf32>
    %445 = vector.shape_cast %444 : vector<1x7x7xf32> to vector<7x7xf32>
    %446 = arith.addf %445, %443 : vector<7x7xf32>
    %c1_504 = arith.constant 1 : index
    %c3_505 = arith.constant 3 : index
    %c3_506 = arith.constant 3 : index
    %447 = vector.load %arg4[%c1_504, %c3_505, %c3_506] : memref<4x10x10xf32, #tpu.memory_space<vmem>>, vector<1x7x7xf32>
    %448 = vector.shape_cast %447 : vector<1x7x7xf32> to vector<7x7xf32>
    %449 = vector.shape_cast %446 : vector<7x7xf32> to vector<1x7x7xf32>
    tpu.vector_store %arg4[%c1_504, %c3_505, %c3_506], %449 {strides = array<i32>} : memref<4x10x10xf32, #tpu.memory_space<vmem>>, vector<1x7x7xf32>,
    %c0_507 = arith.constant 0 : index
    %c56 = arith.constant 56 : index
    %c0_508 = arith.constant 0 : index
    %c0_509 = arith.constant 0 : index
    %450 = vector.load %arg1[%c0_507, %c56, %c0_508, %c0_509] : memref<1x64x7x7xf32, #tpu.memory_space<vmem>>, vector<1x1x7x7xf32>
    %451 = vector.shape_cast %450 : vector<1x1x7x7xf32> to vector<7x7xf32>
    %c2_510 = arith.constant 2 : index
    %c3_511 = arith.constant 3 : index
    %c0_512 = arith.constant 0 : index
    %452 = vector.load %arg4[%c2_510, %c3_511, %c0_512] : memref<4x10x10xf32, #tpu.memory_space<vmem>>, vector<1x7x7xf32>
    %453 = vector.shape_cast %452 : vector<1x7x7xf32> to vector<7x7xf32>
    %454 = arith.addf %453, %451 : vector<7x7xf32>
    %c2_513 = arith.constant 2 : index
    %c3_514 = arith.constant 3 : index
    %c0_515 = arith.constant 0 : index
    %455 = vector.load %arg4[%c2_513, %c3_514, %c0_515] : memref<4x10x10xf32, #tpu.memory_space<vmem>>, vector<1x7x7xf32>
    %456 = vector.shape_cast %455 : vector<1x7x7xf32> to vector<7x7xf32>
    %457 = vector.shape_cast %454 : vector<7x7xf32> to vector<1x7x7xf32>
    tpu.vector_store %arg4[%c2_513, %c3_514, %c0_515], %457 {strides = array<i32>} : memref<4x10x10xf32, #tpu.memory_space<vmem>>, vector<1x7x7xf32>,
    %c0_516 = arith.constant 0 : index
    %c57 = arith.constant 57 : index
    %c0_517 = arith.constant 0 : index
    %c0_518 = arith.constant 0 : index
    %458 = vector.load %arg1[%c0_516, %c57, %c0_517, %c0_518] : memref<1x64x7x7xf32, #tpu.memory_space<vmem>>, vector<1x1x7x7xf32>
    %459 = vector.shape_cast %458 : vector<1x1x7x7xf32> to vector<7x7xf32>
    %c3_519 = arith.constant 3 : index
    %c3_520 = arith.constant 3 : index
    %c0_521 = arith.constant 0 : index
    %460 = vector.load %arg4[%c3_519, %c3_520, %c0_521] : memref<4x10x10xf32, #tpu.memory_space<vmem>>, vector<1x7x7xf32>
    %461 = vector.shape_cast %460 : vector<1x7x7xf32> to vector<7x7xf32>
    %462 = arith.addf %461, %459 : vector<7x7xf32>
    %c3_522 = arith.constant 3 : index
    %c3_523 = arith.constant 3 : index
    %c0_524 = arith.constant 0 : index
    %463 = vector.load %arg4[%c3_522, %c3_523, %c0_524] : memref<4x10x10xf32, #tpu.memory_space<vmem>>, vector<1x7x7xf32>
    %464 = vector.shape_cast %463 : vector<1x7x7xf32> to vector<7x7xf32>
    %465 = vector.shape_cast %462 : vector<7x7xf32> to vector<1x7x7xf32>
    tpu.vector_store %arg4[%c3_522, %c3_523, %c0_524], %465 {strides = array<i32>} : memref<4x10x10xf32, #tpu.memory_space<vmem>>, vector<1x7x7xf32>,
    %c0_525 = arith.constant 0 : index
    %c58 = arith.constant 58 : index
    %c0_526 = arith.constant 0 : index
    %c0_527 = arith.constant 0 : index
    %466 = vector.load %arg1[%c0_525, %c58, %c0_526, %c0_527] : memref<1x64x7x7xf32, #tpu.memory_space<vmem>>, vector<1x1x7x7xf32>
    %467 = vector.shape_cast %466 : vector<1x1x7x7xf32> to vector<7x7xf32>
    %c2_528 = arith.constant 2 : index
    %c3_529 = arith.constant 3 : index
    %c1_530 = arith.constant 1 : index
    %468 = vector.load %arg4[%c2_528, %c3_529, %c1_530] : memref<4x10x10xf32, #tpu.memory_space<vmem>>, vector<1x7x7xf32>
    %469 = vector.shape_cast %468 : vector<1x7x7xf32> to vector<7x7xf32>
    %470 = arith.addf %469, %467 : vector<7x7xf32>
    %c2_531 = arith.constant 2 : index
    %c3_532 = arith.constant 3 : index
    %c1_533 = arith.constant 1 : index
    %471 = vector.load %arg4[%c2_531, %c3_532, %c1_533] : memref<4x10x10xf32, #tpu.memory_space<vmem>>, vector<1x7x7xf32>
    %472 = vector.shape_cast %471 : vector<1x7x7xf32> to vector<7x7xf32>
    %473 = vector.shape_cast %470 : vector<7x7xf32> to vector<1x7x7xf32>
    tpu.vector_store %arg4[%c2_531, %c3_532, %c1_533], %473 {strides = array<i32>} : memref<4x10x10xf32, #tpu.memory_space<vmem>>, vector<1x7x7xf32>,
    %c0_534 = arith.constant 0 : index
    %c59 = arith.constant 59 : index
    %c0_535 = arith.constant 0 : index
    %c0_536 = arith.constant 0 : index
    %474 = vector.load %arg1[%c0_534, %c59, %c0_535, %c0_536] : memref<1x64x7x7xf32, #tpu.memory_space<vmem>>, vector<1x1x7x7xf32>
    %475 = vector.shape_cast %474 : vector<1x1x7x7xf32> to vector<7x7xf32>
    %c3_537 = arith.constant 3 : index
    %c3_538 = arith.constant 3 : index
    %c1_539 = arith.constant 1 : index
    %476 = vector.load %arg4[%c3_537, %c3_538, %c1_539] : memref<4x10x10xf32, #tpu.memory_space<vmem>>, vector<1x7x7xf32>
    %477 = vector.shape_cast %476 : vector<1x7x7xf32> to vector<7x7xf32>
    %478 = arith.addf %477, %475 : vector<7x7xf32>
    %c3_540 = arith.constant 3 : index
    %c3_541 = arith.constant 3 : index
    %c1_542 = arith.constant 1 : index
    %479 = vector.load %arg4[%c3_540, %c3_541, %c1_542] : memref<4x10x10xf32, #tpu.memory_space<vmem>>, vector<1x7x7xf32>
    %480 = vector.shape_cast %479 : vector<1x7x7xf32> to vector<7x7xf32>
    %481 = vector.shape_cast %478 : vector<7x7xf32> to vector<1x7x7xf32>
    tpu.vector_store %arg4[%c3_540, %c3_541, %c1_542], %481 {strides = array<i32>} : memref<4x10x10xf32, #tpu.memory_space<vmem>>, vector<1x7x7xf32>,
    %c0_543 = arith.constant 0 : index
    %c60 = arith.constant 60 : index
    %c0_544 = arith.constant 0 : index
    %c0_545 = arith.constant 0 : index
    %482 = vector.load %arg1[%c0_543, %c60, %c0_544, %c0_545] : memref<1x64x7x7xf32, #tpu.memory_space<vmem>>, vector<1x1x7x7xf32>
    %483 = vector.shape_cast %482 : vector<1x1x7x7xf32> to vector<7x7xf32>
    %c2_546 = arith.constant 2 : index
    %c3_547 = arith.constant 3 : index
    %c2_548 = arith.constant 2 : index
    %484 = vector.load %arg4[%c2_546, %c3_547, %c2_548] : memref<4x10x10xf32, #tpu.memory_space<vmem>>, vector<1x7x7xf32>
    %485 = vector.shape_cast %484 : vector<1x7x7xf32> to vector<7x7xf32>
    %486 = arith.addf %485, %483 : vector<7x7xf32>
    %c2_549 = arith.constant 2 : index
    %c3_550 = arith.constant 3 : index
    %c2_551 = arith.constant 2 : index
    %487 = vector.load %arg4[%c2_549, %c3_550, %c2_551] : memref<4x10x10xf32, #tpu.memory_space<vmem>>, vector<1x7x7xf32>
    %488 = vector.shape_cast %487 : vector<1x7x7xf32> to vector<7x7xf32>
    %489 = vector.shape_cast %486 : vector<7x7xf32> to vector<1x7x7xf32>
    tpu.vector_store %arg4[%c2_549, %c3_550, %c2_551], %489 {strides = array<i32>} : memref<4x10x10xf32, #tpu.memory_space<vmem>>, vector<1x7x7xf32>,
    %c0_552 = arith.constant 0 : index
    %c61 = arith.constant 61 : index
    %c0_553 = arith.constant 0 : index
    %c0_554 = arith.constant 0 : index
    %490 = vector.load %arg1[%c0_552, %c61, %c0_553, %c0_554] : memref<1x64x7x7xf32, #tpu.memory_space<vmem>>, vector<1x1x7x7xf32>
    %491 = vector.shape_cast %490 : vector<1x1x7x7xf32> to vector<7x7xf32>
    %c3_555 = arith.constant 3 : index
    %c3_556 = arith.constant 3 : index
    %c2_557 = arith.constant 2 : index
    %492 = vector.load %arg4[%c3_555, %c3_556, %c2_557] : memref<4x10x10xf32, #tpu.memory_space<vmem>>, vector<1x7x7xf32>
    %493 = vector.shape_cast %492 : vector<1x7x7xf32> to vector<7x7xf32>
    %494 = arith.addf %493, %491 : vector<7x7xf32>
    %c3_558 = arith.constant 3 : index
    %c3_559 = arith.constant 3 : index
    %c2_560 = arith.constant 2 : index
    %495 = vector.load %arg4[%c3_558, %c3_559, %c2_560] : memref<4x10x10xf32, #tpu.memory_space<vmem>>, vector<1x7x7xf32>
    %496 = vector.shape_cast %495 : vector<1x7x7xf32> to vector<7x7xf32>
    %497 = vector.shape_cast %494 : vector<7x7xf32> to vector<1x7x7xf32>
    tpu.vector_store %arg4[%c3_558, %c3_559, %c2_560], %497 {strides = array<i32>} : memref<4x10x10xf32, #tpu.memory_space<vmem>>, vector<1x7x7xf32>,
    %c0_561 = arith.constant 0 : index
    %c62 = arith.constant 62 : index
    %c0_562 = arith.constant 0 : index
    %c0_563 = arith.constant 0 : index
    %498 = vector.load %arg1[%c0_561, %c62, %c0_562, %c0_563] : memref<1x64x7x7xf32, #tpu.memory_space<vmem>>, vector<1x1x7x7xf32>
    %499 = vector.shape_cast %498 : vector<1x1x7x7xf32> to vector<7x7xf32>
    %c2_564 = arith.constant 2 : index
    %c3_565 = arith.constant 3 : index
    %c3_566 = arith.constant 3 : index
    %500 = vector.load %arg4[%c2_564, %c3_565, %c3_566] : memref<4x10x10xf32, #tpu.memory_space<vmem>>, vector<1x7x7xf32>
    %501 = vector.shape_cast %500 : vector<1x7x7xf32> to vector<7x7xf32>
    %502 = arith.addf %501, %499 : vector<7x7xf32>
    %c2_567 = arith.constant 2 : index
    %c3_568 = arith.constant 3 : index
    %c3_569 = arith.constant 3 : index
    %503 = vector.load %arg4[%c2_567, %c3_568, %c3_569] : memref<4x10x10xf32, #tpu.memory_space<vmem>>, vector<1x7x7xf32>
    %504 = vector.shape_cast %503 : vector<1x7x7xf32> to vector<7x7xf32>
    %505 = vector.shape_cast %502 : vector<7x7xf32> to vector<1x7x7xf32>
    tpu.vector_store %arg4[%c2_567, %c3_568, %c3_569], %505 {strides = array<i32>} : memref<4x10x10xf32, #tpu.memory_space<vmem>>, vector<1x7x7xf32>,
    %c0_570 = arith.constant 0 : index
    %c63 = arith.constant 63 : index
    %c0_571 = arith.constant 0 : index
    %c0_572 = arith.constant 0 : index
    %506 = vector.load %arg1[%c0_570, %c63, %c0_571, %c0_572] : memref<1x64x7x7xf32, #tpu.memory_space<vmem>>, vector<1x1x7x7xf32>
    %507 = vector.shape_cast %506 : vector<1x1x7x7xf32> to vector<7x7xf32>
    %c3_573 = arith.constant 3 : index
    %c3_574 = arith.constant 3 : index
    %c3_575 = arith.constant 3 : index
    %508 = vector.load %arg4[%c3_573, %c3_574, %c3_575] : memref<4x10x10xf32, #tpu.memory_space<vmem>>, vector<1x7x7xf32>
    %509 = vector.shape_cast %508 : vector<1x7x7xf32> to vector<7x7xf32>
    %510 = arith.addf %509, %507 : vector<7x7xf32>
    %c3_576 = arith.constant 3 : index
    %c3_577 = arith.constant 3 : index
    %c3_578 = arith.constant 3 : index
    %511 = vector.load %arg4[%c3_576, %c3_577, %c3_578] : memref<4x10x10xf32, #tpu.memory_space<vmem>>, vector<1x7x7xf32>
    %512 = vector.shape_cast %511 : vector<1x7x7xf32> to vector<7x7xf32>
    %513 = vector.shape_cast %510 : vector<7x7xf32> to vector<1x7x7xf32>
    tpu.vector_store %arg4[%c3_576, %c3_577, %c3_578], %513 {strides = array<i32>} : memref<4x10x10xf32, #tpu.memory_space<vmem>>, vector<1x7x7xf32>,
    %c0_579 = arith.constant 0 : index
    %c0_580 = arith.constant 0 : index
    %c0_581 = arith.constant 0 : index
    %514 = vector.load %arg4[%c0_579, %c0_580, %c0_581] : memref<4x10x10xf32, #tpu.memory_space<vmem>>, vector<4x10x10xf32>
    %c0_582 = arith.constant 0 : index
    %515 = memref.load %arg2[%c0_582] : memref<1xf32, #tpu.memory_space<smem>>
    %516 = vector.broadcast %515 : f32 to vector<4x10x10xf32>
    %517 = arith.addf %514, %516 : vector<4x10x10xf32>
    %cst_583 = arith.constant 0.000000e+00 : f32
    %518 = vector.broadcast %cst_583 : f32 to vector<4x10x10xf32>
    %519 = arith.subf %518, %517 : vector<4x10x10xf32>
    %520 = math.exp %519 : vector<4x10x10xf32>
    %cst_584 = arith.constant 1.000000e+00 : f32
    %521 = vector.broadcast %cst_584 : f32 to vector<4x10x10xf32>
    %522 = arith.addf %521, %520 : vector<4x10x10xf32>
    %cst_585 = arith.constant 1.000000e+00 : f32
    %523 = vector.broadcast %cst_585 : f32 to vector<4x10x10xf32>
    %524 = arith.divf %523, %522 : vector<4x10x10xf32>
    %c0_586 = arith.constant 0 : index
    %c0_587 = arith.constant 0 : index
    %c0_588 = arith.constant 0 : index
    %c0_589 = arith.constant 0 : index
    %525 = vector.load %arg3[%c0_586, %c0_587, %c0_588, %c0_589] : memref<1x4x10x10xf32, #tpu.memory_space<vmem>>, vector<1x4x10x10xf32>
    %526 = vector.shape_cast %525 : vector<1x4x10x10xf32> to vector<4x10x10xf32>
    %527 = vector.shape_cast %524 : vector<4x10x10xf32> to vector<1x4x10x10xf32>
    tpu.vector_store %arg3[%c0_586, %c0_587, %c0_588, %c0_589], %527 {strides = array<i32>} : memref<1x4x10x10xf32, #tpu.memory_space<vmem>>, vector<1x4x10x10xf32>,
    return
  }
  func.func @transform_0(%arg0: i32) -> (i32, i32, i32, i32) {
    %c0_i32 = arith.constant 0 : i32
    %c0_i32_0 = arith.constant 0 : i32
    %c0_i32_1 = arith.constant 0 : i32
    %c0_i32_2 = arith.constant 0 : i32
    return %arg0, %c0_i32, %c0_i32_0, %c0_i32_1 : i32, i32, i32, i32
  }
  func.func @transform_1(%arg0: i32) -> i32 {
    %c0_i32 = arith.constant 0 : i32
    %c0_i32_0 = arith.constant 0 : i32
    return %c0_i32 : i32
  }
  func.func @transform_2(%arg0: i32) -> (i32, i32, i32, i32) {
    %c0_i32 = arith.constant 0 : i32
    %c0_i32_0 = arith.constant 0 : i32
    %c0_i32_1 = arith.constant 0 : i32
    %c0_i32_2 = arith.constant 0 : i32
    return %arg0, %c0_i32, %c0_i32_0, %c0_i32_1 : i32, i32, i32, i32
  }
}

</mosaic_0001>

<llo_original>
// kernel: encoder_decoder_forward.2
$region0: #{encoder_decoder_forward.2}
  #allocation0 [shape = 'u32[]', space=smem, size = 0x4, offset = 0x4, fixed_abs, tag = 'smem constant byte address 0x4 - core index']
  #allocation1 [shape = 'u32[72,128]{1,0:T(1,128)}', space=vmem, size = 0x9000, scoped, tag = 'internal scratch']
  #allocation2 [shape = 'f32[64,128]{1,0:T(8,128)}', space=vmem, size = 0x8000, scoped, tag = 'scratch operand']
  %s0 = inlined_call_operand.vmem [shape: bf16[128,256], index: 0, kind: input, shape index: {}]
  %s1 = inlined_call_operand.vmem [shape: bf16[256,128], index: 1, kind: input, shape index: {}]
  %s2 = inlined_call_operand.vmem [shape: f32[1,128], index: 2, kind: input, shape index: {}]
  %s3 = inlined_call_operand.vmem [shape: bf16[128,128], index: 3, kind: input, shape index: {}]
  %s4 = inlined_call_operand.vmem [shape: f32[128,128], index: 4, kind: output, shape index: {0}]
  %s5 = inlined_call_operand.vmem [shape: f32[128,128], index: 5, kind: output, shape index: {1}]
  %6 = xla_tuple %s4, %s5
  %s7 = sld [smem:[#allocation0]]
  $region65: #{encoder_decoder_forward.2} parent=0
    _
  %s9 = ssub.s32 1, %s7
  %s10 = scalar_select 0, %s9, %s7
  loop: start=0, step=1, limit=4
  $region2: #{encoder_decoder_forward.2} parent=0 // loop_pre_header
    _
  $region3: #{encoder_decoder_forward.2} parent=0 // loop_header
    %s12 = sphi 0, %s16
    %p13 = scmp.ge.s32.totalorder %s12, 4
    %s19 = sphi 0, %s31
    %s20 = sphi 0, %s27
    %s21 = sphi 0, %s19
    %s22 = sphi 0, %s20
    %s23 = sphi 0, %s21
    %s24 = sphi 0, %s22
    %s36 = sphi 0, %s38
    %s39 = sphi 0, %s36
    %s40 = sphi 0, %s39
    %s56 = sphi 0, %s40
    %s62 = sphi 0, %s64
    %s65 = sphi 0, %s62
    %s66 = sphi 0, %s65
    %s82 = sphi 0, %s66
    %s86 = sphi 0, %s86
    %s88 = sphi 0, %s86
    %s89 = sphi 0, %s88
    %s103 = sphi 0, %s89
    %s107 = sphi 0, %s107
    %s109 = sphi 0, %s107
    %s110 = sphi 0, %s109
    %s124 = sphi 0, %s110
    %s130 = sphi 0, %s132
    %s133 = sphi 0, %s130
    %s134 = sphi 0, %s133
    %s150 = sphi 0, %s134
    %s156 = sphi 0, %s158
    %s159 = sphi 0, %s156
    %s160 = sphi 0, %s159
    %s176 = sphi 0, %s160
  $region4: #{encoder_decoder_forward.2} parent=0 // loop_header_branch
    %15 = sbr.rel (%p13) target = $region8
  $region5: #{encoder_decoder_forward.2} parent=0 // loop_body
    %s17 = ssub.s32 %s12, 1
    %s18 = ssub.s32 %s12, 2
    %s25 = sadd.s32 1, %s20
    %p26 = scmp.ge.s32.totalorder %s25, 1
    %s27 = scalar_select %p26, 0, %s25
    %s28 = sadd.s32 1, %s19
    %s29 = scalar_select %p26, %s28, %s19
    %p30 = scmp.ge.s32.totalorder %s29, 2
    %s31 = scalar_select %p30, 0, %s29
    %s32 = ssub.s32 %s19, %s31
    %s33 = ssub.s32 %s20, %s27
    %s34 = sor.u32 %s32, %s33
    %p35 = scmp.eq.s32.totalorder %s34, 0
    %s37 = sadd.s32 %s36, 1
    %s38 = scalar_select %p35, %s36, %s37
    %p41 = pneg %p35
    %p42 = scmp.eq.s32.totalorder %s12, 1
    %p43 = por %p41, %p42
    %p44 = scmp.ne.s32.totalorder %s36, %s39
    %p45 = scmp.eq.s32.totalorder %s12, 0
    %p46 = por %p44, %p45
    %p47 = scmp.ne.s32.totalorder %s36, %s39
    %p48 = scmp.eq.s32.totalorder %s17, 1
    %p49 = por %p47, %p48
    %p50 = scmp.ne.s32.totalorder %s39, %s40
    %p51 = scmp.eq.s32.totalorder %s17, 0
    %p52 = por %p50, %p51
    %p53 = scmp.ne.s32.totalorder %s39, %s40
    %p54 = scmp.eq.s32.totalorder %s18, 1
    %p55 = por %p53, %p54
    %p57 = scmp.ne.s32.totalorder %s40, %s56
    %p58 = scmp.eq.s32.totalorder %s18, 0
    %p59 = por %p57, %p58
    %s60 = ssub.s32 %s20, %s27
    %p61 = scmp.eq.s32.totalorder %s60, 0
    %s63 = sadd.s32 %s62, 1
    %s64 = scalar_select %p61, %s62, %s63
    %p67 = pneg %p61
    %p68 = scmp.eq.s32.totalorder %s12, 1
    %p69 = por %p67, %p68
    %p70 = scmp.ne.s32.totalorder %s62, %s65
    %p71 = scmp.eq.s32.totalorder %s12, 0
    %p72 = por %p70, %p71
    %p73 = scmp.ne.s32.totalorder %s62, %s65
    %p74 = scmp.eq.s32.totalorder %s17, 1
    %p75 = por %p73, %p74
    %p76 = scmp.ne.s32.totalorder %s65, %s66
    %p77 = scmp.eq.s32.totalorder %s17, 0
    %p78 = por %p76, %p77
    %p79 = scmp.ne.s32.totalorder %s65, %s66
    %p80 = scmp.eq.s32.totalorder %s18, 1
    %p81 = por %p79, %p80
    %p83 = scmp.ne.s32.totalorder %s66, %s82
    %p84 = scmp.eq.s32.totalorder %s18, 0
    %p85 = por %p83, %p84
    %s87 = sadd.s32 %s86, 1
    %p90 = scmp.eq.s32.totalorder %s12, 1
    %p91 = scmp.ne.s32.totalorder %s86, %s88
    %p92 = scmp.eq.s32.totalorder %s12, 0
    %p93 = por %p91, %p92
    %p94 = scmp.ne.s32.totalorder %s86, %s88
    %p95 = scmp.eq.s32.totalorder %s17, 1
    %p96 = por %p94, %p95
    %p97 = scmp.ne.s32.totalorder %s88, %s89
    %p98 = scmp.eq.s32.totalorder %s17, 0
    %p99 = por %p97, %p98
    %p100 = scmp.ne.s32.totalorder %s88, %s89
    %p101 = scmp.eq.s32.totalorder %s18, 1
    %p102 = por %p100, %p101
    %p104 = scmp.ne.s32.totalorder %s89, %s103
    %p105 = scmp.eq.s32.totalorder %s18, 0
    %p106 = por %p104, %p105
    %s108 = sadd.s32 %s107, 1
    %p111 = scmp.eq.s32.totalorder %s12, 1
    %p112 = scmp.ne.s32.totalorder %s107, %s109
    %p113 = scmp.eq.s32.totalorder %s12, 0
    %p114 = por %p112, %p113
    %p115 = scmp.ne.s32.totalorder %s107, %s109
    %p116 = scmp.eq.s32.totalorder %s17, 1
    %p117 = por %p115, %p116
    %p118 = scmp.ne.s32.totalorder %s109, %s110
    %p119 = scmp.eq.s32.totalorder %s17, 0
    %p120 = por %p118, %p119
    %p121 = scmp.ne.s32.totalorder %s109, %s110
    %p122 = scmp.eq.s32.totalorder %s18, 1
    %p123 = por %p121, %p122
    %p125 = scmp.ne.s32.totalorder %s110, %s124
    %p126 = scmp.eq.s32.totalorder %s18, 0
    %p127 = por %p125, %p126
    %s128 = ssub.s32 %s19, %s31
    %p129 = scmp.eq.s32.totalorder %s128, 0
    %s131 = sadd.s32 %s130, 1
    %s132 = scalar_select %p129, %s130, %s131
    %p135 = pneg %p129
    %p136 = scmp.eq.s32.totalorder %s12, 1
    %p137 = por %p135, %p136
    %p138 = scmp.ne.s32.totalorder %s130, %s133
    %p139 = scmp.eq.s32.totalorder %s12, 0
    %p140 = por %p138, %p139
    %p141 = scmp.ne.s32.totalorder %s130, %s133
    %p142 = scmp.eq.s32.totalorder %s17, 1
    %p143 = por %p141, %p142
    %p144 = scmp.ne.s32.totalorder %s133, %s134
    %p145 = scmp.eq.s32.totalorder %s17, 0
    %p146 = por %p144, %p145
    %p147 = scmp.ne.s32.totalorder %s133, %s134
    %p148 = scmp.eq.s32.totalorder %s18, 1
    %p149 = por %p147, %p148
    %p151 = scmp.ne.s32.totalorder %s134, %s150
    %p152 = scmp.eq.s32.totalorder %s18, 0
    %p153 = por %p151, %p152
    %s154 = ssub.s32 %s19, %s31
    %p155 = scmp.eq.s32.totalorder %s154, 0
    %s157 = sadd.s32 %s156, 1
    %s158 = scalar_select %p155, %s156, %s157
    %p161 = pneg %p155
    %p162 = scmp.eq.s32.totalorder %s12, 1
    %p163 = por %p161, %p162
    %p164 = scmp.ne.s32.totalorder %s156, %s159
    %p165 = scmp.eq.s32.totalorder %s12, 0
    %p166 = por %p164, %p165
    %p167 = scmp.ne.s32.totalorder %s156, %s159
    %p168 = scmp.eq.s32.totalorder %s17, 1
    %p169 = por %p167, %p168
    %p170 = scmp.ne.s32.totalorder %s159, %s160
    %p171 = scmp.eq.s32.totalorder %s17, 0
    %p172 = por %p170, %p171
    %p173 = scmp.ne.s32.totalorder %s159, %s160
    %p174 = scmp.eq.s32.totalorder %s18, 1
    %p175 = por %p173, %p174
    %p177 = scmp.ne.s32.totalorder %s160, %s176
    %p178 = scmp.eq.s32.totalorder %s18, 0
    %p179 = por %p177, %p178
    %p180 = scmp.le.s32.totalorder 1, %s12
    %p181 = scmp.lt.s32.totalorder %s12, 3
    %p182 = pnand %p180, %p181
    %p183 = pneg %p182
    // Predicated region
    $region9: #{encoder_decoder_forward.2} parent=5 // pred_check
      _
    $region10: #{encoder_decoder_forward.2} parent=5 // pred_check_branch
      %185 = sbr.rel (%p182) target = $region12
    $region11: #{encoder_decoder_forward.2} parent=5 // pred_region
      %s186 = ssub.s32 %s12, 1
      // Predicated region
      $region13: #{encoder_decoder_forward.2} parent=11 // pred_check
        %p187 = pneg %p78
      $region14: #{encoder_decoder_forward.2} parent=11 // pred_check_branch
        %189 = sbr.rel (%p187) target = $region16
      $region15: #{encoder_decoder_forward.2} parent=11 // pred_region
        %s190 = smul.u32 32, %s22
        %p191 = scmp.lt.s32.totalorder %s190, 31
        %s192 = scalar_select %p191, %s190, 31
        %s193 = smul.addr %s192, 4
        %s194 = scalar_lea.vmem %s1, %s193
        %s195 = smul.u32 32, %s22
      $region16: #{encoder_decoder_forward.2} parent=11 // pred_fallthru
        _
      // Predicated region
      $region17: #{encoder_decoder_forward.2} parent=11 // pred_check
        %p196 = pneg %p99
      $region18: #{encoder_decoder_forward.2} parent=11 // pred_check_branch
        %198 = sbr.rel (%p196) target = $region20
      $region19: #{encoder_decoder_forward.2} parent=11 // pred_region
        _
      $region20: #{encoder_decoder_forward.2} parent=11 // pred_fallthru
        _
      // Predicated region
      $region21: #{encoder_decoder_forward.2} parent=11 // pred_check
        %p199 = pneg %p120
      $region22: #{encoder_decoder_forward.2} parent=11 // pred_check_branch
        %201 = sbr.rel (%p199) target = $region24
      $region23: #{encoder_decoder_forward.2} parent=11 // pred_region
        _
      $region24: #{encoder_decoder_forward.2} parent=11 // pred_fallthru
        _
    $region12: #{encoder_decoder_forward.2} parent=5 // pred_fallthru
      _
    %p202 = scmp.lt.s32.totalorder %s12, 2
    // Predicated region
    $region25: #{encoder_decoder_forward.2} parent=5 // pred_check
      %p203 = pneg %p202
    $region26: #{encoder_decoder_forward.2} parent=5 // pred_check_branch
      %205 = sbr.rel (%p203) target = $region28
    $region27: #{encoder_decoder_forward.2} parent=5 // pred_region
      // Predicated region
      $region29: #{encoder_decoder_forward.2} parent=27 // pred_check
        %p206 = pneg %p46
      $region30: #{encoder_decoder_forward.2} parent=27 // pred_check_branch
        %208 = sbr.rel (%p206) target = $region32
      $region31: #{encoder_decoder_forward.2} parent=27 // pred_region
        %s209 = smul.u32 8, %s19
        %s210 = smul.u32 2, %s20
        %p211 = scmp.lt.s32.totalorder %s209, 15
        %s212 = scalar_select %p211, %s209, 15
        %p213 = scmp.lt.s32.totalorder %s210, 1
        %s214 = scalar_select %p213, %s210, 1
        %s215 = smul.addr %s212, 2
        %s216 = sadd.s32 %s214, %s215
        %s217 = smul.addr %s216, 4
        %s218 = scalar_lea.vmem %s0, %s217
        %s219 = smul.u32 8, %s19
        %s220 = smul.u32 2, %s20
      $region32: #{encoder_decoder_forward.2} parent=27 // pred_fallthru
        _
    $region28: #{encoder_decoder_forward.2} parent=5 // pred_fallthru
      _
    %p221 = scmp.le.s32.totalorder 1, %s12
    %p222 = scmp.lt.s32.totalorder %s12, 3
    %p223 = pnand %p221, %p222
    %p224 = pneg %p223
    // Predicated region
    $region33: #{encoder_decoder_forward.2} parent=5 // pred_check
      _
    $region34: #{encoder_decoder_forward.2} parent=5 // pred_check_branch
      %226 = sbr.rel (%p223) target = $region36
    $region35: #{encoder_decoder_forward.2} parent=5 // pred_region
      %s227 = ssub.s32 %s12, 1
      %s228 = smul.u32 8, %s21
      %s229 = smul.u32 2, %s22
      %p230 = scmp.lt.s32.totalorder %s228, 15
      %s231 = scalar_select %p230, %s228, 15
      %p232 = scmp.lt.s32.totalorder %s229, 1
      %s233 = scalar_select %p232, %s229, 1
      %s234 = smul.addr %s231, 2
      %s235 = sadd.s32 %s233, %s234
      %s236 = smul.addr %s235, 4
      %s237 = scalar_lea.vmem %s0, %s236
      %p238 = pneg %p52
      %p239 = pneg %p49
      %s240 = smul.u32 32, %s22
      %p241 = scmp.lt.s32.totalorder %s240, 31
      %s242 = scalar_select %p241, %s240, 31
      %s243 = smul.addr %s242, 4
      %s244 = scalar_lea.vmem %s1, %s243
      %p245 = pneg %p78
      %p246 = pneg %p75
      %p247 = pneg %p99
      %p248 = pneg %p96
      %p249 = pneg %p120
      %p250 = pneg %p117
      %p251 = pneg %p146
      %p252 = pneg %p143
      %s253 = smul.u32 8, %s21
      %p254 = scmp.lt.s32.totalorder %s253, 15
      %s255 = scalar_select %p254, %s253, 15
      %s256 = smul.addr %s255, 8
      %s257 = scalar_lea.vmem %s4, %s256
      %p258 = pneg %p172
      %p259 = pneg %p169
      %s260 = smul.u32 8, %s21
      %p261 = scmp.lt.s32.totalorder %s260, 15
      %s262 = scalar_select %p261, %s260, 15
      %s263 = smul.addr %s262, 8
      %s264 = scalar_lea.vmem %s5, %s263
      %s265 = smul.u32 8, %s21
      %s266 = smul.u32 2, %s22
      %p267 = scmp.lt.s32.totalorder %s265, 15
      %s268 = scalar_select %p267, %s265, 15
      %p269 = scmp.lt.s32.totalorder %s266, 1
      %s270 = scalar_select %p269, %s266, 1
      %s271 = smul.addr %s268, 2
      %s272 = sadd.s32 %s270, %s271
      %s273 = smul.addr %s272, 4
      %s274 = scalar_lea.vmem %s0, %s273
      %s275 = smul.u32 8, %s21
      %s276 = smul.u32 2, %s22
      %s277 = smul.u32 32, %s22
      %p278 = scmp.lt.s32.totalorder %s277, 31
      %s279 = scalar_select %p278, %s277, 31
      %s280 = smul.addr %s279, 4
      %s281 = scalar_lea.vmem %s1, %s280
      %s282 = smul.u32 32, %s22
      %s283 = smul.u32 8, %s21
      %p284 = scmp.lt.s32.totalorder %s283, 15
      %s285 = scalar_select %p284, %s283, 15
      %s286 = smul.addr %s285, 8
      %s287 = scalar_lea.vmem %s4, %s286
      %s288 = smul.u32 8, %s21
      %s289 = smul.u32 8, %s21
      %p290 = scmp.lt.s32.totalorder %s289, 15
      %s291 = scalar_select %p290, %s289, 15
      %s292 = smul.addr %s291, 8
      %s293 = scalar_lea.vmem %s5, %s292
      %s294 = smul.u32 8, %s21
      %p295 = scmp.eq.s32.totalorder %s22, 0
      // Predicated region
      $region37: #{encoder_decoder_forward.2} parent=35 // pred_check
        %p296 = pneg %p295
      $region38: #{encoder_decoder_forward.2} parent=35 // pred_check_branch
        %298 = sbr.rel (%p296) target = $region40
      $region39: #{encoder_decoder_forward.2} parent=35 // pred_region
        %299 = vst [vmem:[#allocation2] sm:$0xff] 0.0
        %300 = vst [vmem:[#allocation2 + $0x8] sm:$0xff] 0.0
        %301 = vst [vmem:[#allocation2 + $0x10] sm:$0xff] 0.0
        %302 = vst [vmem:[#allocation2 + $0x18] sm:$0xff] 0.0
        %303 = vst [vmem:[#allocation2 + $0x20] sm:$0xff] 0.0
        %304 = vst [vmem:[#allocation2 + $0x28] sm:$0xff] 0.0
        %305 = vst [vmem:[#allocation2 + $0x30] sm:$0xff] 0.0
        %306 = vst [vmem:[#allocation2 + $0x38] sm:$0xff] 0.0
      $region40: #{encoder_decoder_forward.2} parent=35 // pred_fallthru
        _
      %v307 = vld [vmem:[#allocation2] sm:$0xff]
      %v308 = vld [vmem:[#allocation2 + $0x8] sm:$0xff]
      %v309 = vld [vmem:[#allocation2 + $0x10] sm:$0xff]
      %v310 = vld [vmem:[#allocation2 + $0x18] sm:$0xff]
      %v311 = vld [vmem:[#allocation2 + $0x20] sm:$0xff]
      %v312 = vld [vmem:[#allocation2 + $0x28] sm:$0xff]
      %v313 = vld [vmem:[#allocation2 + $0x30] sm:$0xff]
      %v314 = vld [vmem:[#allocation2 + $0x38] sm:$0xff]
      %v315 = vld [vmem:[%s274] sm:$0xff]
      %v316 = vld [vmem:[%s274 + $0x8] sm:$0xff]
      %v317 = vld [vmem:[%s274 + $0x10] sm:$0xff]
      %v318 = vld [vmem:[%s274 + $0x18] sm:$0xff]
      %v319 = vld [vmem:[%s274 + $0x20] sm:$0xff]
      %v320 = vld [vmem:[%s274 + $0x28] sm:$0xff]
      %v321 = vld [vmem:[%s274 + $0x30] sm:$0xff]
      %v322 = vld [vmem:[%s274 + $0x38] sm:$0xff]
      %v323 = vld [vmem:[%s281] sm:$0xf]
      %v324 = vld [vmem:[%s281 + $0x4] sm:$0xf]
      %v325 = vld [vmem:[%s281 + $0x8] sm:$0xf]
      %v326 = vld [vmem:[%s281 + $0xc] sm:$0xf]
      %v327 = vld [vmem:[%s281 + $0x10] sm:$0xf]
      %v328 = vld [vmem:[%s281 + $0x14] sm:$0xf]
      %v329 = vld [vmem:[%s281 + $0x18] sm:$0xf]
      %v330 = vld [vmem:[%s281 + $0x1c] sm:$0xf]
      %v331 = vld [vmem:[%s281 + $0x20] sm:$0xf]
      %v332 = vld [vmem:[%s281 + $0x24] sm:$0xf]
      %v333 = vld [vmem:[%s281 + $0x28] sm:$0xf]
      %v334 = vld [vmem:[%s281 + $0x2c] sm:$0xf]
      %v335 = vld [vmem:[%s281 + $0x30] sm:$0xf]
      %v336 = vld [vmem:[%s281 + $0x34] sm:$0xf]
      %v337 = vld [vmem:[%s281 + $0x38] sm:$0xf]
      %v338 = vld [vmem:[%s281 + $0x3c] sm:$0xf]
      %v339 = vld [vmem:[%s281 + $0x40] sm:$0xf]
      %v340 = vld [vmem:[%s281 + $0x44] sm:$0xf]
      %v341 = vld [vmem:[%s281 + $0x48] sm:$0xf]
      %v342 = vld [vmem:[%s281 + $0x4c] sm:$0xf]
      %v343 = vld [vmem:[%s281 + $0x50] sm:$0xf]
      %v344 = vld [vmem:[%s281 + $0x54] sm:$0xf]
      %v345 = vld [vmem:[%s281 + $0x58] sm:$0xf]
      %v346 = vld [vmem:[%s281 + $0x5c] sm:$0xf]
      %v347 = vld [vmem:[%s281 + $0x60] sm:$0xf]
      %v348 = vld [vmem:[%s281 + $0x64] sm:$0xf]
      %v349 = vld [vmem:[%s281 + $0x68] sm:$0xf]
      %v350 = vld [vmem:[%s281 + $0x6c] sm:$0xf]
      %v351 = vld [vmem:[%s281 + $0x70] sm:$0xf]
      %v352 = vld [vmem:[%s281 + $0x74] sm:$0xf]
      %v353 = vld [vmem:[%s281 + $0x78] sm:$0xf]
      %v354 = vld [vmem:[%s281 + $0x7c] sm:$0xf]
      %v363 = vunpack.c.l.b16 %v315
      %v364 = vunpack.c.h.b16 %v315
      %v365 = vunpack.c.l.b16 %v316
      %v366 = vunpack.c.h.b16 %v316
      %v367 = vunpack.c.l.b16 %v317
      %v368 = vunpack.c.h.b16 %v317
      %v369 = vunpack.c.l.b16 %v318
      %v370 = vunpack.c.h.b16 %v318
      %v371 = vunpack.c.l.b16 %v319
      %v372 = vunpack.c.h.b16 %v319
      %v373 = vunpack.c.l.b16 %v320
      %v374 = vunpack.c.h.b16 %v320
      %v375 = vunpack.c.l.b16 %v321
      %v376 = vunpack.c.h.b16 %v321
      %v377 = vunpack.c.l.b16 %v322
      %v378 = vunpack.c.h.b16 %v322
      %v379 = vpack.c.b16 %v365, %v363
      %v380 = vpack.c.b16 %v366, %v364
      %v381 = vpack.c.b16 %v369, %v367
      %v382 = vpack.c.b16 %v370, %v368
      %v383 = vpack.c.b16 %v373, %v371
      %v384 = vpack.c.b16 %v374, %v372
      %v385 = vpack.c.b16 %v377, %v375
      %v386 = vpack.c.b16 %v378, %v376
      %v427 = vunpack.c.l.b16 %v323
      %v428 = vunpack.c.l.b16 %v324
      %v429 = vunpack.c.l.b16 %v325
      %v430 = vunpack.c.l.b16 %v326
      %v431 = vunpack.c.l.b16 %v327
      %v432 = vunpack.c.l.b16 %v328
      %v433 = vunpack.c.l.b16 %v329
      %v434 = vunpack.c.l.b16 %v330
      %v435 = vunpack.c.l.b16 %v331
      %v436 = vunpack.c.l.b16 %v332
      %v437 = vunpack.c.l.b16 %v333
      %v438 = vunpack.c.l.b16 %v334
      %v439 = vunpack.c.l.b16 %v335
      %v440 = vunpack.c.l.b16 %v336
      %v441 = vunpack.c.l.b16 %v337
      %v442 = vunpack.c.l.b16 %v338
      %v443 = vunpack.c.l.b16 %v339
      %v444 = vunpack.c.l.b16 %v340
      %v445 = vunpack.c.l.b16 %v341
      %v446 = vunpack.c.l.b16 %v342
      %v447 = vunpack.c.l.b16 %v343
      %v448 = vunpack.c.l.b16 %v344
      %v449 = vunpack.c.l.b16 %v345
      %v450 = vunpack.c.l.b16 %v346
      %v451 = vunpack.c.l.b16 %v347
      %v452 = vunpack.c.l.b16 %v348
      %v453 = vunpack.c.l.b16 %v349
      %v454 = vunpack.c.l.b16 %v350
      %v455 = vunpack.c.l.b16 %v351
      %v456 = vunpack.c.l.b16 %v352
      %v457 = vunpack.c.l.b16 %v353
      %v458 = vunpack.c.l.b16 %v354
      %v459 = vpack.c.b16 %v428, %v427
      %v460 = vpack.c.b16 %v430, %v429
      %v461 = vpack.c.b16 %v432, %v431
      %v462 = vpack.c.b16 %v434, %v433
      %v463 = vpack.c.b16 %v436, %v435
      %v464 = vpack.c.b16 %v438, %v437
      %v465 = vpack.c.b16 %v440, %v439
      %v466 = vpack.c.b16 %v442, %v441
      %v467 = vpack.c.b16 %v444, %v443
      %v468 = vpack.c.b16 %v446, %v445
      %v469 = vpack.c.b16 %v448, %v447
      %v470 = vpack.c.b16 %v450, %v449
      %v471 = vpack.c.b16 %v452, %v451
      %v472 = vpack.c.b16 %v454, %v453
      %v473 = vpack.c.b16 %v456, %v455
      %v474 = vpack.c.b16 %v458, %v457
      %491 = vmatpush.bf16.msra.mxu0 %v466
      %492 = vmatpush.bf16.msra.mxu0 %v465
      %493 = vmatpush.bf16.msra.mxu0 %v464
      %494 = vmatpush.bf16.msra.mxu0 %v463
      %495 = vmatpush.bf16.msra.mxu0 %v462
      %496 = vmatpush.bf16.msra.mxu0 %v461
      %497 = vmatpush.bf16.msra.mxu0 %v460
      %498 = vmatpush.bf16.msra.mxu0 %v459
      %499 = vmatmul.bf16.gmra.mxu0 %v379
      %v500 = vpop.f32.mrf.mxu0
      %v501 = vadd.f32 0.0, %v500
      %v502 = vpop.f32.mrf.mxu0
      %v503 = vadd.f32 0.0, %v502
      %504 = vmatmul.bf16.gmra.mxu0 %v381
      %v505 = vpop.f32.mrf.mxu0
      %v506 = vadd.f32 0.0, %v505
      %v507 = vpop.f32.mrf.mxu0
      %v508 = vadd.f32 0.0, %v507
      %509 = vmatmul.bf16.gmra.mxu0 %v383
      %v510 = vpop.f32.mrf.mxu0
      %v511 = vadd.f32 0.0, %v510
      %v512 = vpop.f32.mrf.mxu0
      %v513 = vadd.f32 0.0, %v512
      %514 = vmatmul.bf16.gmra.mxu0 %v385
      %v515 = vpop.f32.mrf.mxu0
      %v516 = vadd.f32 0.0, %v515
      %v517 = vpop.f32.mrf.mxu0
      %v518 = vadd.f32 0.0, %v517
      %519 = vdwg.mxu0
      %520 = vmatpush.bf16.msra.mxu0 %v474
      %521 = vmatpush.bf16.msra.mxu0 %v473
      %522 = vmatpush.bf16.msra.mxu0 %v472
      %523 = vmatpush.bf16.msra.mxu0 %v471
      %524 = vmatpush.bf16.msra.mxu0 %v470
      %525 = vmatpush.bf16.msra.mxu0 %v469
      %526 = vmatpush.bf16.msra.mxu0 %v468
      %527 = vmatpush.bf16.msra.mxu0 %v467
      %528 = vmatmul.bf16.gmra.mxu0 %v380
      %v529 = vpop.f32.mrf.mxu0
      %v530 = vadd.f32 %v501, %v529
      %v531 = vpop.f32.mrf.mxu0
      %v532 = vadd.f32 %v503, %v531
      %533 = vmatmul.bf16.gmra.mxu0 %v382
      %v534 = vpop.f32.mrf.mxu0
      %v535 = vadd.f32 %v506, %v534
      %v536 = vpop.f32.mrf.mxu0
      %v537 = vadd.f32 %v508, %v536
      %538 = vmatmul.bf16.gmra.mxu0 %v384
      %v539 = vpop.f32.mrf.mxu0
      %v540 = vadd.f32 %v511, %v539
      %v541 = vpop.f32.mrf.mxu0
      %v542 = vadd.f32 %v513, %v541
      %543 = vmatmul.bf16.gmra.mxu0 %v386
      %v544 = vpop.f32.mrf.mxu0
      %v545 = vadd.f32 %v516, %v544
      %v546 = vpop.f32.mrf.mxu0
      %v547 = vadd.f32 %v518, %v546
      %548 = vdwg.mxu0
      %v549 = vadd.f32 %v307, %v530
      %v550 = vadd.f32 %v308, %v532
      %v551 = vadd.f32 %v309, %v535
      %v552 = vadd.f32 %v310, %v537
      %v553 = vadd.f32 %v311, %v540
      %v554 = vadd.f32 %v312, %v542
      %v555 = vadd.f32 %v313, %v545
      %v556 = vadd.f32 %v314, %v547
      %557 = vst [vmem:[#allocation2] sm:$0xff] %v549
      %558 = vst [vmem:[#allocation2 + $0x8] sm:$0xff] %v550
      %559 = vst [vmem:[#allocation2 + $0x10] sm:$0xff] %v551
      %560 = vst [vmem:[#allocation2 + $0x18] sm:$0xff] %v552
      %561 = vst [vmem:[#allocation2 + $0x20] sm:$0xff] %v553
      %562 = vst [vmem:[#allocation2 + $0x28] sm:$0xff] %v554
      %563 = vst [vmem:[#allocation2 + $0x30] sm:$0xff] %v555
      %564 = vst [vmem:[#allocation2 + $0x38] sm:$0xff] %v556
      // Predicated region
      $region41: #{encoder_decoder_forward.2} parent=35 // pred_check
        %p565 = pneg %p295
      $region42: #{encoder_decoder_forward.2} parent=35 // pred_check_branch
        %567 = sbr.rel (%p565) target = $region44
      $region43: #{encoder_decoder_forward.2} parent=35 // pred_region
        %v568 = vld [vmem:[#allocation2] sm:$0xff]
        %v569 = vld [vmem:[#allocation2 + $0x8] sm:$0xff]
        %v570 = vld [vmem:[#allocation2 + $0x10] sm:$0xff]
        %v571 = vld [vmem:[#allocation2 + $0x18] sm:$0xff]
        %v572 = vld [vmem:[#allocation2 + $0x20] sm:$0xff]
        %v573 = vld [vmem:[#allocation2 + $0x28] sm:$0xff]
        %v574 = vld [vmem:[#allocation2 + $0x30] sm:$0xff]
        %v575 = vld [vmem:[#allocation2 + $0x38] sm:$0xff]
        %v576 = vld [vmem:[%s2] sm:$0x1]
        %v578 = vperm.slane %v576, 0
        %v580 = vadd.f32 %v568, %v578
        %v581 = vadd.f32 %v569, %v578
        %v582 = vadd.f32 %v570, %v578
        %v583 = vadd.f32 %v571, %v578
        %v584 = vadd.f32 %v572, %v578
        %v585 = vadd.f32 %v573, %v578
        %v586 = vadd.f32 %v574, %v578
        %v587 = vadd.f32 %v575, %v578
        %v588 = vsub.f32 0.0, %v580
        %v589 = vsub.f32 0.0, %v581
        %v590 = vsub.f32 0.0, %v582
        %v591 = vsub.f32 0.0, %v583
        %v592 = vsub.f32 0.0, %v584
        %v593 = vsub.f32 0.0, %v585
        %v594 = vsub.f32 0.0, %v586
        %v595 = vsub.f32 0.0, %v587
        %v596 = vmul.f32 %v588, 1.442695
        %v597 = vpow.pop %v596
        %v598 = vmul.f32 %v589, 1.442695
        %v599 = vpow.pop %v598
        %v600 = vmul.f32 %v590, 1.442695
        %v601 = vpow.pop %v600
        %v602 = vmul.f32 %v591, 1.442695
        %v603 = vpow.pop %v602
        %v604 = vmul.f32 %v592, 1.442695
        %v605 = vpow.pop %v604
        %v606 = vmul.f32 %v593, 1.442695
        %v607 = vpow.pop %v606
        %v608 = vmul.f32 %v594, 1.442695
        %v609 = vpow.pop %v608
        %v610 = vmul.f32 %v595, 1.442695
        %v611 = vpow.pop %v610
        %v612 = vadd.f32 %v597, 1.0
        %v613 = vadd.f32 %v599, 1.0
        %v614 = vadd.f32 %v601, 1.0
        %v615 = vadd.f32 %v603, 1.0
        %v616 = vadd.f32 %v605, 1.0
        %v617 = vadd.f32 %v607, 1.0
        %v618 = vadd.f32 %v609, 1.0
        %v619 = vadd.f32 %v611, 1.0
        %v620 = vrcp.pop %v612
        %v621 = vrcp.pop %v613
        %v622 = vrcp.pop %v614
        %v623 = vrcp.pop %v615
        %v624 = vrcp.pop %v616
        %v625 = vrcp.pop %v617
        %v626 = vrcp.pop %v618
        %v627 = vrcp.pop %v619
        %628 = vst [vmem:[%s287] sm:$0xff] %v620
        %629 = vst [vmem:[%s287 + $0x8] sm:$0xff] %v621
        %630 = vst [vmem:[%s287 + $0x10] sm:$0xff] %v622
        %631 = vst [vmem:[%s287 + $0x18] sm:$0xff] %v623
        %632 = vst [vmem:[%s287 + $0x20] sm:$0xff] %v624
        %633 = vst [vmem:[%s287 + $0x28] sm:$0xff] %v625
        %634 = vst [vmem:[%s287 + $0x30] sm:$0xff] %v626
        %635 = vst [vmem:[%s287 + $0x38] sm:$0xff] %v627
        %v636 = vpack.c.bf16 %v621, %v620
        %v637 = vpack.c.bf16 %v623, %v622
        %v638 = vpack.c.bf16 %v625, %v624
        %v639 = vpack.c.bf16 %v627, %v626
        %v640 = vld [vmem:[%s3] sm:$0xf]
        %v641 = vld [vmem:[%s3 + $0x4] sm:$0xf]
        %v642 = vld [vmem:[%s3 + $0x8] sm:$0xf]
        %v643 = vld [vmem:[%s3 + $0xc] sm:$0xf]
        %v644 = vld [vmem:[%s3 + $0x10] sm:$0xf]
        %v645 = vld [vmem:[%s3 + $0x14] sm:$0xf]
        %v646 = vld [vmem:[%s3 + $0x18] sm:$0xf]
        %v647 = vld [vmem:[%s3 + $0x1c] sm:$0xf]
        %v648 = vld [vmem:[%s3 + $0x20] sm:$0xf]
        %v649 = vld [vmem:[%s3 + $0x24] sm:$0xf]
        %v650 = vld [vmem:[%s3 + $0x28] sm:$0xf]
        %v651 = vld [vmem:[%s3 + $0x2c] sm:$0xf]
        %v652 = vld [vmem:[%s3 + $0x30] sm:$0xf]
        %v653 = vld [vmem:[%s3 + $0x34] sm:$0xf]
        %v654 = vld [vmem:[%s3 + $0x38] sm:$0xf]
        %v655 = vld [vmem:[%s3 + $0x3c] sm:$0xf]
        %v672 = vunpack.c.l.b16 %v640
        %v673 = vunpack.c.l.b16 %v641
        %v674 = vunpack.c.l.b16 %v642
        %v675 = vunpack.c.l.b16 %v643
        %v676 = vunpack.c.l.b16 %v644
        %v677 = vunpack.c.l.b16 %v645
        %v678 = vunpack.c.l.b16 %v646
        %v679 = vunpack.c.l.b16 %v647
        %v680 = vunpack.c.l.b16 %v648
        %v681 = vunpack.c.l.b16 %v649
        %v682 = vunpack.c.l.b16 %v650
        %v683 = vunpack.c.l.b16 %v651
        %v684 = vunpack.c.l.b16 %v652
        %v685 = vunpack.c.l.b16 %v653
        %v686 = vunpack.c.l.b16 %v654
        %v687 = vunpack.c.l.b16 %v655
        %v688 = vpack.c.b16 %v673, %v672
        %v689 = vpack.c.b16 %v675, %v674
        %v690 = vpack.c.b16 %v677, %v676
        %v691 = vpack.c.b16 %v679, %v678
        %v692 = vpack.c.b16 %v681, %v680
        %v693 = vpack.c.b16 %v683, %v682
        %v694 = vpack.c.b16 %v685, %v684
        %v695 = vpack.c.b16 %v687, %v686
        %704 = vmatpush.bf16.msra.mxu0 %v695
        %705 = vmatpush.bf16.msra.mxu0 %v694
        %706 = vmatpush.bf16.msra.mxu0 %v693
        %707 = vmatpush.bf16.msra.mxu0 %v692
        %708 = vmatpush.bf16.msra.mxu0 %v691
        %709 = vmatpush.bf16.msra.mxu0 %v690
        %710 = vmatpush.bf16.msra.mxu0 %v689
        %711 = vmatpush.bf16.msra.mxu0 %v688
        %712 = vmatmul.bf16.gmra.mxu0 %v636
        %v713 = vpop.f32.mrf.mxu0
        %v714 = vadd.f32 0.0, %v713
        %v715 = vpop.f32.mrf.mxu0
        %v716 = vadd.f32 0.0, %v715
        %717 = vmatmul.bf16.gmra.mxu0 %v637
        %v718 = vpop.f32.mrf.mxu0
        %v719 = vadd.f32 0.0, %v718
        %v720 = vpop.f32.mrf.mxu0
        %v721 = vadd.f32 0.0, %v720
        %722 = vmatmul.bf16.gmra.mxu0 %v638
        %v723 = vpop.f32.mrf.mxu0
        %v724 = vadd.f32 0.0, %v723
        %v725 = vpop.f32.mrf.mxu0
        %v726 = vadd.f32 0.0, %v725
        %727 = vmatmul.bf16.gmra.mxu0 %v639
        %v728 = vpop.f32.mrf.mxu0
        %v729 = vadd.f32 0.0, %v728
        %v730 = vpop.f32.mrf.mxu0
        %v731 = vadd.f32 0.0, %v730
        %732 = vdwg.mxu0
        %733 = vst [vmem:[%s293] sm:$0xff] %v714
        %734 = vst [vmem:[%s293 + $0x8] sm:$0xff] %v716
        %735 = vst [vmem:[%s293 + $0x10] sm:$0xff] %v719
        %736 = vst [vmem:[%s293 + $0x18] sm:$0xff] %v721
        %737 = vst [vmem:[%s293 + $0x20] sm:$0xff] %v724
        %738 = vst [vmem:[%s293 + $0x28] sm:$0xff] %v726
        %739 = vst [vmem:[%s293 + $0x30] sm:$0xff] %v729
        %740 = vst [vmem:[%s293 + $0x38] sm:$0xff] %v731
      $region44: #{encoder_decoder_forward.2} parent=35 // pred_fallthru
        _
      %s741 = smul.u32 8, %s21
      %p742 = scmp.lt.s32.totalorder %s741, 15
      %s743 = scalar_select %p742, %s741, 15
      %s744 = smul.addr %s743, 8
      %s745 = scalar_lea.vmem %s4, %s744
      %s746 = smul.u32 8, %s21
      %p747 = scmp.lt.s32.totalorder %s746, 15
      %s748 = scalar_select %p747, %s746, 15
      %s749 = smul.addr %s748, 8
      %s750 = scalar_lea.vmem %s5, %s749
      // Predicated region
      $region45: #{encoder_decoder_forward.2} parent=35 // pred_check
        %p751 = pneg %p143
      $region46: #{encoder_decoder_forward.2} parent=35 // pred_check_branch
        %753 = sbr.rel (%p751) target = $region48
      $region47: #{encoder_decoder_forward.2} parent=35 // pred_region
        %s754 = smul.u32 8, %s21
      $region48: #{encoder_decoder_forward.2} parent=35 // pred_fallthru
        _
      // Predicated region
      $region49: #{encoder_decoder_forward.2} parent=35 // pred_check
        %p755 = pneg %p169
      $region50: #{encoder_decoder_forward.2} parent=35 // pred_check_branch
        %757 = sbr.rel (%p755) target = $region52
      $region51: #{encoder_decoder_forward.2} parent=35 // pred_region
        %s758 = smul.u32 8, %s21
      $region52: #{encoder_decoder_forward.2} parent=35 // pred_fallthru
        _
    $region36: #{encoder_decoder_forward.2} parent=5 // pred_fallthru
      _
    %p759 = scmp.le.s32.totalorder 2, %s12
    // Predicated region
    $region53: #{encoder_decoder_forward.2} parent=5 // pred_check
      %p760 = pneg %p759
    $region54: #{encoder_decoder_forward.2} parent=5 // pred_check_branch
      %762 = sbr.rel (%p760) target = $region56
    $region55: #{encoder_decoder_forward.2} parent=5 // pred_region
      %s763 = ssub.s32 %s12, 2
      // Predicated region
      $region57: #{encoder_decoder_forward.2} parent=55 // pred_check
        %p764 = pneg %p149
      $region58: #{encoder_decoder_forward.2} parent=55 // pred_check_branch
        %766 = sbr.rel (%p764) target = $region60
      $region59: #{encoder_decoder_forward.2} parent=55 // pred_region
        %s767 = smul.u32 8, %s23
        %p768 = scmp.lt.s32.totalorder %s767, 15
        %s769 = scalar_select %p768, %s767, 15
        %s770 = smul.addr %s769, 8
        %s771 = scalar_lea.vmem %s4, %s770
      $region60: #{encoder_decoder_forward.2} parent=55 // pred_fallthru
        _
      // Predicated region
      $region61: #{encoder_decoder_forward.2} parent=55 // pred_check
        %p772 = pneg %p175
      $region62: #{encoder_decoder_forward.2} parent=55 // pred_check_branch
        %774 = sbr.rel (%p772) target = $region64
      $region63: #{encoder_decoder_forward.2} parent=55 // pred_region
        %s775 = smul.u32 8, %s23
        %p776 = scmp.lt.s32.totalorder %s775, 15
        %s777 = scalar_select %p776, %s775, 15
        %s778 = smul.addr %s777, 8
        %s779 = scalar_lea.vmem %s5, %s778
      $region64: #{encoder_decoder_forward.2} parent=55 // pred_fallthru
        _
    $region56: #{encoder_decoder_forward.2} parent=5 // pred_fallthru
      _
  $region6: #{encoder_decoder_forward.2} parent=0 // loop_footer
    %s16 = sadd.s32 1, %s12
  $region7: #{encoder_decoder_forward.2} parent=0 // loop_footer_branch
    %11 = sbr.rel target = $region3
  $region8: #{encoder_decoder_forward.2} parent=0 // loop_exit
    _

// kernel: encoder_decoder_forward.3
$region0: #{encoder_decoder_forward.3}
  #allocation0 [shape = 'u32[]', space=smem, size = 0x4, offset = 0x4, fixed_abs, tag = 'smem constant byte address 0x4 - core index']
  #allocation1 [shape = 'u32[72,128]{1,0:T(1,128)}', space=vmem, size = 0x9000, scoped, tag = 'internal scratch']
  #allocation2 [shape = 'f32[4,10,10]{2,1,0:T(8,128)}', space=vmem, size = 0x8000, scoped, tag = 'scratch operand']
  #allocation3 [shape = 'f32[1]{0:T(128)S(6)}', space=smem, size = 0x200, scoped, tag = 'scoped memory for encoder_decoder_forward.3']
  %s0 = inlined_call_operand.vmem [shape: f32[2,64,7,7], index: 0, kind: input, shape index: {}]
  %s1 = inlined_call_operand.<no memory space> [shape: f32[1], index: 1, kind: input, shape index: {}]
  %s2 = inlined_call_operand.vmem [shape: f32[2,4,10,10], index: 2, kind: output, shape index: {}]
  %s3 = sld [smem:[#allocation0]]
  $region41: #{encoder_decoder_forward.3} parent=0
    _
  %s5 = ssub.s32 1, %s3
  %s6 = scalar_select 0, %s5, %s3
  %7 = sst [smem:[#allocation3]] %s1
  loop: start=0, step=1, limit=4
  $region2: #{encoder_decoder_forward.3} parent=0 // loop_pre_header
    _
  $region3: #{encoder_decoder_forward.3} parent=0 // loop_header
    %s9 = sphi 0, %s13
    %p10 = scmp.ge.s32.totalorder %s9, 4
    %s19 = sphi 0, %s21
    %s22 = sphi 0, %s19
    %s23 = sphi 0, %s22
    %s39 = sphi 0, %s23
    %s43 = sphi 0, %s43
    %s45 = sphi 0, %s43
    %s46 = sphi 0, %s45
    %s60 = sphi 0, %s46
    %s66 = sphi 0, %s68
    %s69 = sphi 0, %s66
    %s70 = sphi 0, %s69
    %s86 = sphi 0, %s70
  $region4: #{encoder_decoder_forward.3} parent=0 // loop_header_branch
    %12 = sbr.rel (%p10) target = $region8
  $region5: #{encoder_decoder_forward.3} parent=0 // loop_body
    %s14 = ssub.s32 %s9, 1
    %s15 = ssub.s32 %s9, 2
    %s16 = sadd.s32 %s9, 1
    %s17 = ssub.s32 %s9, %s16
    %p18 = scmp.eq.s32.totalorder %s17, 0
    %s20 = sadd.s32 %s19, 1
    %s21 = scalar_select %p18, %s19, %s20
    %p24 = pneg %p18
    %p25 = scmp.eq.s32.totalorder %s9, 1
    %p26 = por %p24, %p25
    %p27 = scmp.ne.s32.totalorder %s19, %s22
    %p28 = scmp.eq.s32.totalorder %s9, 0
    %p29 = por %p27, %p28
    %p30 = scmp.ne.s32.totalorder %s19, %s22
    %p31 = scmp.eq.s32.totalorder %s14, 1
    %p32 = por %p30, %p31
    %p33 = scmp.ne.s32.totalorder %s22, %s23
    %p34 = scmp.eq.s32.totalorder %s14, 0
    %p35 = por %p33, %p34
    %p36 = scmp.ne.s32.totalorder %s22, %s23
    %p37 = scmp.eq.s32.totalorder %s15, 1
    %p38 = por %p36, %p37
    %p40 = scmp.ne.s32.totalorder %s23, %s39
    %p41 = scmp.eq.s32.totalorder %s15, 0
    %p42 = por %p40, %p41
    %s44 = sadd.s32 %s43, 1
    %p47 = scmp.eq.s32.totalorder %s9, 1
    %p48 = scmp.ne.s32.totalorder %s43, %s45
    %p49 = scmp.eq.s32.totalorder %s9, 0
    %p50 = por %p48, %p49
    %p51 = scmp.ne.s32.totalorder %s43, %s45
    %p52 = scmp.eq.s32.totalorder %s14, 1
    %p53 = por %p51, %p52
    %p54 = scmp.ne.s32.totalorder %s45, %s46
    %p55 = scmp.eq.s32.totalorder %s14, 0
    %p56 = por %p54, %p55
    %p57 = scmp.ne.s32.totalorder %s45, %s46
    %p58 = scmp.eq.s32.totalorder %s15, 1
    %p59 = por %p57, %p58
    %p61 = scmp.ne.s32.totalorder %s46, %s60
    %p62 = scmp.eq.s32.totalorder %s15, 0
    %p63 = por %p61, %p62
    %s64 = ssub.s32 %s9, %s16
    %p65 = scmp.eq.s32.totalorder %s64, 0
    %s67 = sadd.s32 %s66, 1
    %s68 = scalar_select %p65, %s66, %s67
    %p71 = pneg %p65
    %p72 = scmp.eq.s32.totalorder %s9, 1
    %p73 = por %p71, %p72
    %p74 = scmp.ne.s32.totalorder %s66, %s69
    %p75 = scmp.eq.s32.totalorder %s9, 0
    %p76 = por %p74, %p75
    %p77 = scmp.ne.s32.totalorder %s66, %s69
    %p78 = scmp.eq.s32.totalorder %s14, 1
    %p79 = por %p77, %p78
    %p80 = scmp.ne.s32.totalorder %s69, %s70
    %p81 = scmp.eq.s32.totalorder %s14, 0
    %p82 = por %p80, %p81
    %p83 = scmp.ne.s32.totalorder %s69, %s70
    %p84 = scmp.eq.s32.totalorder %s15, 1
    %p85 = por %p83, %p84
    %p87 = scmp.ne.s32.totalorder %s70, %s86
    %p88 = scmp.eq.s32.totalorder %s15, 0
    %p89 = por %p87, %p88
    %p90 = scmp.le.s32.totalorder 1, %s9
    %p91 = scmp.lt.s32.totalorder %s9, 3
    %p92 = pnand %p90, %p91
    %p93 = pneg %p92
    // Predicated region
    $region9: #{encoder_decoder_forward.3} parent=5 // pred_check
      _
    $region10: #{encoder_decoder_forward.3} parent=5 // pred_check_branch
      %95 = sbr.rel (%p92) target = $region12
    $region11: #{encoder_decoder_forward.3} parent=5 // pred_region
      %s96 = ssub.s32 %s9, 1
      // Predicated region
      $region13: #{encoder_decoder_forward.3} parent=11 // pred_check
        %p97 = pneg %p56
      $region14: #{encoder_decoder_forward.3} parent=11 // pred_check_branch
        %99 = sbr.rel (%p97) target = $region16
      $region15: #{encoder_decoder_forward.3} parent=11 // pred_region
        _
      $region16: #{encoder_decoder_forward.3} parent=11 // pred_fallthru
        _
    $region12: #{encoder_decoder_forward.3} parent=5 // pred_fallthru
      _
    %p100 = scmp.lt.s32.totalorder %s9, 2
    // Predicated region
    $region17: #{encoder_decoder_forward.3} parent=5 // pred_check
      %p101 = pneg %p100
    $region18: #{encoder_decoder_forward.3} parent=5 // pred_check_branch
      %103 = sbr.rel (%p101) target = $region20
    $region19: #{encoder_decoder_forward.3} parent=5 // pred_region
      // Predicated region
      $region21: #{encoder_decoder_forward.3} parent=19 // pred_check
        %p104 = pneg %p29
      $region22: #{encoder_decoder_forward.3} parent=19 // pred_check_branch
        %106 = sbr.rel (%p104) target = $region24
      $region23: #{encoder_decoder_forward.3} parent=19 // pred_region
        %p107 = scmp.lt.s32.totalorder %s9, 1
        %s108 = scalar_select %p107, %s9, 1
        %s109 = smul.addr %s108, 64
        %s110 = smul.addr %s109, 8
        %s111 = scalar_lea.vmem %s0, %s110
      $region24: #{encoder_decoder_forward.3} parent=19 // pred_fallthru
        _
    $region20: #{encoder_decoder_forward.3} parent=5 // pred_fallthru
      _
    %p112 = scmp.le.s32.totalorder 1, %s9
    %p113 = scmp.lt.s32.totalorder %s9, 3
    %p114 = pnand %p112, %p113
    %p115 = pneg %p114
    // Predicated region
    $region25: #{encoder_decoder_forward.3} parent=5 // pred_check
      _
    $region26: #{encoder_decoder_forward.3} parent=5 // pred_check_branch
      %117 = sbr.rel (%p114) target = $region28
    $region27: #{encoder_decoder_forward.3} parent=5 // pred_region
      %s118 = ssub.s32 %s9, 1
      %p119 = scmp.lt.s32.totalorder %s14, 1
      %s120 = scalar_select %p119, %s14, 1
      %s121 = smul.addr %s120, 64
      %s122 = smul.addr %s121, 8
      %s123 = scalar_lea.vmem %s0, %s122
      %p124 = pneg %p35
      %p125 = pneg %p32
      %p126 = pneg %p56
      %p127 = pneg %p53
      %p128 = pneg %p82
      %p129 = pneg %p79
      %p130 = scmp.lt.s32.totalorder %s14, 1
      %s131 = scalar_select %p130, %s14, 1
      %s132 = smul.addr %s131, 8
      %s133 = smul.addr %s132, 8
      %s134 = scalar_lea.vmem %s2, %s133
      %p135 = scmp.lt.s32.totalorder %s14, 1
      %s136 = scalar_select %p135, %s14, 1
      %s137 = smul.addr %s136, 64
      %s138 = smul.addr %s137, 8
      %s139 = scalar_lea.vmem %s0, %s138
      %p140 = scmp.lt.s32.totalorder %s14, 1
      %s141 = scalar_select %p140, %s14, 1
      %s142 = smul.addr %s141, 8
      %s143 = smul.addr %s142, 8
      %s144 = scalar_lea.vmem %s2, %s143
      %vm145 = vcmask 80896
      %146 = vst.msk [vmem:[#allocation2] sm:$0xff] %vm145, 0.0
      %vm147 = vcmask 74752
      %148 = vst.msk [vmem:[#allocation2 + $0x8] sm:$0x3] %vm147, 0.0
      %149 = vst.msk [vmem:[#allocation2 + $0x10] sm:$0xff] %vm145, 0.0
      %150 = vst.msk [vmem:[#allocation2 + $0x18] sm:$0x3] %vm147, 0.0
      %151 = vst.msk [vmem:[#allocation2 + $0x20] sm:$0xff] %vm145, 0.0
      %152 = vst.msk [vmem:[#allocation2 + $0x28] sm:$0x3] %vm147, 0.0
      %153 = vst.msk [vmem:[#allocation2 + $0x30] sm:$0xff] %vm145, 0.0
      %154 = vst.msk [vmem:[#allocation2 + $0x38] sm:$0x3] %vm147, 0.0
      %v155 = vld [vmem:[%s139] sm:$0x7f]
      %v156 = vld [vmem:[#allocation2] sm:$0x7f]
      %v157 = vadd.f32 %v156, %v155
      %vm158 = vcmask 55296
      %159 = vst.msk [vmem:[#allocation2] sm:$0x7f] %vm158, %v157
      %s160 = scalar_lea.vmem %s139, 8
      %v161 = vld [vmem:[%s160] sm:$0x7f]
      %s162 = scalar_lea.vmem [#allocation2], 16
      %v163 = vld [vmem:[%s162] sm:$0x7f]
      %v164 = vadd.f32 %v163, %v161
      %165 = vst.msk [vmem:[%s162] sm:$0x7f] %vm158, %v164
      %s166 = scalar_lea.vmem %s139, 16
      %v167 = vld [vmem:[%s166] sm:$0x7f]
      %v168 = vld [vmem:[#allocation2] sm:$0x7f]
      %170 = vrot.lane.b32.xlu0 %v167, 1
      %v171 = vpop.permute.xlu0 %170
      %v173 = vadd.f32 %v168, %v171
      %vm174 = vcmask 63496
      %175 = vst.msk [vmem:[#allocation2] sm:$0x7f] %vm174, %v173
      %s176 = scalar_lea.vmem %s139, 24
      %v177 = vld [vmem:[%s176] sm:$0x7f]
      %v178 = vld [vmem:[%s162] sm:$0x7f]
      %180 = vrot.lane.b32.xlu0 %v177, 1
      %v181 = vpop.permute.xlu0 %180
      %v183 = vadd.f32 %v178, %v181
      %184 = vst.msk [vmem:[%s162] sm:$0x7f] %vm174, %v183
      %s185 = scalar_lea.vmem %s139, 32
      %v186 = vld [vmem:[%s185] sm:$0x7f]
      %v187 = vld [vmem:[#allocation2] sm:$0x7f]
      %189 = vrot.lane.b32.xlu0 %v186, 2
      %v190 = vpop.permute.xlu0 %189
      %v192 = vadd.f32 %v187, %v190
      %vm193 = vcmask 71696
      %194 = vst.msk [vmem:[#allocation2] sm:$0x7f] %vm193, %v192
      %s195 = scalar_lea.vmem %s139, 40
      %v196 = vld [vmem:[%s195] sm:$0x7f]
      %v197 = vld [vmem:[%s162] sm:$0x7f]
      %199 = vrot.lane.b32.xlu0 %v196, 2
      %v200 = vpop.permute.xlu0 %199
      %v202 = vadd.f32 %v197, %v200
      %203 = vst.msk [vmem:[%s162] sm:$0x7f] %vm193, %v202
      %s204 = scalar_lea.vmem %s139, 48
      %v205 = vld [vmem:[%s204] sm:$0x7f]
      %v206 = vld [vmem:[#allocation2] sm:$0x7f]
      %208 = vrot.lane.b32.xlu0 %v205, 3
      %v209 = vpop.permute.xlu0 %208
      %v211 = vadd.f32 %v206, %v209
      %vm212 = vcmask 79896
      %213 = vst.msk [vmem:[#allocation2] sm:$0x7f] %vm212, %v211
      %s214 = scalar_lea.vmem %s139, 56
      %v215 = vld [vmem:[%s214] sm:$0x7f]
      %v216 = vld [vmem:[%s162] sm:$0x7f]
      %218 = vrot.lane.b32.xlu0 %v215, 3
      %v219 = vpop.permute.xlu0 %218
      %v221 = vadd.f32 %v216, %v219
      %222 = vst.msk [vmem:[%s162] sm:$0x7f] %vm212, %v221
      %s223 = scalar_lea.vmem %s139, 64
      %v224 = vld [vmem:[%s223] sm:$0x7f]
      %s225 = scalar_lea.vmem [#allocation2], 32
      %v226 = vld [vmem:[%s225] sm:$0x7f]
      %v227 = vadd.f32 %v226, %v224
      %228 = vst.msk [vmem:[%s225] sm:$0x7f] %vm158, %v227
      %s229 = scalar_lea.vmem %s139, 72
      %v230 = vld [vmem:[%s229] sm:$0x7f]
      %s231 = scalar_lea.vmem [#allocation2], 48
      %v232 = vld [vmem:[%s231] sm:$0x7f]
      %v233 = vadd.f32 %v232, %v230
      %234 = vst.msk [vmem:[%s231] sm:$0x7f] %vm158, %v233
      %s235 = scalar_lea.vmem %s139, 80
      %v236 = vld [vmem:[%s235] sm:$0x7f]
      %v237 = vld [vmem:[%s225] sm:$0x7f]
      %239 = vrot.lane.b32.xlu0 %v236, 1
      %v240 = vpop.permute.xlu0 %239
      %v242 = vadd.f32 %v237, %v240
      %243 = vst.msk [vmem:[%s225] sm:$0x7f] %vm174, %v242
      %s244 = scalar_lea.vmem %s139, 88
      %v245 = vld [vmem:[%s244] sm:$0x7f]
      %v246 = vld [vmem:[%s231] sm:$0x7f]
      %248 = vrot.lane.b32.xlu0 %v245, 1
      %v249 = vpop.permute.xlu0 %248
      %v251 = vadd.f32 %v246, %v249
      %252 = vst.msk [vmem:[%s231] sm:$0x7f] %vm174, %v251
      %s253 = scalar_lea.vmem %s139, 96
      %v254 = vld [vmem:[%s253] sm:$0x7f]
      %v255 = vld [vmem:[%s225] sm:$0x7f]
      %257 = vrot.lane.b32.xlu0 %v254, 2
      %v258 = vpop.permute.xlu0 %257
      %v260 = vadd.f32 %v255, %v258
      %261 = vst.msk [vmem:[%s225] sm:$0x7f] %vm193, %v260
      %s262 = scalar_lea.vmem %s139, 104
      %v263 = vld [vmem:[%s262] sm:$0x7f]
      %v264 = vld [vmem:[%s231] sm:$0x7f]
      %266 = vrot.lane.b32.xlu0 %v263, 2
      %v267 = vpop.permute.xlu0 %266
      %v269 = vadd.f32 %v264, %v267
      %270 = vst.msk [vmem:[%s231] sm:$0x7f] %vm193, %v269
      %s271 = scalar_lea.vmem %s139, 112
      %v272 = vld [vmem:[%s271] sm:$0x7f]
      %v273 = vld [vmem:[%s225] sm:$0x7f]
      %275 = vrot.lane.b32.xlu0 %v272, 3
      %v276 = vpop.permute.xlu0 %275
      %v278 = vadd.f32 %v273, %v276
      %279 = vst.msk [vmem:[%s225] sm:$0x7f] %vm212, %v278
      %s280 = scalar_lea.vmem %s139, 120
      %v281 = vld [vmem:[%s280] sm:$0x7f]
      %v282 = vld [vmem:[%s231] sm:$0x7f]
      %284 = vrot.lane.b32.xlu0 %v281, 3
      %v285 = vpop.permute.xlu0 %284
      %v287 = vadd.f32 %v282, %v285
      %288 = vst.msk [vmem:[%s231] sm:$0x7f] %vm212, %v287
      %s289 = scalar_lea.vmem %s139, 128
      %v290 = vld [vmem:[%s289] sm:$0x7f]
      %v291 = vld [vmem:[#allocation2 + $0x1] sm:$0x7f]
      %v292 = vadd.f32 %v291, %v290
      %293 = vst.msk [vmem:[#allocation2 + $0x1] sm:$0x7f] %vm158, %v292
      %s294 = scalar_lea.vmem %s139, 136
      %v295 = vld [vmem:[%s294] sm:$0x7f]
      %v296 = vld [vmem:[%s162 + $0x1] sm:$0x7f]
      %v297 = vadd.f32 %v296, %v295
      %298 = vst.msk [vmem:[%s162 + $0x1] sm:$0x7f] %vm158, %v297
      %s299 = scalar_lea.vmem %s139, 144
      %v300 = vld [vmem:[%s299] sm:$0x7f]
      %v301 = vld [vmem:[#allocation2 + $0x1] sm:$0x7f]
      %303 = vrot.lane.b32.xlu0 %v300, 1
      %v304 = vpop.permute.xlu0 %303
      %v306 = vadd.f32 %v301, %v304
      %307 = vst.msk [vmem:[#allocation2 + $0x1] sm:$0x7f] %vm174, %v306
      %s308 = scalar_lea.vmem %s139, 152
      %v309 = vld [vmem:[%s308] sm:$0x7f]
      %v310 = vld [vmem:[%s162 + $0x1] sm:$0x7f]
      %312 = vrot.lane.b32.xlu0 %v309, 1
      %v313 = vpop.permute.xlu0 %312
      %v315 = vadd.f32 %v310, %v313
      %316 = vst.msk [vmem:[%s162 + $0x1] sm:$0x7f] %vm174, %v315
      %s317 = scalar_lea.vmem %s139, 160
      %v318 = vld [vmem:[%s317] sm:$0x7f]
      %v319 = vld [vmem:[#allocation2 + $0x1] sm:$0x7f]
      %321 = vrot.lane.b32.xlu0 %v318, 2
      %v322 = vpop.permute.xlu0 %321
      %v324 = vadd.f32 %v319, %v322
      %325 = vst.msk [vmem:[#allocation2 + $0x1] sm:$0x7f] %vm193, %v324
      %s326 = scalar_lea.vmem %s139, 168
      %v327 = vld [vmem:[%s326] sm:$0x7f]
      %v328 = vld [vmem:[%s162 + $0x1] sm:$0x7f]
      %330 = vrot.lane.b32.xlu0 %v327, 2
      %v331 = vpop.permute.xlu0 %330
      %v333 = vadd.f32 %v328, %v331
      %334 = vst.msk [vmem:[%s162 + $0x1] sm:$0x7f] %vm193, %v333
      %s335 = scalar_lea.vmem %s139, 176
      %v336 = vld [vmem:[%s335] sm:$0x7f]
      %v337 = vld [vmem:[#allocation2 + $0x1] sm:$0x7f]
      %339 = vrot.lane.b32.xlu0 %v336, 3
      %v340 = vpop.permute.xlu0 %339
      %v342 = vadd.f32 %v337, %v340
      %343 = vst.msk [vmem:[#allocation2 + $0x1] sm:$0x7f] %vm212, %v342
      %s344 = scalar_lea.vmem %s139, 184
      %v345 = vld [vmem:[%s344] sm:$0x7f]
      %v346 = vld [vmem:[%s162 + $0x1] sm:$0x7f]
      %348 = vrot.lane.b32.xlu0 %v345, 3
      %v349 = vpop.permute.xlu0 %348
      %v351 = vadd.f32 %v346, %v349
      %352 = vst.msk [vmem:[%s162 + $0x1] sm:$0x7f] %vm212, %v351
      %s353 = scalar_lea.vmem %s139, 192
      %v354 = vld [vmem:[%s353] sm:$0x7f]
      %v355 = vld [vmem:[%s225 + $0x1] sm:$0x7f]
      %v356 = vadd.f32 %v355, %v354
      %357 = vst.msk [vmem:[%s225 + $0x1] sm:$0x7f] %vm158, %v356
      %s358 = scalar_lea.vmem %s139, 200
      %v359 = vld [vmem:[%s358] sm:$0x7f]
      %v360 = vld [vmem:[%s231 + $0x1] sm:$0x7f]
      %v361 = vadd.f32 %v360, %v359
      %362 = vst.msk [vmem:[%s231 + $0x1] sm:$0x7f] %vm158, %v361
      %s363 = scalar_lea.vmem %s139, 208
      %v364 = vld [vmem:[%s363] sm:$0x7f]
      %v365 = vld [vmem:[%s225 + $0x1] sm:$0x7f]
      %367 = vrot.lane.b32.xlu0 %v364, 1
      %v368 = vpop.permute.xlu0 %367
      %v370 = vadd.f32 %v365, %v368
      %371 = vst.msk [vmem:[%s225 + $0x1] sm:$0x7f] %vm174, %v370
      %s372 = scalar_lea.vmem %s139, 216
      %v373 = vld [vmem:[%s372] sm:$0x7f]
      %v374 = vld [vmem:[%s231 + $0x1] sm:$0x7f]
      %376 = vrot.lane.b32.xlu0 %v373, 1
      %v377 = vpop.permute.xlu0 %376
      %v379 = vadd.f32 %v374, %v377
      %380 = vst.msk [vmem:[%s231 + $0x1] sm:$0x7f] %vm174, %v379
      %s381 = scalar_lea.vmem %s139, 224
      %v382 = vld [vmem:[%s381] sm:$0x7f]
      %v383 = vld [vmem:[%s225 + $0x1] sm:$0x7f]
      %385 = vrot.lane.b32.xlu0 %v382, 2
      %v386 = vpop.permute.xlu0 %385
      %v388 = vadd.f32 %v383, %v386
      %389 = vst.msk [vmem:[%s225 + $0x1] sm:$0x7f] %vm193, %v388
      %s390 = scalar_lea.vmem %s139, 232
      %v391 = vld [vmem:[%s390] sm:$0x7f]
      %v392 = vld [vmem:[%s231 + $0x1] sm:$0x7f]
      %394 = vrot.lane.b32.xlu0 %v391, 2
      %v395 = vpop.permute.xlu0 %394
      %v397 = vadd.f32 %v392, %v395
      %398 = vst.msk [vmem:[%s231 + $0x1] sm:$0x7f] %vm193, %v397
      %s399 = scalar_lea.vmem %s139, 240
      %v400 = vld [vmem:[%s399] sm:$0x7f]
      %v401 = vld [vmem:[%s225 + $0x1] sm:$0x7f]
      %403 = vrot.lane.b32.xlu0 %v400, 3
      %v404 = vpop.permute.xlu0 %403
      %v406 = vadd.f32 %v401, %v404
      %407 = vst.msk [vmem:[%s225 + $0x1] sm:$0x7f] %vm212, %v406
      %s408 = scalar_lea.vmem %s139, 248
      %v409 = vld [vmem:[%s408] sm:$0x7f]
      %v410 = vld [vmem:[%s231 + $0x1] sm:$0x7f]
      %412 = vrot.lane.b32.xlu0 %v409, 3
      %v413 = vpop.permute.xlu0 %412
      %v415 = vadd.f32 %v410, %v413
      %416 = vst.msk [vmem:[%s231 + $0x1] sm:$0x7f] %vm212, %v415
      %s417 = scalar_lea.vmem %s139, 256
      %v418 = vld [vmem:[%s417] sm:$0x7f]
      %v419 = vld [vmem:[#allocation2 + $0x2] sm:$0x7f]
      %v420 = vadd.f32 %v419, %v418
      %421 = vst.msk [vmem:[#allocation2 + $0x2] sm:$0x7f] %vm158, %v420
      %s422 = scalar_lea.vmem %s139, 264
      %v423 = vld [vmem:[%s422] sm:$0x7f]
      %v424 = vld [vmem:[%s162 + $0x2] sm:$0x7f]
      %v425 = vadd.f32 %v424, %v423
      %426 = vst.msk [vmem:[%s162 + $0x2] sm:$0x7f] %vm158, %v425
      %s427 = scalar_lea.vmem %s139, 272
      %v428 = vld [vmem:[%s427] sm:$0x7f]
      %v429 = vld [vmem:[#allocation2 + $0x2] sm:$0x7f]
      %431 = vrot.lane.b32.xlu0 %v428, 1
      %v432 = vpop.permute.xlu0 %431
      %v434 = vadd.f32 %v429, %v432
      %435 = vst.msk [vmem:[#allocation2 + $0x2] sm:$0x7f] %vm174, %v434
      %s436 = scalar_lea.vmem %s139, 280
      %v437 = vld [vmem:[%s436] sm:$0x7f]
      %v438 = vld [vmem:[%s162 + $0x2] sm:$0x7f]
      %440 = vrot.lane.b32.xlu0 %v437, 1
      %v441 = vpop.permute.xlu0 %440
      %v443 = vadd.f32 %v438, %v441
      %444 = vst.msk [vmem:[%s162 + $0x2] sm:$0x7f] %vm174, %v443
      %s445 = scalar_lea.vmem %s139, 288
      %v446 = vld [vmem:[%s445] sm:$0x7f]
      %v447 = vld [vmem:[#allocation2 + $0x2] sm:$0x7f]
      %449 = vrot.lane.b32.xlu0 %v446, 2
      %v450 = vpop.permute.xlu0 %449
      %v452 = vadd.f32 %v447, %v450
      %453 = vst.msk [vmem:[#allocation2 + $0x2] sm:$0x7f] %vm193, %v452
      %s454 = scalar_lea.vmem %s139, 296
      %v455 = vld [vmem:[%s454] sm:$0x7f]
      %v456 = vld [vmem:[%s162 + $0x2] sm:$0x7f]
      %458 = vrot.lane.b32.xlu0 %v455, 2
      %v459 = vpop.permute.xlu0 %458
      %v461 = vadd.f32 %v456, %v459
      %462 = vst.msk [vmem:[%s162 + $0x2] sm:$0x7f] %vm193, %v461
      %s463 = scalar_lea.vmem %s139, 304
      %v464 = vld [vmem:[%s463] sm:$0x7f]
      %v465 = vld [vmem:[#allocation2 + $0x2] sm:$0x7f]
      %467 = vrot.lane.b32.xlu0 %v464, 3
      %v468 = vpop.permute.xlu0 %467
      %v470 = vadd.f32 %v465, %v468
      %471 = vst.msk [vmem:[#allocation2 + $0x2] sm:$0x7f] %vm212, %v470
      %s472 = scalar_lea.vmem %s139, 312
      %v473 = vld [vmem:[%s472] sm:$0x7f]
      %v474 = vld [vmem:[%s162 + $0x2] sm:$0x7f]
      %476 = vrot.lane.b32.xlu0 %v473, 3
      %v477 = vpop.permute.xlu0 %476
      %v479 = vadd.f32 %v474, %v477
      %480 = vst.msk [vmem:[%s162 + $0x2] sm:$0x7f] %vm212, %v479
      %s481 = scalar_lea.vmem %s139, 320
      %v482 = vld [vmem:[%s481] sm:$0x7f]
      %v483 = vld [vmem:[%s225 + $0x2] sm:$0x7f]
      %v484 = vadd.f32 %v483, %v482
      %485 = vst.msk [vmem:[%s225 + $0x2] sm:$0x7f] %vm158, %v484
      %s486 = scalar_lea.vmem %s139, 328
      %v487 = vld [vmem:[%s486] sm:$0x7f]
      %v488 = vld [vmem:[%s231 + $0x2] sm:$0x7f]
      %v489 = vadd.f32 %v488, %v487
      %490 = vst.msk [vmem:[%s231 + $0x2] sm:$0x7f] %vm158, %v489
      %s491 = scalar_lea.vmem %s139, 336
      %v492 = vld [vmem:[%s491] sm:$0x7f]
      %v493 = vld [vmem:[%s225 + $0x2] sm:$0x7f]
      %495 = vrot.lane.b32.xlu0 %v492, 1
      %v496 = vpop.permute.xlu0 %495
      %v498 = vadd.f32 %v493, %v496
      %499 = vst.msk [vmem:[%s225 + $0x2] sm:$0x7f] %vm174, %v498
      %s500 = scalar_lea.vmem %s139, 344
      %v501 = vld [vmem:[%s500] sm:$0x7f]
      %v502 = vld [vmem:[%s231 + $0x2] sm:$0x7f]
      %504 = vrot.lane.b32.xlu0 %v501, 1
      %v505 = vpop.permute.xlu0 %504
      %v507 = vadd.f32 %v502, %v505
      %508 = vst.msk [vmem:[%s231 + $0x2] sm:$0x7f] %vm174, %v507
      %s509 = scalar_lea.vmem %s139, 352
      %v510 = vld [vmem:[%s509] sm:$0x7f]
      %v511 = vld [vmem:[%s225 + $0x2] sm:$0x7f]
      %513 = vrot.lane.b32.xlu0 %v510, 2
      %v514 = vpop.permute.xlu0 %513
      %v516 = vadd.f32 %v511, %v514
      %517 = vst.msk [vmem:[%s225 + $0x2] sm:$0x7f] %vm193, %v516
      %s518 = scalar_lea.vmem %s139, 360
      %v519 = vld [vmem:[%s518] sm:$0x7f]
      %v520 = vld [vmem:[%s231 + $0x2] sm:$0x7f]
      %522 = vrot.lane.b32.xlu0 %v519, 2
      %v523 = vpop.permute.xlu0 %522
      %v525 = vadd.f32 %v520, %v523
      %526 = vst.msk [vmem:[%s231 + $0x2] sm:$0x7f] %vm193, %v525
      %s527 = scalar_lea.vmem %s139, 368
      %v528 = vld [vmem:[%s527] sm:$0x7f]
      %v529 = vld [vmem:[%s225 + $0x2] sm:$0x7f]
      %531 = vrot.lane.b32.xlu0 %v528, 3
      %v532 = vpop.permute.xlu0 %531
      %v534 = vadd.f32 %v529, %v532
      %535 = vst.msk [vmem:[%s225 + $0x2] sm:$0x7f] %vm212, %v534
      %s536 = scalar_lea.vmem %s139, 376
      %v537 = vld [vmem:[%s536] sm:$0x7f]
      %v538 = vld [vmem:[%s231 + $0x2] sm:$0x7f]
      %540 = vrot.lane.b32.xlu0 %v537, 3
      %v541 = vpop.permute.xlu0 %540
      %v543 = vadd.f32 %v538, %v541
      %544 = vst.msk [vmem:[%s231 + $0x2] sm:$0x7f] %vm212, %v543
      %s545 = scalar_lea.vmem %s139, 384
      %v546 = vld [vmem:[%s545] sm:$0x7f]
      %v547 = vld [vmem:[#allocation2 + $0x3] sm:$0x7f]
      %v548 = vadd.f32 %v547, %v546
      %549 = vst.msk [vmem:[#allocation2 + $0x3] sm:$0x7f] %vm158, %v548
      %s550 = scalar_lea.vmem %s139, 392
      %v551 = vld [vmem:[%s550] sm:$0x7f]
      %v552 = vld [vmem:[%s162 + $0x3] sm:$0x7f]
      %v553 = vadd.f32 %v552, %v551
      %554 = vst.msk [vmem:[%s162 + $0x3] sm:$0x7f] %vm158, %v553
      %s555 = scalar_lea.vmem %s139, 400
      %v556 = vld [vmem:[%s555] sm:$0x7f]
      %v557 = vld [vmem:[#allocation2 + $0x3] sm:$0x7f]
      %559 = vrot.lane.b32.xlu0 %v556, 1
      %v560 = vpop.permute.xlu0 %559
      %v562 = vadd.f32 %v557, %v560
      %563 = vst.msk [vmem:[#allocation2 + $0x3] sm:$0x7f] %vm174, %v562
      %s564 = scalar_lea.vmem %s139, 408
      %v565 = vld [vmem:[%s564] sm:$0x7f]
      %v566 = vld [vmem:[%s162 + $0x3] sm:$0x7f]
      %568 = vrot.lane.b32.xlu0 %v565, 1
      %v569 = vpop.permute.xlu0 %568
      %v571 = vadd.f32 %v566, %v569
      %572 = vst.msk [vmem:[%s162 + $0x3] sm:$0x7f] %vm174, %v571
      %s573 = scalar_lea.vmem %s139, 416
      %v574 = vld [vmem:[%s573] sm:$0x7f]
      %v575 = vld [vmem:[#allocation2 + $0x3] sm:$0x7f]
      %577 = vrot.lane.b32.xlu0 %v574, 2
      %v578 = vpop.permute.xlu0 %577
      %v580 = vadd.f32 %v575, %v578
      %581 = vst.msk [vmem:[#allocation2 + $0x3] sm:$0x7f] %vm193, %v580
      %s582 = scalar_lea.vmem %s139, 424
      %v583 = vld [vmem:[%s582] sm:$0x7f]
      %v584 = vld [vmem:[%s162 + $0x3] sm:$0x7f]
      %586 = vrot.lane.b32.xlu0 %v583, 2
      %v587 = vpop.permute.xlu0 %586
      %v589 = vadd.f32 %v584, %v587
      %590 = vst.msk [vmem:[%s162 + $0x3] sm:$0x7f] %vm193, %v589
      %s591 = scalar_lea.vmem %s139, 432
      %v592 = vld [vmem:[%s591] sm:$0x7f]
      %v593 = vld [vmem:[#allocation2 + $0x3] sm:$0x7f]
      %595 = vrot.lane.b32.xlu0 %v592, 3
      %v596 = vpop.permute.xlu0 %595
      %v598 = vadd.f32 %v593, %v596
      %599 = vst.msk [vmem:[#allocation2 + $0x3] sm:$0x7f] %vm212, %v598
      %s600 = scalar_lea.vmem %s139, 440
      %v601 = vld [vmem:[%s600] sm:$0x7f]
      %v602 = vld [vmem:[%s162 + $0x3] sm:$0x7f]
      %604 = vrot.lane.b32.xlu0 %v601, 3
      %v605 = vpop.permute.xlu0 %604
      %v607 = vadd.f32 %v602, %v605
      %608 = vst.msk [vmem:[%s162 + $0x3] sm:$0x7f] %vm212, %v607
      %s609 = scalar_lea.vmem %s139, 448
      %v610 = vld [vmem:[%s609] sm:$0x7f]
      %v611 = vld [vmem:[%s225 + $0x3] sm:$0x7f]
      %v612 = vadd.f32 %v611, %v610
      %613 = vst.msk [vmem:[%s225 + $0x3] sm:$0x7f] %vm158, %v612
      %s614 = scalar_lea.vmem %s139, 456
      %v615 = vld [vmem:[%s614] sm:$0x7f]
      %v616 = vld [vmem:[%s231 + $0x3] sm:$0x7f]
      %v617 = vadd.f32 %v616, %v615
      %618 = vst.msk [vmem:[%s231 + $0x3] sm:$0x7f] %vm158, %v617
      %s619 = scalar_lea.vmem %s139, 464
      %v620 = vld [vmem:[%s619] sm:$0x7f]
      %v621 = vld [vmem:[%s225 + $0x3] sm:$0x7f]
      %623 = vrot.lane.b32.xlu0 %v620, 1
      %v624 = vpop.permute.xlu0 %623
      %v626 = vadd.f32 %v621, %v624
      %627 = vst.msk [vmem:[%s225 + $0x3] sm:$0x7f] %vm174, %v626
      %s628 = scalar_lea.vmem %s139, 472
      %v629 = vld [vmem:[%s628] sm:$0x7f]
      %v630 = vld [vmem:[%s231 + $0x3] sm:$0x7f]
      %632 = vrot.lane.b32.xlu0 %v629, 1
      %v633 = vpop.permute.xlu0 %632
      %v635 = vadd.f32 %v630, %v633
      %636 = vst.msk [vmem:[%s231 + $0x3] sm:$0x7f] %vm174, %v635
      %s637 = scalar_lea.vmem %s139, 480
      %v638 = vld [vmem:[%s637] sm:$0x7f]
      %v639 = vld [vmem:[%s225 + $0x3] sm:$0x7f]
      %641 = vrot.lane.b32.xlu0 %v638, 2
      %v642 = vpop.permute.xlu0 %641
      %v644 = vadd.f32 %v639, %v642
      %645 = vst.msk [vmem:[%s225 + $0x3] sm:$0x7f] %vm193, %v644
      %s646 = scalar_lea.vmem %s139, 488
      %v647 = vld [vmem:[%s646] sm:$0x7f]
      %v648 = vld [vmem:[%s231 + $0x3] sm:$0x7f]
      %650 = vrot.lane.b32.xlu0 %v647, 2
      %v651 = vpop.permute.xlu0 %650
      %v653 = vadd.f32 %v648, %v651
      %654 = vst.msk [vmem:[%s231 + $0x3] sm:$0x7f] %vm193, %v653
      %s655 = scalar_lea.vmem %s139, 496
      %v656 = vld [vmem:[%s655] sm:$0x7f]
      %v657 = vld [vmem:[%s225 + $0x3] sm:$0x7f]
      %659 = vrot.lane.b32.xlu0 %v656, 3
      %v660 = vpop.permute.xlu0 %659
      %v662 = vadd.f32 %v657, %v660
      %663 = vst.msk [vmem:[%s225 + $0x3] sm:$0x7f] %vm212, %v662
      %s664 = scalar_lea.vmem %s139, 504
      %v665 = vld [vmem:[%s664] sm:$0x7f]
      %v666 = vld [vmem:[%s231 + $0x3] sm:$0x7f]
      %668 = vrot.lane.b32.xlu0 %v665, 3
      %v669 = vpop.permute.xlu0 %668
      %v671 = vadd.f32 %v666, %v669
      %672 = vst.msk [vmem:[%s231 + $0x3] sm:$0x7f] %vm212, %v671
      %v673 = vld [vmem:[#allocation2] sm:$0xff]
      %v674 = vld [vmem:[#allocation2 + $0x8] sm:$0x3]
      %v675 = vld [vmem:[#allocation2 + $0x10] sm:$0xff]
      %v676 = vld [vmem:[#allocation2 + $0x18] sm:$0x3]
      %v677 = vld [vmem:[#allocation2 + $0x20] sm:$0xff]
      %v678 = vld [vmem:[#allocation2 + $0x28] sm:$0x3]
      %v679 = vld [vmem:[#allocation2 + $0x30] sm:$0xff]
      %v680 = vld [vmem:[#allocation2 + $0x38] sm:$0x3]
      %s681 = sld [smem:[#allocation3]]
      %v682 = vstv %s681
      %v683 = vadd.f32 %v673, %v682
      %v684 = vadd.f32 %v674, %v682
      %v685 = vadd.f32 %v675, %v682
      %v686 = vadd.f32 %v676, %v682
      %v687 = vadd.f32 %v677, %v682
      %v688 = vadd.f32 %v678, %v682
      %v689 = vadd.f32 %v679, %v682
      %v690 = vadd.f32 %v680, %v682
      %v691 = vsub.f32 0.0, %v683
      %v692 = vsub.f32 0.0, %v684
      %v693 = vsub.f32 0.0, %v685
      %v694 = vsub.f32 0.0, %v686
      %v695 = vsub.f32 0.0, %v687
      %v696 = vsub.f32 0.0, %v688
      %v697 = vsub.f32 0.0, %v689
      %v698 = vsub.f32 0.0, %v690
      %v699 = vmul.f32 %v691, 1.442695
      %v700 = vpow.pop %v699
      %v701 = vmul.f32 %v692, 1.442695
      %v702 = vpow.pop %v701
      %v703 = vmul.f32 %v693, 1.442695
      %v704 = vpow.pop %v703
      %v705 = vmul.f32 %v694, 1.442695
      %v706 = vpow.pop %v705
      %v707 = vmul.f32 %v695, 1.442695
      %v708 = vpow.pop %v707
      %v709 = vmul.f32 %v696, 1.442695
      %v710 = vpow.pop %v709
      %v711 = vmul.f32 %v697, 1.442695
      %v712 = vpow.pop %v711
      %v713 = vmul.f32 %v698, 1.442695
      %v714 = vpow.pop %v713
      %v715 = vadd.f32 %v700, 1.0
      %v716 = vadd.f32 %v702, 1.0
      %v717 = vadd.f32 %v704, 1.0
      %v718 = vadd.f32 %v706, 1.0
      %v719 = vadd.f32 %v708, 1.0
      %v720 = vadd.f32 %v710, 1.0
      %v721 = vadd.f32 %v712, 1.0
      %v722 = vadd.f32 %v714, 1.0
      %v723 = vrcp.pop %v715
      %v724 = vmul.f32 %v715, %v723
      %v725 = vsub.f32 1.0, %v724
      %v726 = vmul.f32 %v723, %v725
      %v727 = vadd.f32 %v723, %v726
      %vm728 = vweird.f32 %v715
      %vm729 = vweird.f32 %v723
      %vm730 = vmor %vm728, %vm729
      %v731 = vsel %vm730, %v723, %v727
      %v732 = vand.u32 2147483647, %v715
      %vm733 = vcmp.eq.f32.partialorder %v732, 8.507059e+37
      %v734 = vand.u32 %v715, 2147483648
      %v735 = vor.u32 1.1754944e-38, %v734
      %v736 = vsel %vm733, %v735, %v731
      %v737 = vmul.f32 1.0, %v736
      %v738 = vrcp.pop %v716
      %v739 = vmul.f32 %v716, %v738
      %v740 = vsub.f32 1.0, %v739
      %v741 = vmul.f32 %v738, %v740
      %v742 = vadd.f32 %v738, %v741
      %vm743 = vweird.f32 %v716
      %vm744 = vweird.f32 %v738
      %vm745 = vmor %vm743, %vm744
      %v746 = vsel %vm745, %v738, %v742
      %v747 = vand.u32 2147483647, %v716
      %vm748 = vcmp.eq.f32.partialorder %v747, 8.507059e+37
      %v749 = vand.u32 %v716, 2147483648
      %v750 = vor.u32 1.1754944e-38, %v749
      %v751 = vsel %vm748, %v750, %v746
      %v752 = vmul.f32 1.0, %v751
      %v753 = vrcp.pop %v717
      %v754 = vmul.f32 %v717, %v753
      %v755 = vsub.f32 1.0, %v754
      %v756 = vmul.f32 %v753, %v755
      %v757 = vadd.f32 %v753, %v756
      %vm758 = vweird.f32 %v717
      %vm759 = vweird.f32 %v753
      %vm760 = vmor %vm758, %vm759
      %v761 = vsel %vm760, %v753, %v757
      %v762 = vand.u32 2147483647, %v717
      %vm763 = vcmp.eq.f32.partialorder %v762, 8.507059e+37
      %v764 = vand.u32 %v717, 2147483648
      %v765 = vor.u32 1.1754944e-38, %v764
      %v766 = vsel %vm763, %v765, %v761
      %v767 = vmul.f32 1.0, %v766
      %v768 = vrcp.pop %v718
      %v769 = vmul.f32 %v718, %v768
      %v770 = vsub.f32 1.0, %v769
      %v771 = vmul.f32 %v768, %v770
      %v772 = vadd.f32 %v768, %v771
      %vm773 = vweird.f32 %v718
      %vm774 = vweird.f32 %v768
      %vm775 = vmor %vm773, %vm774
      %v776 = vsel %vm775, %v768, %v772
      %v777 = vand.u32 2147483647, %v718
      %vm778 = vcmp.eq.f32.partialorder %v777, 8.507059e+37
      %v779 = vand.u32 %v718, 2147483648
      %v780 = vor.u32 1.1754944e-38, %v779
      %v781 = vsel %vm778, %v780, %v776
      %v782 = vmul.f32 1.0, %v781
      %v783 = vrcp.pop %v719
      %v784 = vmul.f32 %v719, %v783
      %v785 = vsub.f32 1.0, %v784
      %v786 = vmul.f32 %v783, %v785
      %v787 = vadd.f32 %v783, %v786
      %vm788 = vweird.f32 %v719
      %vm789 = vweird.f32 %v783
      %vm790 = vmor %vm788, %vm789
      %v791 = vsel %vm790, %v783, %v787
      %v792 = vand.u32 2147483647, %v719
      %vm793 = vcmp.eq.f32.partialorder %v792, 8.507059e+37
      %v794 = vand.u32 %v719, 2147483648
      %v795 = vor.u32 1.1754944e-38, %v794
      %v796 = vsel %vm793, %v795, %v791
      %v797 = vmul.f32 1.0, %v796
      %v798 = vrcp.pop %v720
      %v799 = vmul.f32 %v720, %v798
      %v800 = vsub.f32 1.0, %v799
      %v801 = vmul.f32 %v798, %v800
      %v802 = vadd.f32 %v798, %v801
      %vm803 = vweird.f32 %v720
      %vm804 = vweird.f32 %v798
      %vm805 = vmor %vm803, %vm804
      %v806 = vsel %vm805, %v798, %v802
      %v807 = vand.u32 2147483647, %v720
      %vm808 = vcmp.eq.f32.partialorder %v807, 8.507059e+37
      %v809 = vand.u32 %v720, 2147483648
      %v810 = vor.u32 1.1754944e-38, %v809
      %v811 = vsel %vm808, %v810, %v806
      %v812 = vmul.f32 1.0, %v811
      %v813 = vrcp.pop %v721
      %v814 = vmul.f32 %v721, %v813
      %v815 = vsub.f32 1.0, %v814
      %v816 = vmul.f32 %v813, %v815
      %v817 = vadd.f32 %v813, %v816
      %vm818 = vweird.f32 %v721
      %vm819 = vweird.f32 %v813
      %vm820 = vmor %vm818, %vm819
      %v821 = vsel %vm820, %v813, %v817
      %v822 = vand.u32 2147483647, %v721
      %vm823 = vcmp.eq.f32.partialorder %v822, 8.507059e+37
      %v824 = vand.u32 %v721, 2147483648
      %v825 = vor.u32 1.1754944e-38, %v824
      %v826 = vsel %vm823, %v825, %v821
      %v827 = vmul.f32 1.0, %v826
      %v828 = vrcp.pop %v722
      %v829 = vmul.f32 %v722, %v828
      %v830 = vsub.f32 1.0, %v829
      %v831 = vmul.f32 %v828, %v830
      %v832 = vadd.f32 %v828, %v831
      %vm833 = vweird.f32 %v722
      %vm834 = vweird.f32 %v828
      %vm835 = vmor %vm833, %vm834
      %v836 = vsel %vm835, %v828, %v832
      %v837 = vand.u32 2147483647, %v722
      %vm838 = vcmp.eq.f32.partialorder %v837, 8.507059e+37
      %v839 = vand.u32 %v722, 2147483648
      %v840 = vor.u32 1.1754944e-38, %v839
      %v841 = vsel %vm838, %v840, %v836
      %v842 = vmul.f32 1.0, %v841
      %843 = vst.msk [vmem:[%s144] sm:$0xff] %vm145, %v737
      %844 = vst.msk [vmem:[%s144 + $0x8] sm:$0x3] %vm147, %v752
      %845 = vst.msk [vmem:[%s144 + $0x10] sm:$0xff] %vm145, %v767
      %846 = vst.msk [vmem:[%s144 + $0x18] sm:$0x3] %vm147, %v782
      %847 = vst.msk [vmem:[%s144 + $0x20] sm:$0xff] %vm145, %v797
      %848 = vst.msk [vmem:[%s144 + $0x28] sm:$0x3] %vm147, %v812
      %849 = vst.msk [vmem:[%s144 + $0x30] sm:$0xff] %vm145, %v827
      %850 = vst.msk [vmem:[%s144 + $0x38] sm:$0x3] %vm147, %v842
      %p851 = scmp.lt.s32.totalorder %s14, 1
      %s852 = scalar_select %p851, %s14, 1
      %s853 = smul.addr %s852, 8
      %s854 = smul.addr %s853, 8
      %s855 = scalar_lea.vmem %s2, %s854
      // Predicated region
      $region29: #{encoder_decoder_forward.3} parent=27 // pred_check
        %p856 = pneg %p79
      $region30: #{encoder_decoder_forward.3} parent=27 // pred_check_branch
        %858 = sbr.rel (%p856) target = $region32
      $region31: #{encoder_decoder_forward.3} parent=27 // pred_region
        _
      $region32: #{encoder_decoder_forward.3} parent=27 // pred_fallthru
        _
    $region28: #{encoder_decoder_forward.3} parent=5 // pred_fallthru
      _
    %p859 = scmp.le.s32.totalorder 2, %s9
    // Predicated region
    $region33: #{encoder_decoder_forward.3} parent=5 // pred_check
      %p860 = pneg %p859
    $region34: #{encoder_decoder_forward.3} parent=5 // pred_check_branch
      %862 = sbr.rel (%p860) target = $region36
    $region35: #{encoder_decoder_forward.3} parent=5 // pred_region
      %s863 = ssub.s32 %s9, 2
      // Predicated region
      $region37: #{encoder_decoder_forward.3} parent=35 // pred_check
        %p864 = pneg %p85
      $region38: #{encoder_decoder_forward.3} parent=35 // pred_check_branch
        %866 = sbr.rel (%p864) target = $region40
      $region39: #{encoder_decoder_forward.3} parent=35 // pred_region
        %p867 = scmp.lt.s32.totalorder %s15, 1
        %s868 = scalar_select %p867, %s15, 1
        %s869 = smul.addr %s868, 8
        %s870 = smul.addr %s869, 8
        %s871 = scalar_lea.vmem %s2, %s870
      $region40: #{encoder_decoder_forward.3} parent=35 // pred_fallthru
        _
    $region36: #{encoder_decoder_forward.3} parent=5 // pred_fallthru
      _
  $region6: #{encoder_decoder_forward.3} parent=0 // loop_footer
    %s13 = sadd.s32 1, %s9
  $region7: #{encoder_decoder_forward.3} parent=0 // loop_footer_branch
    %8 = sbr.rel target = $region3
  $region8: #{encoder_decoder_forward.3} parent=0 // loop_exit
    _

</llo_original>
